<compile_context>
chip_gen: v7x
topology: tpu7x:2x2x1
jax: 0.10.0
libtpu: 0.0.40
codegen_flags: <defaults>
</compile_context>

<pallas_src>
import functools

import jax
import jax.numpy as jnp
from jax.experimental import pallas as pl
from jax.experimental.pallas import tpu as pltpu

F32 = jnp.float32
BF16 = jnp.bfloat16


# ------------------------------------------------------------------- kernel ---

def pse_ltae_kernel(px_ref, mk_ref, ex_ref, pe_ref,
                    w1a_ref, b1a_ref, w1b_ref, b1b_ref,
                    w2m_ref, w2s_ref, w2e_ref, b2_ref,
                    lnig_ref, lnib_ref,
                    wc_ref, bc_ref, wk_ref, bk_ref, qmat_ref, hexp_ref,
                    w3_ref, b3_ref, lnog_ref, lnob_ref,
                    w4a_ref, b4a_ref, w4b_ref, b4b_ref, w4c_ref, b4c_ref,
                    out_ref, *, T, S, n_head, d_k):
    """Fused PSE + L-TAE + decoder for a block of `nb` batch elements.

    px: (nb, T*S, C) bf16   mk: (nb, T, S, 1) f32   ex: (nb, T, E) bf16
    pe: (nb, T, D)  f32     out: (nb, 1, num_classes) f32
    """
    nb = px_ref.shape[0]
    NT = nb * T

    # ---------------- Pixel-Set Encoder -------------------------------------
    # MLP1 (pixel-wise shared) over ALL pixels of ALL dates in the block at once.
    x = px_ref[...].reshape(NT * S, px_ref.shape[-1])                      # (nb*T*S, C)
    h = jnp.dot(x, w1a_ref[...], preferred_element_type=F32) + b1a_ref[...]
    h = jnp.maximum(h, 0.0)                                                # Linear+BN(folded)+ReLU
    h = jnp.dot(h.astype(BF16), w1b_ref[...], preferred_element_type=F32) + b1b_ref[...]
    h = jnp.maximum(h, 0.0)                                                # (nb*T*S, 64)
    h = h.reshape(NT, S, h.shape[-1])                                      # (nb*T, S, 64)

    # masked mean / std pooling over the pixel axis
    m = mk_ref[...].reshape(NT, S, 1)                                      # (nb*T, S, 1)
    d = jnp.sum(m, axis=1, keepdims=True)                                  # (nb*T, 1, 1)
    d_mean = jnp.maximum(d, 1.0)                                           # guard fully-masked dates
    mean = jnp.sum(h * m, axis=1, keepdims=True) / d_mean                  # (nb*T, 1, 64)
    dev = (h - mean) * m
    d_var = jnp.where(d <= 1.0, 2.0, d)                                    # torch: d[d == 1] = 2
    var = jnp.sum(dev * dev, axis=1, keepdims=True) / (d_var - 1.0)
    std = jnp.sqrt(var + 1e-31)
    mean = mean.reshape(NT, -1)                                            # (nb*T, 64)
    std = std.reshape(NT, -1)

    # MLP2 on concat([mean, std, extra]); concat folded into block-split weights.
    ex = ex_ref[...].reshape(NT, -1)                                       # (nb*T, E) bf16
    feat = (jnp.dot(mean.astype(BF16), w2m_ref[...], preferred_element_type=F32)
            + jnp.dot(std.astype(BF16), w2s_ref[...], preferred_element_type=F32)
            + jnp.dot(ex, w2e_ref[...], preferred_element_type=F32)
            + b2_ref[...])                                                 # Linear+BN (no ReLU), (nb*T, 128)

    # ---------------- L-TAE --------------------------------------------------
    # input LayerNorm (over the 128 input channels)
    mu = jnp.mean(feat, axis=-1, keepdims=True)
    va = jnp.mean((feat - mu) ** 2, axis=-1, keepdims=True)
    xn = (feat - mu) * jax.lax.rsqrt(va + 1e-5) * lnig_ref[...] + lnib_ref[...]

    # inconv: 1x1 Conv1d == per-date Linear 128 -> d_model
    xc = jnp.dot(xn.astype(BF16), wc_ref[...], preferred_element_type=F32) + bc_ref[...]
    e = xc + pe_ref[...].reshape(NT, -1)                                   # keys/values (nb*T, D)

    # keys: Linear(D -> H*d_k); master query folded into block-diagonal qmat (H*d_k, H)
    k = jnp.dot(e.astype(BF16), wk_ref[...], preferred_element_type=F32) + bk_ref[...]
    scores = jnp.dot(k.astype(BF16), qmat_ref[...],
                     preferred_element_type=F32) * (1.0 / (d_k ** 0.5))    # (nb*T, H)

    # softmax over time, per head
    scores = scores.reshape(nb, T, n_head)
    scores = scores - jnp.max(scores, axis=1, keepdims=True)
    pexp = jnp.exp(scores)
    attn = pexp / jnp.sum(pexp, axis=1, keepdims=True)                     # (nb, T, H)
    # TODO(synk): attention dropout (p=0.1) is eval-mode identity here.

    # values: e split into H chunks of D/H features; head-major concat gives D feats:
    #   heads[b, f] = sum_t attn[b, t, f // (D/H)] * e[b, t, f]
    attn_full = jnp.dot(attn.reshape(NT, n_head), hexp_ref[...],
                        preferred_element_type=F32)                        # (nb*T, D)
    heads = jnp.sum((attn_full * e).reshape(nb, T, -1), axis=1)            # (nb, D)

    # mlp3: Linear(D -> 128) + BN(folded) + ReLU, then dropout (identity) + LayerNorm
    z = jnp.dot(heads.astype(BF16), w3_ref[...], preferred_element_type=F32) + b3_ref[...]
    z = jnp.maximum(z, 0.0)
    # TODO(synk): dropout (p=0.2) is eval-mode identity here.
    mu = jnp.mean(z, axis=-1, keepdims=True)
    va = jnp.mean((z - mu) ** 2, axis=-1, keepdims=True)
    z = (z - mu) * jax.lax.rsqrt(va + 1e-5) * lnog_ref[...] + lnob_ref[...]

    # ---------------- decoder: 128 -> 64 -> 32 -> num_classes ---------------
    z = jnp.dot(z.astype(BF16), w4a_ref[...], preferred_element_type=F32) + b4a_ref[...]
    z = jnp.maximum(z, 0.0)
    z = jnp.dot(z.astype(BF16), w4b_ref[...], preferred_element_type=F32) + b4b_ref[...]
    z = jnp.maximum(z, 0.0)
    z = jnp.dot(z.astype(BF16), w4c_ref[...], preferred_element_type=F32) + b4c_ref[...]

    out_ref[...] = z.reshape(z.shape[0], 1, z.shape[1])


# --------------------------------------------------------------- glue / init ---

def ltae_position_encoding(positions, d_model, n_head, T_div):
    """L-TAE sinusoid table of width d_model // n_head, repeated n_head times."""
    d_hid = d_model // n_head
    pos = positions.astype(F32)[..., None]                                 # (B, T, 1)
    i = jnp.arange(d_hid)
    denom = jnp.power(jnp.float32(T_div), (2 * (i // 2)).astype(F32) / d_hid)
    ang = pos / denom                                                      # (B, T, d_hid)
    pe = jnp.where(i % 2 == 0, jnp.sin(ang), jnp.cos(ang))
    return jnp.tile(pe, (1, 1, n_head)).astype(F32)                        # (B, T, d_model)


def init_params(key, *,
                mlp1=(10, 32, 64), mlp2_out=128, extra_size=4,
                n_head=16, d_k=8, d_model=256, mlp3=(256, 128),
                mlp4=(128, 64, 32), num_classes=20,
                T=1000, max_temporal_shift=100):
    keys = iter(jax.random.split(key, 64))

    def nrm(shape, std=0.1):
        return (std * jax.random.normal(next(keys), shape)).astype(F32)

    def bn_fold(f):
        # eval-mode BatchNorm folded to per-feature scale/shift
        gamma = 1.0 + 0.1 * jax.random.normal(next(keys), (f,))
        beta = 0.1 * jax.random.normal(next(keys), (f,))
        rm = 0.1 * jax.random.normal(next(keys), (f,))
        rv = jax.random.uniform(next(keys), (f,), minval=0.5, maxval=1.5)
        scale = (gamma / jnp.sqrt(rv + 1e-5)).astype(F32)
        shift = (beta - rm * scale).astype(F32)
        return scale, shift

    def folded_linear(fan_in, fan_out, std=0.1):
        # Linear + eval-mode BN folded into the weights: W' = W*s, b' = b*s + t
        w = nrm((fan_in, fan_out), std)
        b = nrm((fan_out,), std)
        s, t = bn_fold(fan_out)
        return (w * s[None, :]).astype(BF16), (b * s + t).reshape(1, fan_out).astype(F32)

    p = {}
    # --- Pixel-Set Encoder ---------------------------------------------------
    p['w1a'], p['b1a'] = folded_linear(mlp1[0], mlp1[1])                   # 10 -> 32
    p['w1b'], p['b1b'] = folded_linear(mlp1[1], mlp1[2])                   # 32 -> 64
    # mlp2: Linear(2*64 + extra -> 128) + BN (folded); split along the concat blocks
    f_pool = mlp1[2]
    w2 = nrm((2 * f_pool + extra_size, mlp2_out))
    b2 = nrm((mlp2_out,))
    s2, t2 = bn_fold(mlp2_out)
    w2 = w2 * s2[None, :]
    p['w2m'] = w2[:f_pool].astype(BF16)
    p['w2s'] = w2[f_pool:2 * f_pool].astype(BF16)
    p['w2e'] = w2[2 * f_pool:].astype(BF16)
    p['b2'] = (b2 * s2 + t2).reshape(1, mlp2_out).astype(F32)

    in_ch = mlp2_out
    # --- L-TAE ----------------------------------------------------------------
    p['ln_in_g'] = (1.0 + 0.1 * jax.random.normal(next(keys), (1, in_ch))).astype(F32)
    p['ln_in_b'] = nrm((1, in_ch))
    p['wc'] = nrm((in_ch, d_model)).astype(BF16)                           # inconv 1x1: 128 -> 256
    p['bc'] = nrm((1, d_model))
    p['wk'] = nrm((d_model, n_head * d_k), std=(2.0 / d_k) ** 0.5).astype(BF16)
    p['bk'] = nrm((1, n_head * d_k))
    # master query Q (H, d_k) folded into a block-diagonal (H*d_k, H) matrix
    q = ((2.0 / d_k) ** 0.5 * jax.random.normal(next(keys), (n_head, d_k))).astype(F32)
    row = jnp.arange(n_head * d_k)
    col = jnp.arange(n_head)
    p['qmat'] = jnp.where(row[:, None] // d_k == col[None, :],
                          q.reshape(-1)[:, None], 0.0).astype(BF16)
    # 0/1 matrix expanding per-head attention to the per-head value slices
    d_head = d_model // n_head
    p['hexp'] = (jnp.arange(d_model)[None, :] // d_head
                 == jnp.arange(n_head)[:, None]).astype(F32)               # (H, D)
    p['w3'], p['b3'] = folded_linear(mlp3[0], mlp3[1])                     # 256 -> 128
    p['ln_out_g'] = (1.0 + 0.1 * jax.random.normal(next(keys), (1, mlp3[1]))).astype(F32)
    p['ln_out_b'] = nrm((1, mlp3[1]))
    # --- decoder ---------------------------------------------------------------
    p['w4a'], p['b4a'] = folded_linear(mlp4[0], mlp4[1])                   # 128 -> 64
    p['w4b'], p['b4b'] = folded_linear(mlp4[1], mlp4[2])                   # 64 -> 32
    p['w4c'] = nrm((mlp4[2], num_classes)).astype(BF16)                    # 32 -> 20
    p['b4c'] = nrm((1, num_classes))

    p.update(d_model=d_model, n_head=n_head, d_k=d_k, num_classes=num_classes,
             T=T, max_temporal_shift=max_temporal_shift)
    return p


def _rep_spec(a):
    """Full-array BlockSpec with a constant index map (weight stays VMEM-resident)."""
    nd = a.ndim
    return pl.BlockSpec(a.shape, lambda i, _nd=nd: (0,) * _nd)


def _pick_batch_block(B, T, S, target_rows=256):
    """Batch elements per grid step: aim for >= target_rows MXU rows in the pixel MLP
    while keeping >= 2 grid steps so 2-TensorCore chips (v7x) can shard the grid."""
    nb = max(1, min(B, target_rows // max(T * S, 1)))
    while B % nb:
        nb -= 1
    if B // nb < 2 <= B:
        nb = max(1, B // 2)
        while B % nb:
            nb -= 1
    return max(nb, 1)


def pse_ltae_forward(params, pixels, mask, positions, extra):
    B, T, C, S = pixels.shape
    E = extra.shape[-1]
    p = params
    D, H, dk, nc = p['d_model'], p['n_head'], p['d_k'], p['num_classes']

    # Channel-last pixel layout + bf16 cast for the MXU.
    # TODO(synk): store pixels channel-last at data-load time in production so this
    # per-call HBM transpose disappears; kept here to preserve the (B,T,C,S) interface.
    px = jnp.transpose(pixels, (0, 1, 3, 2)).reshape(B, T * S, C).astype(BF16)
    mk = mask.reshape(B, T, S, 1).astype(F32)
    ex = extra.astype(BF16)                                                # (B, T, E)
    pe = ltae_position_encoding(positions + p['max_temporal_shift'], D, H, p['T'])

    nb = _pick_batch_block(B, T, S)

    weights = (p['w1a'], p['b1a'], p['w1b'], p['b1b'],
               p['w2m'], p['w2s'], p['w2e'], p['b2'],
               p['ln_in_g'], p['ln_in_b'],
               p['wc'], p['bc'], p['wk'], p['bk'], p['qmat'], p['hexp'],
               p['w3'], p['b3'], p['ln_out_g'], p['ln_out_b'],
               p['w4a'], p['b4a'], p['w4b'], p['b4b'], p['w4c'], p['b4c'])

    in_specs = ([pl.BlockSpec((nb, T * S, C), lambda i: (i, 0, 0)),
                 pl.BlockSpec((nb, T, S, 1), lambda i: (i, 0, 0, 0)),
                 pl.BlockSpec((nb, T, E), lambda i: (i, 0, 0)),
                 pl.BlockSpec((nb, T, D), lambda i: (i, 0, 0))]
                + [_rep_spec(w) for w in weights])

    out = pl.pallas_call(
        functools.partial(pse_ltae_kernel, T=T, S=S, n_head=H, d_k=dk),
        out_shape=jax.ShapeDtypeStruct((B, 1, nc), F32),
        grid=(B // nb,),
        in_specs=in_specs,
        out_specs=pl.BlockSpec((nb, 1, nc), lambda i: (i, 0, 0)),
        compiler_params=pltpu.CompilerParams(dimension_semantics=("parallel",)),
    )(px, mk, ex, pe, *weights)
    return out.reshape(B, nc)


# ---------------------------------------------------------------------- main ---

if __name__ == "__main__":
    key = jax.random.PRNGKey(0)
    kp, kx, km, kpos, ke = jax.random.split(key, 5)

    B, T, C, S, E = 2, 8, 10, 16, 4   # batch, seq-len, channels, pixels, extra feats
    params = init_params(kp)

    pixels = jax.random.normal(kx, (B, T, C, S), dtype=F32)
    npix = jax.random.randint(km, (B, T), 2, S + 1)
    mask = (jnp.arange(S)[None, None, :] < npix[:, :, None]).astype(F32)
    positions = jax.random.randint(kpos, (B, T), 0, 365)
    extra = jax.random.normal(ke, (B, T, E), dtype=F32)

    logits = pse_ltae_forward(params, pixels, mask, positions, extra)
    logits = jax.block_until_ready(logits)
    assert logits.shape == (B, 20), logits.shape
    assert bool(jnp.all(jnp.isfinite(logits)))
    print("KERNEL_OK")
</pallas_src>

<mosaic_0001>
module attributes {stable_mosaic.version = 11 : i64} {
  func.func @pse_ltae_kernel(%arg0: i32, %arg1: memref<1x128x10xbf16, #tpu.memory_space<vmem>>, %arg2: memref<1x8x16x1xf32, #tpu.memory_space<vmem>>, %arg3: memref<1x8x4xbf16, #tpu.memory_space<vmem>>, %arg4: memref<1x8x256xf32, #tpu.memory_space<vmem>>, %arg5: memref<10x32xbf16, #tpu.memory_space<vmem>>, %arg6: memref<1x32xf32, #tpu.memory_space<vmem>>, %arg7: memref<32x64xbf16, #tpu.memory_space<vmem>>, %arg8: memref<1x64xf32, #tpu.memory_space<vmem>>, %arg9: memref<64x128xbf16, #tpu.memory_space<vmem>>, %arg10: memref<64x128xbf16, #tpu.memory_space<vmem>>, %arg11: memref<4x128xbf16, #tpu.memory_space<vmem>>, %arg12: memref<1x128xf32, #tpu.memory_space<vmem>>, %arg13: memref<1x128xf32, #tpu.memory_space<vmem>>, %arg14: memref<1x128xf32, #tpu.memory_space<vmem>>, %arg15: memref<128x256xbf16, #tpu.memory_space<vmem>>, %arg16: memref<1x256xf32, #tpu.memory_space<vmem>>, %arg17: memref<256x128xbf16, #tpu.memory_space<vmem>>, %arg18: memref<1x128xf32, #tpu.memory_space<vmem>>, %arg19: memref<128x16xbf16, #tpu.memory_space<vmem>>, %arg20: memref<16x256xf32, #tpu.memory_space<vmem>>, %arg21: memref<256x128xbf16, #tpu.memory_space<vmem>>, %arg22: memref<1x128xf32, #tpu.memory_space<vmem>>, %arg23: memref<1x128xf32, #tpu.memory_space<vmem>>, %arg24: memref<1x128xf32, #tpu.memory_space<vmem>>, %arg25: memref<128x64xbf16, #tpu.memory_space<vmem>>, %arg26: memref<1x64xf32, #tpu.memory_space<vmem>>, %arg27: memref<64x32xbf16, #tpu.memory_space<vmem>>, %arg28: memref<1x32xf32, #tpu.memory_space<vmem>>, %arg29: memref<32x20xbf16, #tpu.memory_space<vmem>>, %arg30: memref<1x20xf32, #tpu.memory_space<vmem>>, %arg31: memref<1x1x20xf32, #tpu.memory_space<vmem>>) attributes {dimension_semantics = [#tpu.dimension_semantics<parallel>], iteration_bounds = array<i64: 2>, scalar_prefetch = 0 : i64, scratch_operands = 0 : i64, tpu.core_type = #tpu.core_type<tc>, window_params = [{transform_indices = @transform_0, window_bounds = array<i64: 1, 128, 10>}, {transform_indices = @transform_1, window_bounds = array<i64: 1, 8, 16, 1>}, {transform_indices = @transform_2, window_bounds = array<i64: 1, 8, 4>}, {transform_indices = @transform_3, window_bounds = array<i64: 1, 8, 256>}, {pipeline_mode = #tpu.pipeline_mode<synchronous>, transform_indices = @transform_4, window_bounds = array<i64: 10, 32>}, {pipeline_mode = #tpu.pipeline_mode<synchronous>, transform_indices = @transform_5, window_bounds = array<i64: 1, 32>}, {pipeline_mode = #tpu.pipeline_mode<synchronous>, transform_indices = @transform_6, window_bounds = array<i64: 32, 64>}, {pipeline_mode = #tpu.pipeline_mode<synchronous>, transform_indices = @transform_7, window_bounds = array<i64: 1, 64>}, {pipeline_mode = #tpu.pipeline_mode<synchronous>, transform_indices = @transform_8, window_bounds = array<i64: 64, 128>}, {pipeline_mode = #tpu.pipeline_mode<synchronous>, transform_indices = @transform_9, window_bounds = array<i64: 64, 128>}, {pipeline_mode = #tpu.pipeline_mode<synchronous>, transform_indices = @transform_10, window_bounds = array<i64: 4, 128>}, {pipeline_mode = #tpu.pipeline_mode<synchronous>, transform_indices = @transform_11, window_bounds = array<i64: 1, 128>}, {pipeline_mode = #tpu.pipeline_mode<synchronous>, transform_indices = @transform_12, window_bounds = array<i64: 1, 128>}, {pipeline_mode = #tpu.pipeline_mode<synchronous>, transform_indices = @transform_13, window_bounds = array<i64: 1, 128>}, {pipeline_mode = #tpu.pipeline_mode<synchronous>, transform_indices = @transform_14, window_bounds = array<i64: 128, 256>}, {pipeline_mode = #tpu.pipeline_mode<synchronous>, transform_indices = @transform_15, window_bounds = array<i64: 1, 256>}, {pipeline_mode = #tpu.pipeline_mode<synchronous>, transform_indices = @transform_16, window_bounds = array<i64: 256, 128>}, {pipeline_mode = #tpu.pipeline_mode<synchronous>, transform_indices = @transform_17, window_bounds = array<i64: 1, 128>}, {pipeline_mode = #tpu.pipeline_mode<synchronous>, transform_indices = @transform_18, window_bounds = array<i64: 128, 16>}, {pipeline_mode = #tpu.pipeline_mode<synchronous>, transform_indices = @transform_19, window_bounds = array<i64: 16, 256>}, {pipeline_mode = #tpu.pipeline_mode<synchronous>, transform_indices = @transform_20, window_bounds = array<i64: 256, 128>}, {pipeline_mode = #tpu.pipeline_mode<synchronous>, transform_indices = @transform_21, window_bounds = array<i64: 1, 128>}, {pipeline_mode = #tpu.pipeline_mode<synchronous>, transform_indices = @transform_22, window_bounds = array<i64: 1, 128>}, {pipeline_mode = #tpu.pipeline_mode<synchronous>, transform_indices = @transform_23, window_bounds = array<i64: 1, 128>}, {pipeline_mode = #tpu.pipeline_mode<synchronous>, transform_indices = @transform_24, window_bounds = array<i64: 128, 64>}, {pipeline_mode = #tpu.pipeline_mode<synchronous>, transform_indices = @transform_25, window_bounds = array<i64: 1, 64>}, {pipeline_mode = #tpu.pipeline_mode<synchronous>, transform_indices = @transform_26, window_bounds = array<i64: 64, 32>}, {pipeline_mode = #tpu.pipeline_mode<synchronous>, transform_indices = @transform_27, window_bounds = array<i64: 1, 32>}, {pipeline_mode = #tpu.pipeline_mode<synchronous>, transform_indices = @transform_28, window_bounds = array<i64: 32, 20>}, {pipeline_mode = #tpu.pipeline_mode<synchronous>, transform_indices = @transform_29, window_bounds = array<i64: 1, 20>}, {transform_indices = @transform_30, window_bounds = array<i64: 1, 1, 20>}]} {
    %c0 = arith.constant 0 : index
    %c0_0 = arith.constant 0 : index
    %c0_1 = arith.constant 0 : index
    %0 = vector.load %arg1[%c0, %c0_0, %c0_1] : memref<1x128x10xbf16, #tpu.memory_space<vmem>>, vector<1x128x10xbf16>
    %1 = vector.shape_cast %0 : vector<1x128x10xbf16> to vector<128x10xbf16>
    %c0_2 = arith.constant 0 : index
    %c0_3 = arith.constant 0 : index
    %2 = vector.load %arg5[%c0_2, %c0_3] : memref<10x32xbf16, #tpu.memory_space<vmem>>, vector<10x32xbf16>
    %cst = arith.constant dense<0.000000e+00> : vector<128x32xf32>
    %3 = tpu.matmul %1, %2, %cst {dimension_numbers = #tpu.dot_dimension_numbers<[1], [0], [0], [1], [0, 0, 1, 1], [], []>} : vector<128x10xbf16>, vector<10x32xbf16>, vector<128x32xf32> -> vector<128x32xf32>
    %c0_4 = arith.constant 0 : index
    %c0_5 = arith.constant 0 : index
    %4 = vector.load %arg6[%c0_4, %c0_5] : memref<1x32xf32, #tpu.memory_space<vmem>>, vector<1x32xf32>
    %5 = vector.broadcast %4 : vector<1x32xf32> to vector<128x32xf32>
    %6 = arith.addf %3, %5 : vector<128x32xf32>
    %cst_6 = arith.constant 0.000000e+00 : f32
    %7 = vector.broadcast %cst_6 : f32 to vector<128x32xf32>
    %8 = arith.maximumf %6, %7 : vector<128x32xf32>
    %9 = arith.truncf %8 : vector<128x32xf32> to vector<128x32xbf16>
    %c0_7 = arith.constant 0 : index
    %c0_8 = arith.constant 0 : index
    %10 = vector.load %arg7[%c0_7, %c0_8] : memref<32x64xbf16, #tpu.memory_space<vmem>>, vector<32x64xbf16>
    %cst_9 = arith.constant dense<0.000000e+00> : vector<128x64xf32>
    %11 = tpu.matmul %9, %10, %cst_9 {dimension_numbers = #tpu.dot_dimension_numbers<[1], [0], [0], [1], [0, 0, 1, 1], [], []>} : vector<128x32xbf16>, vector<32x64xbf16>, vector<128x64xf32> -> vector<128x64xf32>
    %c0_10 = arith.constant 0 : index
    %c0_11 = arith.constant 0 : index
    %12 = vector.load %arg8[%c0_10, %c0_11] : memref<1x64xf32, #tpu.memory_space<vmem>>, vector<1x64xf32>
    %13 = vector.broadcast %12 : vector<1x64xf32> to vector<128x64xf32>
    %14 = arith.addf %11, %13 : vector<128x64xf32>
    %cst_12 = arith.constant 0.000000e+00 : f32
    %15 = vector.broadcast %cst_12 : f32 to vector<128x64xf32>
    %16 = arith.maximumf %14, %15 : vector<128x64xf32>
    %17 = vector.shape_cast %16 : vector<128x64xf32> to vector<8x16x64xf32>
    %c0_13 = arith.constant 0 : index
    %c0_14 = arith.constant 0 : index
    %c0_15 = arith.constant 0 : index
    %c0_16 = arith.constant 0 : index
    %18 = vector.load %arg2[%c0_13, %c0_14, %c0_15, %c0_16] : memref<1x8x16x1xf32, #tpu.memory_space<vmem>>, vector<1x8x16x1xf32>
    %19 = vector.shape_cast %18 : vector<1x8x16x1xf32> to vector<8x16x1xf32>
    %cst_17 = arith.constant dense<0.000000e+00> : vector<8x1xf32>
    %20 = vector.multi_reduction <add>, %19, %cst_17 [1] : vector<8x16x1xf32> to vector<8x1xf32>
    %21 = vector.shape_cast %20 : vector<8x1xf32> to vector<8x1x1xf32>
    %cst_18 = arith.constant 1.000000e+00 : f32
    %22 = vector.broadcast %cst_18 : f32 to vector<8x1x1xf32>
    %23 = arith.maximumf %21, %22 : vector<8x1x1xf32>
    %24 = vector.broadcast %19 : vector<8x16x1xf32> to vector<8x16x64xf32>
    %25 = arith.mulf %17, %24 : vector<8x16x64xf32>
    %cst_19 = arith.constant dense<0.000000e+00> : vector<8x64xf32>
    %26 = vector.multi_reduction <add>, %25, %cst_19 [1] : vector<8x16x64xf32> to vector<8x64xf32>
    %27 = vector.shape_cast %26 : vector<8x64xf32> to vector<8x1x64xf32>
    %28 = vector.broadcast %23 : vector<8x1x1xf32> to vector<8x1x64xf32>
    %29 = arith.divf %27, %28 : vector<8x1x64xf32>
    %30 = vector.broadcast %29 : vector<8x1x64xf32> to vector<8x16x64xf32>
    %31 = arith.subf %17, %30 : vector<8x16x64xf32>
    %32 = vector.broadcast %19 : vector<8x16x1xf32> to vector<8x16x64xf32>
    %33 = arith.mulf %31, %32 : vector<8x16x64xf32>
    %cst_20 = arith.constant 1.000000e+00 : f32
    %34 = vector.broadcast %cst_20 : f32 to vector<8x1x1xf32>
    %35 = arith.cmpf ole, %21, %34 : vector<8x1x1xf32>
    %cst_21 = arith.constant 2.000000e+00 : f32
    %36 = vector.broadcast %cst_21 : f32 to vector<8x1x1xf32>
    %37 = arith.select %35, %36, %21 : vector<8x1x1xi1>, vector<8x1x1xf32>
    %38 = arith.mulf %33, %33 : vector<8x16x64xf32>
    %cst_22 = arith.constant dense<0.000000e+00> : vector<8x64xf32>
    %39 = vector.multi_reduction <add>, %38, %cst_22 [1] : vector<8x16x64xf32> to vector<8x64xf32>
    %40 = vector.shape_cast %39 : vector<8x64xf32> to vector<8x1x64xf32>
    %cst_23 = arith.constant 1.000000e+00 : f32
    %41 = vector.broadcast %cst_23 : f32 to vector<8x1x1xf32>
    %42 = arith.subf %37, %41 : vector<8x1x1xf32>
    %43 = vector.broadcast %42 : vector<8x1x1xf32> to vector<8x1x64xf32>
    %44 = arith.divf %40, %43 : vector<8x1x64xf32>
    %cst_24 = arith.constant 9.99999979E-32 : f32
    %45 = vector.broadcast %cst_24 : f32 to vector<8x1x64xf32>
    %46 = arith.addf %44, %45 : vector<8x1x64xf32>
    %47 = math.sqrt %46 : vector<8x1x64xf32>
    %48 = vector.shape_cast %29 : vector<8x1x64xf32> to vector<8x64xf32>
    %49 = vector.shape_cast %47 : vector<8x1x64xf32> to vector<8x64xf32>
    %c0_25 = arith.constant 0 : index
    %c0_26 = arith.constant 0 : index
    %c0_27 = arith.constant 0 : index
    %50 = vector.load %arg3[%c0_25, %c0_26, %c0_27] : memref<1x8x4xbf16, #tpu.memory_space<vmem>>, vector<1x8x4xbf16>
    %51 = vector.shape_cast %50 : vector<1x8x4xbf16> to vector<8x4xbf16>
    %52 = arith.truncf %48 : vector<8x64xf32> to vector<8x64xbf16>
    %c0_28 = arith.constant 0 : index
    %c0_29 = arith.constant 0 : index
    %53 = vector.load %arg9[%c0_28, %c0_29] : memref<64x128xbf16, #tpu.memory_space<vmem>>, vector<64x128xbf16>
    %cst_30 = arith.constant dense<0.000000e+00> : vector<8x128xf32>
    %54 = tpu.matmul %52, %53, %cst_30 {dimension_numbers = #tpu.dot_dimension_numbers<[1], [0], [0], [1], [0, 0, 1, 1], [], []>} : vector<8x64xbf16>, vector<64x128xbf16>, vector<8x128xf32> -> vector<8x128xf32>
    %55 = arith.truncf %49 : vector<8x64xf32> to vector<8x64xbf16>
    %c0_31 = arith.constant 0 : index
    %c0_32 = arith.constant 0 : index
    %56 = vector.load %arg10[%c0_31, %c0_32] : memref<64x128xbf16, #tpu.memory_space<vmem>>, vector<64x128xbf16>
    %cst_33 = arith.constant dense<0.000000e+00> : vector<8x128xf32>
    %57 = tpu.matmul %55, %56, %cst_33 {dimension_numbers = #tpu.dot_dimension_numbers<[1], [0], [0], [1], [0, 0, 1, 1], [], []>} : vector<8x64xbf16>, vector<64x128xbf16>, vector<8x128xf32> -> vector<8x128xf32>
    %58 = arith.addf %54, %57 : vector<8x128xf32>
    %c0_34 = arith.constant 0 : index
    %c0_35 = arith.constant 0 : index
    %59 = vector.load %arg11[%c0_34, %c0_35] : memref<4x128xbf16, #tpu.memory_space<vmem>>, vector<4x128xbf16>
    %cst_36 = arith.constant dense<0.000000e+00> : vector<8x128xf32>
    %60 = tpu.matmul %51, %59, %cst_36 {dimension_numbers = #tpu.dot_dimension_numbers<[1], [0], [0], [1], [0, 0, 1, 1], [], []>} : vector<8x4xbf16>, vector<4x128xbf16>, vector<8x128xf32> -> vector<8x128xf32>
    %61 = arith.addf %58, %60 : vector<8x128xf32>
    %c0_37 = arith.constant 0 : index
    %c0_38 = arith.constant 0 : index
    %62 = vector.load %arg12[%c0_37, %c0_38] : memref<1x128xf32, #tpu.memory_space<vmem>>, vector<1x128xf32>
    %63 = vector.broadcast %62 : vector<1x128xf32> to vector<8x128xf32>
    %64 = arith.addf %61, %63 : vector<8x128xf32>
    %cst_39 = arith.constant dense<0.000000e+00> : vector<8xf32>
    %65 = vector.multi_reduction <add>, %64, %cst_39 [1] : vector<8x128xf32> to vector<8xf32>
    %66 = vector.shape_cast %65 : vector<8xf32> to vector<8x1xf32>
    %cst_40 = arith.constant 1.280000e+02 : f32
    %67 = vector.broadcast %cst_40 : f32 to vector<8x1xf32>
    %68 = arith.divf %66, %67 : vector<8x1xf32>
    %69 = vector.broadcast %68 : vector<8x1xf32> to vector<8x128xf32>
    %70 = arith.subf %64, %69 : vector<8x128xf32>
    %71 = arith.mulf %70, %70 : vector<8x128xf32>
    %cst_41 = arith.constant dense<0.000000e+00> : vector<8xf32>
    %72 = vector.multi_reduction <add>, %71, %cst_41 [1] : vector<8x128xf32> to vector<8xf32>
    %73 = vector.shape_cast %72 : vector<8xf32> to vector<8x1xf32>
    %cst_42 = arith.constant 1.280000e+02 : f32
    %74 = vector.broadcast %cst_42 : f32 to vector<8x1xf32>
    %75 = arith.divf %73, %74 : vector<8x1xf32>
    %76 = vector.broadcast %68 : vector<8x1xf32> to vector<8x128xf32>
    %77 = arith.subf %64, %76 : vector<8x128xf32>
    %cst_43 = arith.constant 9.99999974E-6 : f32
    %78 = vector.broadcast %cst_43 : f32 to vector<8x1xf32>
    %79 = arith.addf %75, %78 : vector<8x1xf32>
    %80 = math.rsqrt %79 : vector<8x1xf32>
    %81 = vector.broadcast %80 : vector<8x1xf32> to vector<8x128xf32>
    %82 = arith.mulf %77, %81 : vector<8x128xf32>
    %c0_44 = arith.constant 0 : index
    %c0_45 = arith.constant 0 : index
    %83 = vector.load %arg13[%c0_44, %c0_45] : memref<1x128xf32, #tpu.memory_space<vmem>>, vector<1x128xf32>
    %84 = vector.broadcast %83 : vector<1x128xf32> to vector<8x128xf32>
    %85 = arith.mulf %82, %84 : vector<8x128xf32>
    %c0_46 = arith.constant 0 : index
    %c0_47 = arith.constant 0 : index
    %86 = vector.load %arg14[%c0_46, %c0_47] : memref<1x128xf32, #tpu.memory_space<vmem>>, vector<1x128xf32>
    %87 = vector.broadcast %86 : vector<1x128xf32> to vector<8x128xf32>
    %88 = arith.addf %85, %87 : vector<8x128xf32>
    %89 = arith.truncf %88 : vector<8x128xf32> to vector<8x128xbf16>
    %c0_48 = arith.constant 0 : index
    %c0_49 = arith.constant 0 : index
    %90 = vector.load %arg15[%c0_48, %c0_49] : memref<128x256xbf16, #tpu.memory_space<vmem>>, vector<128x256xbf16>
    %cst_50 = arith.constant dense<0.000000e+00> : vector<8x256xf32>
    %91 = tpu.matmul %89, %90, %cst_50 {dimension_numbers = #tpu.dot_dimension_numbers<[1], [0], [0], [1], [0, 0, 1, 1], [], []>} : vector<8x128xbf16>, vector<128x256xbf16>, vector<8x256xf32> -> vector<8x256xf32>
    %c0_51 = arith.constant 0 : index
    %c0_52 = arith.constant 0 : index
    %92 = vector.load %arg16[%c0_51, %c0_52] : memref<1x256xf32, #tpu.memory_space<vmem>>, vector<1x256xf32>
    %93 = vector.broadcast %92 : vector<1x256xf32> to vector<8x256xf32>
    %94 = arith.addf %91, %93 : vector<8x256xf32>
    %c0_53 = arith.constant 0 : index
    %c0_54 = arith.constant 0 : index
    %c0_55 = arith.constant 0 : index
    %95 = vector.load %arg4[%c0_53, %c0_54, %c0_55] : memref<1x8x256xf32, #tpu.memory_space<vmem>>, vector<1x8x256xf32>
    %96 = vector.shape_cast %95 : vector<1x8x256xf32> to vector<8x256xf32>
    %97 = arith.addf %94, %96 : vector<8x256xf32>
    %98 = arith.truncf %97 : vector<8x256xf32> to vector<8x256xbf16>
    %c0_56 = arith.constant 0 : index
    %c0_57 = arith.constant 0 : index
    %99 = vector.load %arg17[%c0_56, %c0_57] : memref<256x128xbf16, #tpu.memory_space<vmem>>, vector<256x128xbf16>
    %cst_58 = arith.constant dense<0.000000e+00> : vector<8x128xf32>
    %100 = tpu.matmul %98, %99, %cst_58 {dimension_numbers = #tpu.dot_dimension_numbers<[1], [0], [0], [1], [0, 0, 1, 1], [], []>} : vector<8x256xbf16>, vector<256x128xbf16>, vector<8x128xf32> -> vector<8x128xf32>
    %c0_59 = arith.constant 0 : index
    %c0_60 = arith.constant 0 : index
    %101 = vector.load %arg18[%c0_59, %c0_60] : memref<1x128xf32, #tpu.memory_space<vmem>>, vector<1x128xf32>
    %102 = vector.broadcast %101 : vector<1x128xf32> to vector<8x128xf32>
    %103 = arith.addf %100, %102 : vector<8x128xf32>
    %104 = arith.truncf %103 : vector<8x128xf32> to vector<8x128xbf16>
    %c0_61 = arith.constant 0 : index
    %c0_62 = arith.constant 0 : index
    %105 = vector.load %arg19[%c0_61, %c0_62] : memref<128x16xbf16, #tpu.memory_space<vmem>>, vector<128x16xbf16>
    %cst_63 = arith.constant dense<0.000000e+00> : vector<8x16xf32>
    %106 = tpu.matmul %104, %105, %cst_63 {dimension_numbers = #tpu.dot_dimension_numbers<[1], [0], [0], [1], [0, 0, 1, 1], [], []>} : vector<8x128xbf16>, vector<128x16xbf16>, vector<8x16xf32> -> vector<8x16xf32>
    %cst_64 = arith.constant 0.353553385 : f32
    %107 = vector.broadcast %cst_64 : f32 to vector<8x16xf32>
    %108 = arith.mulf %106, %107 : vector<8x16xf32>
    %109 = vector.shape_cast %108 : vector<8x16xf32> to vector<1x8x16xf32>
    %cst_65 = arith.constant dense<0xFF800000> : vector<1x16xf32>
    %110 = vector.multi_reduction <maximumf>, %109, %cst_65 [1] : vector<1x8x16xf32> to vector<1x16xf32>
    %111 = vector.shape_cast %110 : vector<1x16xf32> to vector<1x1x16xf32>
    %112 = vector.broadcast %111 : vector<1x1x16xf32> to vector<1x8x16xf32>
    %113 = arith.subf %109, %112 : vector<1x8x16xf32>
    %114 = math.exp %113 : vector<1x8x16xf32>
    %cst_66 = arith.constant dense<0.000000e+00> : vector<1x16xf32>
    %115 = vector.multi_reduction <add>, %114, %cst_66 [1] : vector<1x8x16xf32> to vector<1x16xf32>
    %116 = vector.shape_cast %115 : vector<1x16xf32> to vector<1x1x16xf32>
    %117 = vector.broadcast %116 : vector<1x1x16xf32> to vector<1x8x16xf32>
    %118 = arith.divf %114, %117 : vector<1x8x16xf32>
    %119 = vector.shape_cast %118 : vector<1x8x16xf32> to vector<8x16xf32>
    %c0_67 = arith.constant 0 : index
    %c0_68 = arith.constant 0 : index
    %120 = vector.load %arg20[%c0_67, %c0_68] : memref<16x256xf32, #tpu.memory_space<vmem>>, vector<16x256xf32>
    %cst_69 = arith.constant dense<0.000000e+00> : vector<8x256xf32>
    %121 = tpu.matmul %119, %120, %cst_69 {dimension_numbers = #tpu.dot_dimension_numbers<[1], [0], [0], [1], [0, 0, 1, 1], [], []>} : vector<8x16xf32>, vector<16x256xf32>, vector<8x256xf32> -> vector<8x256xf32>
    %122 = arith.mulf %121, %97 : vector<8x256xf32>
    %123 = vector.shape_cast %122 : vector<8x256xf32> to vector<1x8x256xf32>
    %cst_70 = arith.constant dense<0.000000e+00> : vector<1x256xf32>
    %124 = vector.multi_reduction <add>, %123, %cst_70 [1] : vector<1x8x256xf32> to vector<1x256xf32>
    %125 = arith.truncf %124 : vector<1x256xf32> to vector<1x256xbf16>
    %c0_71 = arith.constant 0 : index
    %c0_72 = arith.constant 0 : index
    %126 = vector.load %arg21[%c0_71, %c0_72] : memref<256x128xbf16, #tpu.memory_space<vmem>>, vector<256x128xbf16>
    %cst_73 = arith.constant dense<0.000000e+00> : vector<1x128xf32>
    %127 = tpu.matmul %125, %126, %cst_73 {dimension_numbers = #tpu.dot_dimension_numbers<[1], [0], [0], [1], [0, 0, 1, 1], [], []>} : vector<1x256xbf16>, vector<256x128xbf16>, vector<1x128xf32> -> vector<1x128xf32>
    %c0_74 = arith.constant 0 : index
    %c0_75 = arith.constant 0 : index
    %128 = vector.load %arg22[%c0_74, %c0_75] : memref<1x128xf32, #tpu.memory_space<vmem>>, vector<1x128xf32>
    %129 = arith.addf %127, %128 : vector<1x128xf32>
    %cst_76 = arith.constant 0.000000e+00 : f32
    %130 = vector.broadcast %cst_76 : f32 to vector<1x128xf32>
    %131 = arith.maximumf %129, %130 : vector<1x128xf32>
    %cst_77 = arith.constant dense<0.000000e+00> : vector<1xf32>
    %132 = vector.multi_reduction <add>, %131, %cst_77 [1] : vector<1x128xf32> to vector<1xf32>
    %133 = vector.shape_cast %132 : vector<1xf32> to vector<1x1xf32>
    %cst_78 = arith.constant 1.280000e+02 : f32
    %134 = vector.broadcast %cst_78 : f32 to vector<1x1xf32>
    %135 = arith.divf %133, %134 : vector<1x1xf32>
    %136 = vector.broadcast %135 : vector<1x1xf32> to vector<1x128xf32>
    %137 = arith.subf %131, %136 : vector<1x128xf32>
    %138 = arith.mulf %137, %137 : vector<1x128xf32>
    %cst_79 = arith.constant dense<0.000000e+00> : vector<1xf32>
    %139 = vector.multi_reduction <add>, %138, %cst_79 [1] : vector<1x128xf32> to vector<1xf32>
    %140 = vector.shape_cast %139 : vector<1xf32> to vector<1x1xf32>
    %cst_80 = arith.constant 1.280000e+02 : f32
    %141 = vector.broadcast %cst_80 : f32 to vector<1x1xf32>
    %142 = arith.divf %140, %141 : vector<1x1xf32>
    %143 = vector.broadcast %135 : vector<1x1xf32> to vector<1x128xf32>
    %144 = arith.subf %131, %143 : vector<1x128xf32>
    %cst_81 = arith.constant 9.99999974E-6 : f32
    %145 = vector.broadcast %cst_81 : f32 to vector<1x1xf32>
    %146 = arith.addf %142, %145 : vector<1x1xf32>
    %147 = math.rsqrt %146 : vector<1x1xf32>
    %148 = vector.broadcast %147 : vector<1x1xf32> to vector<1x128xf32>
    %149 = arith.mulf %144, %148 : vector<1x128xf32>
    %c0_82 = arith.constant 0 : index
    %c0_83 = arith.constant 0 : index
    %150 = vector.load %arg23[%c0_82, %c0_83] : memref<1x128xf32, #tpu.memory_space<vmem>>, vector<1x128xf32>
    %151 = arith.mulf %149, %150 : vector<1x128xf32>
    %c0_84 = arith.constant 0 : index
    %c0_85 = arith.constant 0 : index
    %152 = vector.load %arg24[%c0_84, %c0_85] : memref<1x128xf32, #tpu.memory_space<vmem>>, vector<1x128xf32>
    %153 = arith.addf %151, %152 : vector<1x128xf32>
    %154 = arith.truncf %153 : vector<1x128xf32> to vector<1x128xbf16>
    %c0_86 = arith.constant 0 : index
    %c0_87 = arith.constant 0 : index
    %155 = vector.load %arg25[%c0_86, %c0_87] : memref<128x64xbf16, #tpu.memory_space<vmem>>, vector<128x64xbf16>
    %cst_88 = arith.constant dense<0.000000e+00> : vector<1x64xf32>
    %156 = tpu.matmul %154, %155, %cst_88 {dimension_numbers = #tpu.dot_dimension_numbers<[1], [0], [0], [1], [0, 0, 1, 1], [], []>} : vector<1x128xbf16>, vector<128x64xbf16>, vector<1x64xf32> -> vector<1x64xf32>
    %c0_89 = arith.constant 0 : index
    %c0_90 = arith.constant 0 : index
    %157 = vector.load %arg26[%c0_89, %c0_90] : memref<1x64xf32, #tpu.memory_space<vmem>>, vector<1x64xf32>
    %158 = arith.addf %156, %157 : vector<1x64xf32>
    %cst_91 = arith.constant 0.000000e+00 : f32
    %159 = vector.broadcast %cst_91 : f32 to vector<1x64xf32>
    %160 = arith.maximumf %158, %159 : vector<1x64xf32>
    %161 = arith.truncf %160 : vector<1x64xf32> to vector<1x64xbf16>
    %c0_92 = arith.constant 0 : index
    %c0_93 = arith.constant 0 : index
    %162 = vector.load %arg27[%c0_92, %c0_93] : memref<64x32xbf16, #tpu.memory_space<vmem>>, vector<64x32xbf16>
    %cst_94 = arith.constant dense<0.000000e+00> : vector<1x32xf32>
    %163 = tpu.matmul %161, %162, %cst_94 {dimension_numbers = #tpu.dot_dimension_numbers<[1], [0], [0], [1], [0, 0, 1, 1], [], []>} : vector<1x64xbf16>, vector<64x32xbf16>, vector<1x32xf32> -> vector<1x32xf32>
    %c0_95 = arith.constant 0 : index
    %c0_96 = arith.constant 0 : index
    %164 = vector.load %arg28[%c0_95, %c0_96] : memref<1x32xf32, #tpu.memory_space<vmem>>, vector<1x32xf32>
    %165 = arith.addf %163, %164 : vector<1x32xf32>
    %cst_97 = arith.constant 0.000000e+00 : f32
    %166 = vector.broadcast %cst_97 : f32 to vector<1x32xf32>
    %167 = arith.maximumf %165, %166 : vector<1x32xf32>
    %168 = arith.truncf %167 : vector<1x32xf32> to vector<1x32xbf16>
    %c0_98 = arith.constant 0 : index
    %c0_99 = arith.constant 0 : index
    %169 = vector.load %arg29[%c0_98, %c0_99] : memref<32x20xbf16, #tpu.memory_space<vmem>>, vector<32x20xbf16>
    %cst_100 = arith.constant dense<0.000000e+00> : vector<1x20xf32>
    %170 = tpu.matmul %168, %169, %cst_100 {dimension_numbers = #tpu.dot_dimension_numbers<[1], [0], [0], [1], [0, 0, 1, 1], [], []>} : vector<1x32xbf16>, vector<32x20xbf16>, vector<1x20xf32> -> vector<1x20xf32>
    %c0_101 = arith.constant 0 : index
    %c0_102 = arith.constant 0 : index
    %171 = vector.load %arg30[%c0_101, %c0_102] : memref<1x20xf32, #tpu.memory_space<vmem>>, vector<1x20xf32>
    %172 = arith.addf %170, %171 : vector<1x20xf32>
    %173 = vector.shape_cast %172 : vector<1x20xf32> to vector<1x1x20xf32>
    %c0_103 = arith.constant 0 : index
    %c0_104 = arith.constant 0 : index
    %c0_105 = arith.constant 0 : index
    %174 = vector.load %arg31[%c0_103, %c0_104, %c0_105] : memref<1x1x20xf32, #tpu.memory_space<vmem>>, vector<1x1x20xf32>
    tpu.vector_store %arg31[%c0_103, %c0_104, %c0_105], %173 {strides = array<i32>} : memref<1x1x20xf32, #tpu.memory_space<vmem>>, vector<1x1x20xf32>,
    return
  }
  func.func @transform_0(%arg0: i32) -> (i32, i32, i32) {
    %c0_i32 = arith.constant 0 : i32
    %c0_i32_0 = arith.constant 0 : i32
    %c0_i32_1 = arith.constant 0 : i32
    return %arg0, %c0_i32, %c0_i32_0 : i32, i32, i32
  }
  func.func @transform_1(%arg0: i32) -> (i32, i32, i32, i32) {
    %c0_i32 = arith.constant 0 : i32
    %c0_i32_0 = arith.constant 0 : i32
    %c0_i32_1 = arith.constant 0 : i32
    %c0_i32_2 = arith.constant 0 : i32
    return %arg0, %c0_i32, %c0_i32_0, %c0_i32_1 : i32, i32, i32, i32
  }
  func.func @transform_2(%arg0: i32) -> (i32, i32, i32) {
    %c0_i32 = arith.constant 0 : i32
    %c0_i32_0 = arith.constant 0 : i32
    %c0_i32_1 = arith.constant 0 : i32
    return %arg0, %c0_i32, %c0_i32_0 : i32, i32, i32
  }
  func.func @transform_3(%arg0: i32) -> (i32, i32, i32) {
    %c0_i32 = arith.constant 0 : i32
    %c0_i32_0 = arith.constant 0 : i32
    %c0_i32_1 = arith.constant 0 : i32
    return %arg0, %c0_i32, %c0_i32_0 : i32, i32, i32
  }
  func.func @transform_4(%arg0: i32) -> (i32, i32) {
    %c0_i32 = arith.constant 0 : i32
    %c0_i32_0 = arith.constant 0 : i32
    %c0_i32_1 = arith.constant 0 : i32
    return %c0_i32, %c0_i32_0 : i32, i32
  }
  func.func @transform_5(%arg0: i32) -> (i32, i32) {
    %c0_i32 = arith.constant 0 : i32
    %c0_i32_0 = arith.constant 0 : i32
    %c0_i32_1 = arith.constant 0 : i32
    return %c0_i32, %c0_i32_0 : i32, i32
  }
  func.func @transform_6(%arg0: i32) -> (i32, i32) {
    %c0_i32 = arith.constant 0 : i32
    %c0_i32_0 = arith.constant 0 : i32
    %c0_i32_1 = arith.constant 0 : i32
    return %c0_i32, %c0_i32_0 : i32, i32
  }
  func.func @transform_7(%arg0: i32) -> (i32, i32) {
    %c0_i32 = arith.constant 0 : i32
    %c0_i32_0 = arith.constant 0 : i32
    %c0_i32_1 = arith.constant 0 : i32
    return %c0_i32, %c0_i32_0 : i32, i32
  }
  func.func @transform_8(%arg0: i32) -> (i32, i32) {
    %c0_i32 = arith.constant 0 : i32
    %c0_i32_0 = arith.constant 0 : i32
    %c0_i32_1 = arith.constant 0 : i32
    return %c0_i32, %c0_i32_0 : i32, i32
  }
  func.func @transform_9(%arg0: i32) -> (i32, i32) {
    %c0_i32 = arith.constant 0 : i32
    %c0_i32_0 = arith.constant 0 : i32
    %c0_i32_1 = arith.constant 0 : i32
    return %c0_i32, %c0_i32_0 : i32, i32
  }
  func.func @transform_10(%arg0: i32) -> (i32, i32) {
    %c0_i32 = arith.constant 0 : i32
    %c0_i32_0 = arith.constant 0 : i32
    %c0_i32_1 = arith.constant 0 : i32
    return %c0_i32, %c0_i32_0 : i32, i32
  }
  func.func @transform_11(%arg0: i32) -> (i32, i32) {
    %c0_i32 = arith.constant 0 : i32
    %c0_i32_0 = arith.constant 0 : i32
    %c0_i32_1 = arith.constant 0 : i32
    return %c0_i32, %c0_i32_0 : i32, i32
  }
  func.func @transform_12(%arg0: i32) -> (i32, i32) {
    %c0_i32 = arith.constant 0 : i32
    %c0_i32_0 = arith.constant 0 : i32
    %c0_i32_1 = arith.constant 0 : i32
    return %c0_i32, %c0_i32_0 : i32, i32
  }
  func.func @transform_13(%arg0: i32) -> (i32, i32) {
    %c0_i32 = arith.constant 0 : i32
    %c0_i32_0 = arith.constant 0 : i32
    %c0_i32_1 = arith.constant 0 : i32
    return %c0_i32, %c0_i32_0 : i32, i32
  }
  func.func @transform_14(%arg0: i32) -> (i32, i32) {
    %c0_i32 = arith.constant 0 : i32
    %c0_i32_0 = arith.constant 0 : i32
    %c0_i32_1 = arith.constant 0 : i32
    return %c0_i32, %c0_i32_0 : i32, i32
  }
  func.func @transform_15(%arg0: i32) -> (i32, i32) {
    %c0_i32 = arith.constant 0 : i32
    %c0_i32_0 = arith.constant 0 : i32
    %c0_i32_1 = arith.constant 0 : i32
    return %c0_i32, %c0_i32_0 : i32, i32
  }
  func.func @transform_16(%arg0: i32) -> (i32, i32) {
    %c0_i32 = arith.constant 0 : i32
    %c0_i32_0 = arith.constant 0 : i32
    %c0_i32_1 = arith.constant 0 : i32
    return %c0_i32, %c0_i32_0 : i32, i32
  }
  func.func @transform_17(%arg0: i32) -> (i32, i32) {
    %c0_i32 = arith.constant 0 : i32
    %c0_i32_0 = arith.constant 0 : i32
    %c0_i32_1 = arith.constant 0 : i32
    return %c0_i32, %c0_i32_0 : i32, i32
  }
  func.func @transform_18(%arg0: i32) -> (i32, i32) {
    %c0_i32 = arith.constant 0 : i32
    %c0_i32_0 = arith.constant 0 : i32
    %c0_i32_1 = arith.constant 0 : i32
    return %c0_i32, %c0_i32_0 : i32, i32
  }
  func.func @transform_19(%arg0: i32) -> (i32, i32) {
    %c0_i32 = arith.constant 0 : i32
    %c0_i32_0 = arith.constant 0 : i32
    %c0_i32_1 = arith.constant 0 : i32
    return %c0_i32, %c0_i32_0 : i32, i32
  }
  func.func @transform_20(%arg0: i32) -> (i32, i32) {
    %c0_i32 = arith.constant 0 : i32
    %c0_i32_0 = arith.constant 0 : i32
    %c0_i32_1 = arith.constant 0 : i32
    return %c0_i32, %c0_i32_0 : i32, i32
  }
  func.func @transform_21(%arg0: i32) -> (i32, i32) {
    %c0_i32 = arith.constant 0 : i32
    %c0_i32_0 = arith.constant 0 : i32
    %c0_i32_1 = arith.constant 0 : i32
    return %c0_i32, %c0_i32_0 : i32, i32
  }
  func.func @transform_22(%arg0: i32) -> (i32, i32) {
    %c0_i32 = arith.constant 0 : i32
    %c0_i32_0 = arith.constant 0 : i32
    %c0_i32_1 = arith.constant 0 : i32
    return %c0_i32, %c0_i32_0 : i32, i32
  }
  func.func @transform_23(%arg0: i32) -> (i32, i32) {
    %c0_i32 = arith.constant 0 : i32
    %c0_i32_0 = arith.constant 0 : i32
    %c0_i32_1 = arith.constant 0 : i32
    return %c0_i32, %c0_i32_0 : i32, i32
  }
  func.func @transform_24(%arg0: i32) -> (i32, i32) {
    %c0_i32 = arith.constant 0 : i32
    %c0_i32_0 = arith.constant 0 : i32
    %c0_i32_1 = arith.constant 0 : i32
    return %c0_i32, %c0_i32_0 : i32, i32
  }
  func.func @transform_25(%arg0: i32) -> (i32, i32) {
    %c0_i32 = arith.constant 0 : i32
    %c0_i32_0 = arith.constant 0 : i32
    %c0_i32_1 = arith.constant 0 : i32
    return %c0_i32, %c0_i32_0 : i32, i32
  }
  func.func @transform_26(%arg0: i32) -> (i32, i32) {
    %c0_i32 = arith.constant 0 : i32
    %c0_i32_0 = arith.constant 0 : i32
    %c0_i32_1 = arith.constant 0 : i32
    return %c0_i32, %c0_i32_0 : i32, i32
  }
  func.func @transform_27(%arg0: i32) -> (i32, i32) {
    %c0_i32 = arith.constant 0 : i32
    %c0_i32_0 = arith.constant 0 : i32
    %c0_i32_1 = arith.constant 0 : i32
    return %c0_i32, %c0_i32_0 : i32, i32
  }
  func.func @transform_28(%arg0: i32) -> (i32, i32) {
    %c0_i32 = arith.constant 0 : i32
    %c0_i32_0 = arith.constant 0 : i32
    %c0_i32_1 = arith.constant 0 : i32
    return %c0_i32, %c0_i32_0 : i32, i32
  }
  func.func @transform_29(%arg0: i32) -> (i32, i32) {
    %c0_i32 = arith.constant 0 : i32
    %c0_i32_0 = arith.constant 0 : i32
    %c0_i32_1 = arith.constant 0 : i32
    return %c0_i32, %c0_i32_0 : i32, i32
  }
  func.func @transform_30(%arg0: i32) -> (i32, i32, i32) {
    %c0_i32 = arith.constant 0 : i32
    %c0_i32_0 = arith.constant 0 : i32
    %c0_i32_1 = arith.constant 0 : i32
    return %arg0, %c0_i32, %c0_i32_0 : i32, i32, i32
  }
}

</mosaic_0001>

<llo_original>
// kernel: tpu_custom_call.1
$region0: #{tpu_custom_call.1}
  #allocation0 [shape = 'u32[]', space=smem, size = 0x4, offset = 0x4, fixed_abs, tag = 'smem constant byte address 0x4 - core index']
  #allocation1 [shape = 'u32[144,128]{1,0:T(1,128)}', space=vmem, size = 0x12000, scoped, tag = 'internal scratch']
  %s0 = inlined_call_operand.smem [shape: u32[31], index: -1, kind: input, shape index: {}]
  %s1 = sld [smem:[%s0]]
  %s2 = scalar_lea.smem %s0, 1
  %s3 = sld [smem:[%s2]]
  %s4 = scalar_lea.smem %s0, 2
  %s5 = sld [smem:[%s4]]
  %s6 = scalar_lea.smem %s0, 3
  %s7 = sld [smem:[%s6]]
  %s8 = scalar_lea.smem %s0, 4
  %s9 = sld [smem:[%s8]]
  %s10 = scalar_lea.smem %s0, 5
  %s11 = sld [smem:[%s10]]
  %s12 = scalar_lea.smem %s0, 6
  %s13 = sld [smem:[%s12]]
  %s14 = scalar_lea.smem %s0, 7
  %s15 = sld [smem:[%s14]]
  %s16 = scalar_lea.smem %s0, 8
  %s17 = sld [smem:[%s16]]
  %s18 = scalar_lea.smem %s0, 9
  %s19 = sld [smem:[%s18]]
  %s20 = scalar_lea.smem %s0, 10
  %s21 = sld [smem:[%s20]]
  %s22 = scalar_lea.smem %s0, 11
  %s23 = sld [smem:[%s22]]
  %s24 = scalar_lea.smem %s0, 12
  %s25 = sld [smem:[%s24]]
  %s26 = scalar_lea.smem %s0, 13
  %s27 = sld [smem:[%s26]]
  %s28 = scalar_lea.smem %s0, 14
  %s29 = sld [smem:[%s28]]
  %s30 = scalar_lea.smem %s0, 15
  %s31 = sld [smem:[%s30]]
  %s32 = scalar_lea.smem %s0, 16
  %s33 = sld [smem:[%s32]]
  %s34 = scalar_lea.smem %s0, 17
  %s35 = sld [smem:[%s34]]
  %s36 = scalar_lea.smem %s0, 18
  %s37 = sld [smem:[%s36]]
  %s38 = scalar_lea.smem %s0, 19
  %s39 = sld [smem:[%s38]]
  %s40 = scalar_lea.smem %s0, 20
  %s41 = sld [smem:[%s40]]
  %s42 = scalar_lea.smem %s0, 21
  %s43 = sld [smem:[%s42]]
  %s44 = scalar_lea.smem %s0, 22
  %s45 = sld [smem:[%s44]]
  %s46 = scalar_lea.smem %s0, 23
  %s47 = sld [smem:[%s46]]
  %s48 = scalar_lea.smem %s0, 24
  %s49 = sld [smem:[%s48]]
  %s50 = scalar_lea.smem %s0, 25
  %s51 = sld [smem:[%s50]]
  %s52 = scalar_lea.smem %s0, 26
  %s53 = sld [smem:[%s52]]
  %s54 = scalar_lea.smem %s0, 27
  %s55 = sld [smem:[%s54]]
  %s56 = scalar_lea.smem %s0, 28
  %s57 = sld [smem:[%s56]]
  %s58 = scalar_lea.smem %s0, 29
  %s59 = sld [smem:[%s58]]
  %s60 = scalar_lea.smem %s0, 30
  %s61 = sld [smem:[%s60]]
  %s62 = sld [smem:[#allocation0]]
  $region153: #{tpu_custom_call.1} parent=0
    _
  %s64 = ssub.s32 1, %s62
  %s65 = scalar_select 0, %s64, %s62
  $region1: #{tpu_custom_call.1} parent=0
    #allocation2 [shape = 'u8[1024]{0}', space=vmem, size = 0x400, scoped, tag = 'output window, operand 0']
    #allocation3 [shape = 's32[2]{0}', space=sflag, size = 0x8, scoped, tag = 'scoped memory for tpu_custom_call.1']
    %66 = vsyncpa [#allocation3], 0
    %s67 = scalar_lea.sflag [#allocation3], 1
    %68 = vsyncpa %s67, 0
    loop: start=0, step=1, limit=4
    $region2: #{tpu_custom_call.1} parent=1 // loop_pre_header
      _
    $region3: #{tpu_custom_call.1} parent=1 // loop_header
      %s70 = sphi 0, %s74
      %p71 = scmp.ge.s32.totalorder %s70, 4
      %s80 = sphi 0, %s82
      %s83 = sphi 0, %s80
      %s84 = sphi 0, %s83
      %s100 = sphi 0, %s84
      %s106 = sphi 0, %s108
      %s109 = sphi 0, %s106
      %s110 = sphi 0, %s109
      %s126 = sphi 0, %s110
      %s132 = sphi 0, %s134
      %s135 = sphi 0, %s132
      %s136 = sphi 0, %s135
      %s152 = sphi 0, %s136
      %s158 = sphi 0, %s160
      %s161 = sphi 0, %s158
      %s162 = sphi 0, %s161
      %s178 = sphi 0, %s162
      %s182 = sphi 0, %s182
      %s184 = sphi 0, %s182
      %s185 = sphi 0, %s184
      %s199 = sphi 0, %s185
      %s203 = sphi 0, %s203
      %s205 = sphi 0, %s203
      %s206 = sphi 0, %s205
      %s220 = sphi 0, %s206
      %s224 = sphi 0, %s224
      %s226 = sphi 0, %s224
      %s227 = sphi 0, %s226
      %s241 = sphi 0, %s227
      %s245 = sphi 0, %s245
      %s247 = sphi 0, %s245
      %s248 = sphi 0, %s247
      %s262 = sphi 0, %s248
      %s266 = sphi 0, %s266
      %s268 = sphi 0, %s266
      %s269 = sphi 0, %s268
      %s283 = sphi 0, %s269
      %s287 = sphi 0, %s287
      %s289 = sphi 0, %s287
      %s290 = sphi 0, %s289
      %s304 = sphi 0, %s290
      %s308 = sphi 0, %s308
      %s310 = sphi 0, %s308
      %s311 = sphi 0, %s310
      %s325 = sphi 0, %s311
      %s329 = sphi 0, %s329
      %s331 = sphi 0, %s329
      %s332 = sphi 0, %s331
      %s346 = sphi 0, %s332
      %s350 = sphi 0, %s350
      %s352 = sphi 0, %s350
      %s353 = sphi 0, %s352
      %s367 = sphi 0, %s353
      %s371 = sphi 0, %s371
      %s373 = sphi 0, %s371
      %s374 = sphi 0, %s373
      %s388 = sphi 0, %s374
      %s392 = sphi 0, %s392
      %s394 = sphi 0, %s392
      %s395 = sphi 0, %s394
      %s409 = sphi 0, %s395
      %s413 = sphi 0, %s413
      %s415 = sphi 0, %s413
      %s416 = sphi 0, %s415
      %s430 = sphi 0, %s416
      %s434 = sphi 0, %s434
      %s436 = sphi 0, %s434
      %s437 = sphi 0, %s436
      %s451 = sphi 0, %s437
      %s455 = sphi 0, %s455
      %s457 = sphi 0, %s455
      %s458 = sphi 0, %s457
      %s472 = sphi 0, %s458
      %s476 = sphi 0, %s476
      %s478 = sphi 0, %s476
      %s479 = sphi 0, %s478
      %s493 = sphi 0, %s479
      %s497 = sphi 0, %s497
      %s499 = sphi 0, %s497
      %s500 = sphi 0, %s499
      %s514 = sphi 0, %s500
      %s518 = sphi 0, %s518
      %s520 = sphi 0, %s518
      %s521 = sphi 0, %s520
      %s535 = sphi 0, %s521
      %s539 = sphi 0, %s539
      %s541 = sphi 0, %s539
      %s542 = sphi 0, %s541
      %s556 = sphi 0, %s542
      %s560 = sphi 0, %s560
      %s562 = sphi 0, %s560
      %s563 = sphi 0, %s562
      %s577 = sphi 0, %s563
      %s581 = sphi 0, %s581
      %s583 = sphi 0, %s581
      %s584 = sphi 0, %s583
      %s598 = sphi 0, %s584
      %s602 = sphi 0, %s602
      %s604 = sphi 0, %s602
      %s605 = sphi 0, %s604
      %s619 = sphi 0, %s605
      %s623 = sphi 0, %s623
      %s625 = sphi 0, %s623
      %s626 = sphi 0, %s625
      %s640 = sphi 0, %s626
      %s644 = sphi 0, %s644
      %s646 = sphi 0, %s644
      %s647 = sphi 0, %s646
      %s661 = sphi 0, %s647
      %s665 = sphi 0, %s665
      %s667 = sphi 0, %s665
      %s668 = sphi 0, %s667
      %s682 = sphi 0, %s668
      %s686 = sphi 0, %s686
      %s688 = sphi 0, %s686
      %s689 = sphi 0, %s688
      %s703 = sphi 0, %s689
      %s707 = sphi 0, %s707
      %s709 = sphi 0, %s707
      %s710 = sphi 0, %s709
      %s724 = sphi 0, %s710
      %s730 = sphi 0, %s732
      %s733 = sphi 0, %s730
      %s734 = sphi 0, %s733
      %s750 = sphi 0, %s734
    $region4: #{tpu_custom_call.1} parent=1 // loop_header_branch
      %73 = sbr.rel (%p71) target = $region8
    $region5: #{tpu_custom_call.1} parent=1 // loop_body
      %s75 = ssub.s32 %s70, 1
      %s76 = ssub.s32 %s70, 2
      %s77 = sadd.s32 %s70, 1
      %s78 = ssub.s32 %s70, %s77
      %p79 = scmp.eq.s32.totalorder %s78, 0
      %s81 = sadd.s32 %s80, 1
      %s82 = scalar_select %p79, %s80, %s81
      %p85 = pneg %p79
      %p86 = scmp.eq.s32.totalorder %s70, 1
      %p87 = por %p85, %p86
      %p88 = scmp.ne.s32.totalorder %s80, %s83
      %p89 = scmp.eq.s32.totalorder %s70, 0
      %p90 = por %p88, %p89
      %p91 = scmp.ne.s32.totalorder %s80, %s83
      %p92 = scmp.eq.s32.totalorder %s75, 1
      %p93 = por %p91, %p92
      %p94 = scmp.ne.s32.totalorder %s83, %s84
      %p95 = scmp.eq.s32.totalorder %s75, 0
      %p96 = por %p94, %p95
      %p97 = scmp.ne.s32.totalorder %s83, %s84
      %p98 = scmp.eq.s32.totalorder %s76, 1
      %p99 = por %p97, %p98
      %p101 = scmp.ne.s32.totalorder %s84, %s100
      %p102 = scmp.eq.s32.totalorder %s76, 0
      %p103 = por %p101, %p102
      %s104 = ssub.s32 %s70, %s77
      %p105 = scmp.eq.s32.totalorder %s104, 0
      %s107 = sadd.s32 %s106, 1
      %s108 = scalar_select %p105, %s106, %s107
      %p111 = pneg %p105
      %p112 = scmp.eq.s32.totalorder %s70, 1
      %p113 = por %p111, %p112
      %p114 = scmp.ne.s32.totalorder %s106, %s109
      %p115 = scmp.eq.s32.totalorder %s70, 0
      %p116 = por %p114, %p115
      %p117 = scmp.ne.s32.totalorder %s106, %s109
      %p118 = scmp.eq.s32.totalorder %s75, 1
      %p119 = por %p117, %p118
      %p120 = scmp.ne.s32.totalorder %s109, %s110
      %p121 = scmp.eq.s32.totalorder %s75, 0
      %p122 = por %p120, %p121
      %p123 = scmp.ne.s32.totalorder %s109, %s110
      %p124 = scmp.eq.s32.totalorder %s76, 1
      %p125 = por %p123, %p124
      %p127 = scmp.ne.s32.totalorder %s110, %s126
      %p128 = scmp.eq.s32.totalorder %s76, 0
      %p129 = por %p127, %p128
      %s130 = ssub.s32 %s70, %s77
      %p131 = scmp.eq.s32.totalorder %s130, 0
      %s133 = sadd.s32 %s132, 1
      %s134 = scalar_select %p131, %s132, %s133
      %p137 = pneg %p131
      %p138 = scmp.eq.s32.totalorder %s70, 1
      %p139 = por %p137, %p138
      %p140 = scmp.ne.s32.totalorder %s132, %s135
      %p141 = scmp.eq.s32.totalorder %s70, 0
      %p142 = por %p140, %p141
      %p143 = scmp.ne.s32.totalorder %s132, %s135
      %p144 = scmp.eq.s32.totalorder %s75, 1
      %p145 = por %p143, %p144
      %p146 = scmp.ne.s32.totalorder %s135, %s136
      %p147 = scmp.eq.s32.totalorder %s75, 0
      %p148 = por %p146, %p147
      %p149 = scmp.ne.s32.totalorder %s135, %s136
      %p150 = scmp.eq.s32.totalorder %s76, 1
      %p151 = por %p149, %p150
      %p153 = scmp.ne.s32.totalorder %s136, %s152
      %p154 = scmp.eq.s32.totalorder %s76, 0
      %p155 = por %p153, %p154
      %s156 = ssub.s32 %s70, %s77
      %p157 = scmp.eq.s32.totalorder %s156, 0
      %s159 = sadd.s32 %s158, 1
      %s160 = scalar_select %p157, %s158, %s159
      %p163 = pneg %p157
      %p164 = scmp.eq.s32.totalorder %s70, 1
      %p165 = por %p163, %p164
      %p166 = scmp.ne.s32.totalorder %s158, %s161
      %p167 = scmp.eq.s32.totalorder %s70, 0
      %p168 = por %p166, %p167
      %p169 = scmp.ne.s32.totalorder %s158, %s161
      %p170 = scmp.eq.s32.totalorder %s75, 1
      %p171 = por %p169, %p170
      %p172 = scmp.ne.s32.totalorder %s161, %s162
      %p173 = scmp.eq.s32.totalorder %s75, 0
      %p174 = por %p172, %p173
      %p175 = scmp.ne.s32.totalorder %s161, %s162
      %p176 = scmp.eq.s32.totalorder %s76, 1
      %p177 = por %p175, %p176
      %p179 = scmp.ne.s32.totalorder %s162, %s178
      %p180 = scmp.eq.s32.totalorder %s76, 0
      %p181 = por %p179, %p180
      %s183 = sadd.s32 %s182, 1
      %p186 = scmp.eq.s32.totalorder %s70, 1
      %p187 = scmp.ne.s32.totalorder %s182, %s184
      %p188 = scmp.eq.s32.totalorder %s70, 0
      %p189 = por %p187, %p188
      %p190 = scmp.ne.s32.totalorder %s182, %s184
      %p191 = scmp.eq.s32.totalorder %s75, 1
      %p192 = por %p190, %p191
      %p193 = scmp.ne.s32.totalorder %s184, %s185
      %p194 = scmp.eq.s32.totalorder %s75, 0
      %p195 = por %p193, %p194
      %p196 = scmp.ne.s32.totalorder %s184, %s185
      %p197 = scmp.eq.s32.totalorder %s76, 1
      %p198 = por %p196, %p197
      %p200 = scmp.ne.s32.totalorder %s185, %s199
      %p201 = scmp.eq.s32.totalorder %s76, 0
      %p202 = por %p200, %p201
      %s204 = sadd.s32 %s203, 1
      %p207 = scmp.eq.s32.totalorder %s70, 1
      %p208 = scmp.ne.s32.totalorder %s203, %s205
      %p209 = scmp.eq.s32.totalorder %s70, 0
      %p210 = por %p208, %p209
      %p211 = scmp.ne.s32.totalorder %s203, %s205
      %p212 = scmp.eq.s32.totalorder %s75, 1
      %p213 = por %p211, %p212
      %p214 = scmp.ne.s32.totalorder %s205, %s206
      %p215 = scmp.eq.s32.totalorder %s75, 0
      %p216 = por %p214, %p215
      %p217 = scmp.ne.s32.totalorder %s205, %s206
      %p218 = scmp.eq.s32.totalorder %s76, 1
      %p219 = por %p217, %p218
      %p221 = scmp.ne.s32.totalorder %s206, %s220
      %p222 = scmp.eq.s32.totalorder %s76, 0
      %p223 = por %p221, %p222
      %s225 = sadd.s32 %s224, 1
      %p228 = scmp.eq.s32.totalorder %s70, 1
      %p229 = scmp.ne.s32.totalorder %s224, %s226
      %p230 = scmp.eq.s32.totalorder %s70, 0
      %p231 = por %p229, %p230
      %p232 = scmp.ne.s32.totalorder %s224, %s226
      %p233 = scmp.eq.s32.totalorder %s75, 1
      %p234 = por %p232, %p233
      %p235 = scmp.ne.s32.totalorder %s226, %s227
      %p236 = scmp.eq.s32.totalorder %s75, 0
      %p237 = por %p235, %p236
      %p238 = scmp.ne.s32.totalorder %s226, %s227
      %p239 = scmp.eq.s32.totalorder %s76, 1
      %p240 = por %p238, %p239
      %p242 = scmp.ne.s32.totalorder %s227, %s241
      %p243 = scmp.eq.s32.totalorder %s76, 0
      %p244 = por %p242, %p243
      %s246 = sadd.s32 %s245, 1
      %p249 = scmp.eq.s32.totalorder %s70, 1
      %p250 = scmp.ne.s32.totalorder %s245, %s247
      %p251 = scmp.eq.s32.totalorder %s70, 0
      %p252 = por %p250, %p251
      %p253 = scmp.ne.s32.totalorder %s245, %s247
      %p254 = scmp.eq.s32.totalorder %s75, 1
      %p255 = por %p253, %p254
      %p256 = scmp.ne.s32.totalorder %s247, %s248
      %p257 = scmp.eq.s32.totalorder %s75, 0
      %p258 = por %p256, %p257
      %p259 = scmp.ne.s32.totalorder %s247, %s248
      %p260 = scmp.eq.s32.totalorder %s76, 1
      %p261 = por %p259, %p260
      %p263 = scmp.ne.s32.totalorder %s248, %s262
      %p264 = scmp.eq.s32.totalorder %s76, 0
      %p265 = por %p263, %p264
      %s267 = sadd.s32 %s266, 1
      %p270 = scmp.eq.s32.totalorder %s70, 1
      %p271 = scmp.ne.s32.totalorder %s266, %s268
      %p272 = scmp.eq.s32.totalorder %s70, 0
      %p273 = por %p271, %p272
      %p274 = scmp.ne.s32.totalorder %s266, %s268
      %p275 = scmp.eq.s32.totalorder %s75, 1
      %p276 = por %p274, %p275
      %p277 = scmp.ne.s32.totalorder %s268, %s269
      %p278 = scmp.eq.s32.totalorder %s75, 0
      %p279 = por %p277, %p278
      %p280 = scmp.ne.s32.totalorder %s268, %s269
      %p281 = scmp.eq.s32.totalorder %s76, 1
      %p282 = por %p280, %p281
      %p284 = scmp.ne.s32.totalorder %s269, %s283
      %p285 = scmp.eq.s32.totalorder %s76, 0
      %p286 = por %p284, %p285
      %s288 = sadd.s32 %s287, 1
      %p291 = scmp.eq.s32.totalorder %s70, 1
      %p292 = scmp.ne.s32.totalorder %s287, %s289
      %p293 = scmp.eq.s32.totalorder %s70, 0
      %p294 = por %p292, %p293
      %p295 = scmp.ne.s32.totalorder %s287, %s289
      %p296 = scmp.eq.s32.totalorder %s75, 1
      %p297 = por %p295, %p296
      %p298 = scmp.ne.s32.totalorder %s289, %s290
      %p299 = scmp.eq.s32.totalorder %s75, 0
      %p300 = por %p298, %p299
      %p301 = scmp.ne.s32.totalorder %s289, %s290
      %p302 = scmp.eq.s32.totalorder %s76, 1
      %p303 = por %p301, %p302
      %p305 = scmp.ne.s32.totalorder %s290, %s304
      %p306 = scmp.eq.s32.totalorder %s76, 0
      %p307 = por %p305, %p306
      %s309 = sadd.s32 %s308, 1
      %p312 = scmp.eq.s32.totalorder %s70, 1
      %p313 = scmp.ne.s32.totalorder %s308, %s310
      %p314 = scmp.eq.s32.totalorder %s70, 0
      %p315 = por %p313, %p314
      %p316 = scmp.ne.s32.totalorder %s308, %s310
      %p317 = scmp.eq.s32.totalorder %s75, 1
      %p318 = por %p316, %p317
      %p319 = scmp.ne.s32.totalorder %s310, %s311
      %p320 = scmp.eq.s32.totalorder %s75, 0
      %p321 = por %p319, %p320
      %p322 = scmp.ne.s32.totalorder %s310, %s311
      %p323 = scmp.eq.s32.totalorder %s76, 1
      %p324 = por %p322, %p323
      %p326 = scmp.ne.s32.totalorder %s311, %s325
      %p327 = scmp.eq.s32.totalorder %s76, 0
      %p328 = por %p326, %p327
      %s330 = sadd.s32 %s329, 1
      %p333 = scmp.eq.s32.totalorder %s70, 1
      %p334 = scmp.ne.s32.totalorder %s329, %s331
      %p335 = scmp.eq.s32.totalorder %s70, 0
      %p336 = por %p334, %p335
      %p337 = scmp.ne.s32.totalorder %s329, %s331
      %p338 = scmp.eq.s32.totalorder %s75, 1
      %p339 = por %p337, %p338
      %p340 = scmp.ne.s32.totalorder %s331, %s332
      %p341 = scmp.eq.s32.totalorder %s75, 0
      %p342 = por %p340, %p341
      %p343 = scmp.ne.s32.totalorder %s331, %s332
      %p344 = scmp.eq.s32.totalorder %s76, 1
      %p345 = por %p343, %p344
      %p347 = scmp.ne.s32.totalorder %s332, %s346
      %p348 = scmp.eq.s32.totalorder %s76, 0
      %p349 = por %p347, %p348
      %s351 = sadd.s32 %s350, 1
      %p354 = scmp.eq.s32.totalorder %s70, 1
      %p355 = scmp.ne.s32.totalorder %s350, %s352
      %p356 = scmp.eq.s32.totalorder %s70, 0
      %p357 = por %p355, %p356
      %p358 = scmp.ne.s32.totalorder %s350, %s352
      %p359 = scmp.eq.s32.totalorder %s75, 1
      %p360 = por %p358, %p359
      %p361 = scmp.ne.s32.totalorder %s352, %s353
      %p362 = scmp.eq.s32.totalorder %s75, 0
      %p363 = por %p361, %p362
      %p364 = scmp.ne.s32.totalorder %s352, %s353
      %p365 = scmp.eq.s32.totalorder %s76, 1
      %p366 = por %p364, %p365
      %p368 = scmp.ne.s32.totalorder %s353, %s367
      %p369 = scmp.eq.s32.totalorder %s76, 0
      %p370 = por %p368, %p369
      %s372 = sadd.s32 %s371, 1
      %p375 = scmp.eq.s32.totalorder %s70, 1
      %p376 = scmp.ne.s32.totalorder %s371, %s373
      %p377 = scmp.eq.s32.totalorder %s70, 0
      %p378 = por %p376, %p377
      %p379 = scmp.ne.s32.totalorder %s371, %s373
      %p380 = scmp.eq.s32.totalorder %s75, 1
      %p381 = por %p379, %p380
      %p382 = scmp.ne.s32.totalorder %s373, %s374
      %p383 = scmp.eq.s32.totalorder %s75, 0
      %p384 = por %p382, %p383
      %p385 = scmp.ne.s32.totalorder %s373, %s374
      %p386 = scmp.eq.s32.totalorder %s76, 1
      %p387 = por %p385, %p386
      %p389 = scmp.ne.s32.totalorder %s374, %s388
      %p390 = scmp.eq.s32.totalorder %s76, 0
      %p391 = por %p389, %p390
      %s393 = sadd.s32 %s392, 1
      %p396 = scmp.eq.s32.totalorder %s70, 1
      %p397 = scmp.ne.s32.totalorder %s392, %s394
      %p398 = scmp.eq.s32.totalorder %s70, 0
      %p399 = por %p397, %p398
      %p400 = scmp.ne.s32.totalorder %s392, %s394
      %p401 = scmp.eq.s32.totalorder %s75, 1
      %p402 = por %p400, %p401
      %p403 = scmp.ne.s32.totalorder %s394, %s395
      %p404 = scmp.eq.s32.totalorder %s75, 0
      %p405 = por %p403, %p404
      %p406 = scmp.ne.s32.totalorder %s394, %s395
      %p407 = scmp.eq.s32.totalorder %s76, 1
      %p408 = por %p406, %p407
      %p410 = scmp.ne.s32.totalorder %s395, %s409
      %p411 = scmp.eq.s32.totalorder %s76, 0
      %p412 = por %p410, %p411
      %s414 = sadd.s32 %s413, 1
      %p417 = scmp.eq.s32.totalorder %s70, 1
      %p418 = scmp.ne.s32.totalorder %s413, %s415
      %p419 = scmp.eq.s32.totalorder %s70, 0
      %p420 = por %p418, %p419
      %p421 = scmp.ne.s32.totalorder %s413, %s415
      %p422 = scmp.eq.s32.totalorder %s75, 1
      %p423 = por %p421, %p422
      %p424 = scmp.ne.s32.totalorder %s415, %s416
      %p425 = scmp.eq.s32.totalorder %s75, 0
      %p426 = por %p424, %p425
      %p427 = scmp.ne.s32.totalorder %s415, %s416
      %p428 = scmp.eq.s32.totalorder %s76, 1
      %p429 = por %p427, %p428
      %p431 = scmp.ne.s32.totalorder %s416, %s430
      %p432 = scmp.eq.s32.totalorder %s76, 0
      %p433 = por %p431, %p432
      %s435 = sadd.s32 %s434, 1
      %p438 = scmp.eq.s32.totalorder %s70, 1
      %p439 = scmp.ne.s32.totalorder %s434, %s436
      %p440 = scmp.eq.s32.totalorder %s70, 0
      %p441 = por %p439, %p440
      %p442 = scmp.ne.s32.totalorder %s434, %s436
      %p443 = scmp.eq.s32.totalorder %s75, 1
      %p444 = por %p442, %p443
      %p445 = scmp.ne.s32.totalorder %s436, %s437
      %p446 = scmp.eq.s32.totalorder %s75, 0
      %p447 = por %p445, %p446
      %p448 = scmp.ne.s32.totalorder %s436, %s437
      %p449 = scmp.eq.s32.totalorder %s76, 1
      %p450 = por %p448, %p449
      %p452 = scmp.ne.s32.totalorder %s437, %s451
      %p453 = scmp.eq.s32.totalorder %s76, 0
      %p454 = por %p452, %p453
      %s456 = sadd.s32 %s455, 1
      %p459 = scmp.eq.s32.totalorder %s70, 1
      %p460 = scmp.ne.s32.totalorder %s455, %s457
      %p461 = scmp.eq.s32.totalorder %s70, 0
      %p462 = por %p460, %p461
      %p463 = scmp.ne.s32.totalorder %s455, %s457
      %p464 = scmp.eq.s32.totalorder %s75, 1
      %p465 = por %p463, %p464
      %p466 = scmp.ne.s32.totalorder %s457, %s458
      %p467 = scmp.eq.s32.totalorder %s75, 0
      %p468 = por %p466, %p467
      %p469 = scmp.ne.s32.totalorder %s457, %s458
      %p470 = scmp.eq.s32.totalorder %s76, 1
      %p471 = por %p469, %p470
      %p473 = scmp.ne.s32.totalorder %s458, %s472
      %p474 = scmp.eq.s32.totalorder %s76, 0
      %p475 = por %p473, %p474
      %s477 = sadd.s32 %s476, 1
      %p480 = scmp.eq.s32.totalorder %s70, 1
      %p481 = scmp.ne.s32.totalorder %s476, %s478
      %p482 = scmp.eq.s32.totalorder %s70, 0
      %p483 = por %p481, %p482
      %p484 = scmp.ne.s32.totalorder %s476, %s478
      %p485 = scmp.eq.s32.totalorder %s75, 1
      %p486 = por %p484, %p485
      %p487 = scmp.ne.s32.totalorder %s478, %s479
      %p488 = scmp.eq.s32.totalorder %s75, 0
      %p489 = por %p487, %p488
      %p490 = scmp.ne.s32.totalorder %s478, %s479
      %p491 = scmp.eq.s32.totalorder %s76, 1
      %p492 = por %p490, %p491
      %p494 = scmp.ne.s32.totalorder %s479, %s493
      %p495 = scmp.eq.s32.totalorder %s76, 0
      %p496 = por %p494, %p495
      %s498 = sadd.s32 %s497, 1
      %p501 = scmp.eq.s32.totalorder %s70, 1
      %p502 = scmp.ne.s32.totalorder %s497, %s499
      %p503 = scmp.eq.s32.totalorder %s70, 0
      %p504 = por %p502, %p503
      %p505 = scmp.ne.s32.totalorder %s497, %s499
      %p506 = scmp.eq.s32.totalorder %s75, 1
      %p507 = por %p505, %p506
      %p508 = scmp.ne.s32.totalorder %s499, %s500
      %p509 = scmp.eq.s32.totalorder %s75, 0
      %p510 = por %p508, %p509
      %p511 = scmp.ne.s32.totalorder %s499, %s500
      %p512 = scmp.eq.s32.totalorder %s76, 1
      %p513 = por %p511, %p512
      %p515 = scmp.ne.s32.totalorder %s500, %s514
      %p516 = scmp.eq.s32.totalorder %s76, 0
      %p517 = por %p515, %p516
      %s519 = sadd.s32 %s518, 1
      %p522 = scmp.eq.s32.totalorder %s70, 1
      %p523 = scmp.ne.s32.totalorder %s518, %s520
      %p524 = scmp.eq.s32.totalorder %s70, 0
      %p525 = por %p523, %p524
      %p526 = scmp.ne.s32.totalorder %s518, %s520
      %p527 = scmp.eq.s32.totalorder %s75, 1
      %p528 = por %p526, %p527
      %p529 = scmp.ne.s32.totalorder %s520, %s521
      %p530 = scmp.eq.s32.totalorder %s75, 0
      %p531 = por %p529, %p530
      %p532 = scmp.ne.s32.totalorder %s520, %s521
      %p533 = scmp.eq.s32.totalorder %s76, 1
      %p534 = por %p532, %p533
      %p536 = scmp.ne.s32.totalorder %s521, %s535
      %p537 = scmp.eq.s32.totalorder %s76, 0
      %p538 = por %p536, %p537
      %s540 = sadd.s32 %s539, 1
      %p543 = scmp.eq.s32.totalorder %s70, 1
      %p544 = scmp.ne.s32.totalorder %s539, %s541
      %p545 = scmp.eq.s32.totalorder %s70, 0
      %p546 = por %p544, %p545
      %p547 = scmp.ne.s32.totalorder %s539, %s541
      %p548 = scmp.eq.s32.totalorder %s75, 1
      %p549 = por %p547, %p548
      %p550 = scmp.ne.s32.totalorder %s541, %s542
      %p551 = scmp.eq.s32.totalorder %s75, 0
      %p552 = por %p550, %p551
      %p553 = scmp.ne.s32.totalorder %s541, %s542
      %p554 = scmp.eq.s32.totalorder %s76, 1
      %p555 = por %p553, %p554
      %p557 = scmp.ne.s32.totalorder %s542, %s556
      %p558 = scmp.eq.s32.totalorder %s76, 0
      %p559 = por %p557, %p558
      %s561 = sadd.s32 %s560, 1
      %p564 = scmp.eq.s32.totalorder %s70, 1
      %p565 = scmp.ne.s32.totalorder %s560, %s562
      %p566 = scmp.eq.s32.totalorder %s70, 0
      %p567 = por %p565, %p566
      %p568 = scmp.ne.s32.totalorder %s560, %s562
      %p569 = scmp.eq.s32.totalorder %s75, 1
      %p570 = por %p568, %p569
      %p571 = scmp.ne.s32.totalorder %s562, %s563
      %p572 = scmp.eq.s32.totalorder %s75, 0
      %p573 = por %p571, %p572
      %p574 = scmp.ne.s32.totalorder %s562, %s563
      %p575 = scmp.eq.s32.totalorder %s76, 1
      %p576 = por %p574, %p575
      %p578 = scmp.ne.s32.totalorder %s563, %s577
      %p579 = scmp.eq.s32.totalorder %s76, 0
      %p580 = por %p578, %p579
      %s582 = sadd.s32 %s581, 1
      %p585 = scmp.eq.s32.totalorder %s70, 1
      %p586 = scmp.ne.s32.totalorder %s581, %s583
      %p587 = scmp.eq.s32.totalorder %s70, 0
      %p588 = por %p586, %p587
      %p589 = scmp.ne.s32.totalorder %s581, %s583
      %p590 = scmp.eq.s32.totalorder %s75, 1
      %p591 = por %p589, %p590
      %p592 = scmp.ne.s32.totalorder %s583, %s584
      %p593 = scmp.eq.s32.totalorder %s75, 0
      %p594 = por %p592, %p593
      %p595 = scmp.ne.s32.totalorder %s583, %s584
      %p596 = scmp.eq.s32.totalorder %s76, 1
      %p597 = por %p595, %p596
      %p599 = scmp.ne.s32.totalorder %s584, %s598
      %p600 = scmp.eq.s32.totalorder %s76, 0
      %p601 = por %p599, %p600
      %s603 = sadd.s32 %s602, 1
      %p606 = scmp.eq.s32.totalorder %s70, 1
      %p607 = scmp.ne.s32.totalorder %s602, %s604
      %p608 = scmp.eq.s32.totalorder %s70, 0
      %p609 = por %p607, %p608
      %p610 = scmp.ne.s32.totalorder %s602, %s604
      %p611 = scmp.eq.s32.totalorder %s75, 1
      %p612 = por %p610, %p611
      %p613 = scmp.ne.s32.totalorder %s604, %s605
      %p614 = scmp.eq.s32.totalorder %s75, 0
      %p615 = por %p613, %p614
      %p616 = scmp.ne.s32.totalorder %s604, %s605
      %p617 = scmp.eq.s32.totalorder %s76, 1
      %p618 = por %p616, %p617
      %p620 = scmp.ne.s32.totalorder %s605, %s619
      %p621 = scmp.eq.s32.totalorder %s76, 0
      %p622 = por %p620, %p621
      %s624 = sadd.s32 %s623, 1
      %p627 = scmp.eq.s32.totalorder %s70, 1
      %p628 = scmp.ne.s32.totalorder %s623, %s625
      %p629 = scmp.eq.s32.totalorder %s70, 0
      %p630 = por %p628, %p629
      %p631 = scmp.ne.s32.totalorder %s623, %s625
      %p632 = scmp.eq.s32.totalorder %s75, 1
      %p633 = por %p631, %p632
      %p634 = scmp.ne.s32.totalorder %s625, %s626
      %p635 = scmp.eq.s32.totalorder %s75, 0
      %p636 = por %p634, %p635
      %p637 = scmp.ne.s32.totalorder %s625, %s626
      %p638 = scmp.eq.s32.totalorder %s76, 1
      %p639 = por %p637, %p638
      %p641 = scmp.ne.s32.totalorder %s626, %s640
      %p642 = scmp.eq.s32.totalorder %s76, 0
      %p643 = por %p641, %p642
      %s645 = sadd.s32 %s644, 1
      %p648 = scmp.eq.s32.totalorder %s70, 1
      %p649 = scmp.ne.s32.totalorder %s644, %s646
      %p650 = scmp.eq.s32.totalorder %s70, 0
      %p651 = por %p649, %p650
      %p652 = scmp.ne.s32.totalorder %s644, %s646
      %p653 = scmp.eq.s32.totalorder %s75, 1
      %p654 = por %p652, %p653
      %p655 = scmp.ne.s32.totalorder %s646, %s647
      %p656 = scmp.eq.s32.totalorder %s75, 0
      %p657 = por %p655, %p656
      %p658 = scmp.ne.s32.totalorder %s646, %s647
      %p659 = scmp.eq.s32.totalorder %s76, 1
      %p660 = por %p658, %p659
      %p662 = scmp.ne.s32.totalorder %s647, %s661
      %p663 = scmp.eq.s32.totalorder %s76, 0
      %p664 = por %p662, %p663
      %s666 = sadd.s32 %s665, 1
      %p669 = scmp.eq.s32.totalorder %s70, 1
      %p670 = scmp.ne.s32.totalorder %s665, %s667
      %p671 = scmp.eq.s32.totalorder %s70, 0
      %p672 = por %p670, %p671
      %p673 = scmp.ne.s32.totalorder %s665, %s667
      %p674 = scmp.eq.s32.totalorder %s75, 1
      %p675 = por %p673, %p674
      %p676 = scmp.ne.s32.totalorder %s667, %s668
      %p677 = scmp.eq.s32.totalorder %s75, 0
      %p678 = por %p676, %p677
      %p679 = scmp.ne.s32.totalorder %s667, %s668
      %p680 = scmp.eq.s32.totalorder %s76, 1
      %p681 = por %p679, %p680
      %p683 = scmp.ne.s32.totalorder %s668, %s682
      %p684 = scmp.eq.s32.totalorder %s76, 0
      %p685 = por %p683, %p684
      %s687 = sadd.s32 %s686, 1
      %p690 = scmp.eq.s32.totalorder %s70, 1
      %p691 = scmp.ne.s32.totalorder %s686, %s688
      %p692 = scmp.eq.s32.totalorder %s70, 0
      %p693 = por %p691, %p692
      %p694 = scmp.ne.s32.totalorder %s686, %s688
      %p695 = scmp.eq.s32.totalorder %s75, 1
      %p696 = por %p694, %p695
      %p697 = scmp.ne.s32.totalorder %s688, %s689
      %p698 = scmp.eq.s32.totalorder %s75, 0
      %p699 = por %p697, %p698
      %p700 = scmp.ne.s32.totalorder %s688, %s689
      %p701 = scmp.eq.s32.totalorder %s76, 1
      %p702 = por %p700, %p701
      %p704 = scmp.ne.s32.totalorder %s689, %s703
      %p705 = scmp.eq.s32.totalorder %s76, 0
      %p706 = por %p704, %p705
      %s708 = sadd.s32 %s707, 1
      %p711 = scmp.eq.s32.totalorder %s70, 1
      %p712 = scmp.ne.s32.totalorder %s707, %s709
      %p713 = scmp.eq.s32.totalorder %s70, 0
      %p714 = por %p712, %p713
      %p715 = scmp.ne.s32.totalorder %s707, %s709
      %p716 = scmp.eq.s32.totalorder %s75, 1
      %p717 = por %p715, %p716
      %p718 = scmp.ne.s32.totalorder %s709, %s710
      %p719 = scmp.eq.s32.totalorder %s75, 0
      %p720 = por %p718, %p719
      %p721 = scmp.ne.s32.totalorder %s709, %s710
      %p722 = scmp.eq.s32.totalorder %s76, 1
      %p723 = por %p721, %p722
      %p725 = scmp.ne.s32.totalorder %s710, %s724
      %p726 = scmp.eq.s32.totalorder %s76, 0
      %p727 = por %p725, %p726
      %s728 = ssub.s32 %s70, %s77
      %p729 = scmp.eq.s32.totalorder %s728, 0
      %s731 = sadd.s32 %s730, 1
      %s732 = scalar_select %p729, %s730, %s731
      %p735 = pneg %p729
      %p736 = scmp.eq.s32.totalorder %s70, 1
      %p737 = por %p735, %p736
      %p738 = scmp.ne.s32.totalorder %s730, %s733
      %p739 = scmp.eq.s32.totalorder %s70, 0
      %p740 = por %p738, %p739
      %p741 = scmp.ne.s32.totalorder %s730, %s733
      %p742 = scmp.eq.s32.totalorder %s75, 1
      %p743 = por %p741, %p742
      %p744 = scmp.ne.s32.totalorder %s733, %s734
      %p745 = scmp.eq.s32.totalorder %s75, 0
      %p746 = por %p744, %p745
      %p747 = scmp.ne.s32.totalorder %s733, %s734
      %p748 = scmp.eq.s32.totalorder %s76, 1
      %p749 = por %p747, %p748
      %p751 = scmp.ne.s32.totalorder %s734, %s750
      %p752 = scmp.eq.s32.totalorder %s76, 0
      %p753 = por %p751, %p752
      %p754 = scmp.le.s32.totalorder 1, %s70
      %p755 = scmp.lt.s32.totalorder %s70, 3
      %p756 = pnand %p754, %p755
      %p757 = pneg %p756
      // Predicated region
      $region9: #{tpu_custom_call.1} parent=5 // pred_check
        _
      $region10: #{tpu_custom_call.1} parent=5 // pred_check_branch
        %759 = sbr.rel (%p756) target = $region12
      $region11: #{tpu_custom_call.1} parent=5 // pred_region
        %s760 = ssub.s32 %s70, 1
        // Predicated region
        $region13: #{tpu_custom_call.1} parent=11 // pred_check
          %p761 = pneg %p195
        $region14: #{tpu_custom_call.1} parent=11 // pred_check_branch
          %763 = sbr.rel (%p761) target = $region16
        $region15: #{tpu_custom_call.1} parent=11 // pred_region
          _
        $region16: #{tpu_custom_call.1} parent=11 // pred_fallthru
          _
        // Predicated region
        $region17: #{tpu_custom_call.1} parent=11 // pred_check
          %p764 = pneg %p216
        $region18: #{tpu_custom_call.1} parent=11 // pred_check_branch
          %766 = sbr.rel (%p764) target = $region20
        $region19: #{tpu_custom_call.1} parent=11 // pred_region
          _
        $region20: #{tpu_custom_call.1} parent=11 // pred_fallthru
          _
        // Predicated region
        $region21: #{tpu_custom_call.1} parent=11 // pred_check
          %p767 = pneg %p237
        $region22: #{tpu_custom_call.1} parent=11 // pred_check_branch
          %769 = sbr.rel (%p767) target = $region24
        $region23: #{tpu_custom_call.1} parent=11 // pred_region
          _
        $region24: #{tpu_custom_call.1} parent=11 // pred_fallthru
          _
        // Predicated region
        $region25: #{tpu_custom_call.1} parent=11 // pred_check
          %p770 = pneg %p258
        $region26: #{tpu_custom_call.1} parent=11 // pred_check_branch
          %772 = sbr.rel (%p770) target = $region28
        $region27: #{tpu_custom_call.1} parent=11 // pred_region
          _
        $region28: #{tpu_custom_call.1} parent=11 // pred_fallthru
          _
        // Predicated region
        $region29: #{tpu_custom_call.1} parent=11 // pred_check
          %p773 = pneg %p279
        $region30: #{tpu_custom_call.1} parent=11 // pred_check_branch
          %775 = sbr.rel (%p773) target = $region32
        $region31: #{tpu_custom_call.1} parent=11 // pred_region
          _
        $region32: #{tpu_custom_call.1} parent=11 // pred_fallthru
          _
        // Predicated region
        $region33: #{tpu_custom_call.1} parent=11 // pred_check
          %p776 = pneg %p300
        $region34: #{tpu_custom_call.1} parent=11 // pred_check_branch
          %778 = sbr.rel (%p776) target = $region36
        $region35: #{tpu_custom_call.1} parent=11 // pred_region
          _
        $region36: #{tpu_custom_call.1} parent=11 // pred_fallthru
          _
        // Predicated region
        $region37: #{tpu_custom_call.1} parent=11 // pred_check
          %p779 = pneg %p321
        $region38: #{tpu_custom_call.1} parent=11 // pred_check_branch
          %781 = sbr.rel (%p779) target = $region40
        $region39: #{tpu_custom_call.1} parent=11 // pred_region
          _
        $region40: #{tpu_custom_call.1} parent=11 // pred_fallthru
          _
        // Predicated region
        $region41: #{tpu_custom_call.1} parent=11 // pred_check
          %p782 = pneg %p342
        $region42: #{tpu_custom_call.1} parent=11 // pred_check_branch
          %784 = sbr.rel (%p782) target = $region44
        $region43: #{tpu_custom_call.1} parent=11 // pred_region
          _
        $region44: #{tpu_custom_call.1} parent=11 // pred_fallthru
          _
        // Predicated region
        $region45: #{tpu_custom_call.1} parent=11 // pred_check
          %p785 = pneg %p363
        $region46: #{tpu_custom_call.1} parent=11 // pred_check_branch
          %787 = sbr.rel (%p785) target = $region48
        $region47: #{tpu_custom_call.1} parent=11 // pred_region
          _
        $region48: #{tpu_custom_call.1} parent=11 // pred_fallthru
          _
        // Predicated region
        $region49: #{tpu_custom_call.1} parent=11 // pred_check
          %p788 = pneg %p384
        $region50: #{tpu_custom_call.1} parent=11 // pred_check_branch
          %790 = sbr.rel (%p788) target = $region52
        $region51: #{tpu_custom_call.1} parent=11 // pred_region
          _
        $region52: #{tpu_custom_call.1} parent=11 // pred_fallthru
          _
        // Predicated region
        $region53: #{tpu_custom_call.1} parent=11 // pred_check
          %p791 = pneg %p405
        $region54: #{tpu_custom_call.1} parent=11 // pred_check_branch
          %793 = sbr.rel (%p791) target = $region56
        $region55: #{tpu_custom_call.1} parent=11 // pred_region
          _
        $region56: #{tpu_custom_call.1} parent=11 // pred_fallthru
          _
        // Predicated region
        $region57: #{tpu_custom_call.1} parent=11 // pred_check
          %p794 = pneg %p426
        $region58: #{tpu_custom_call.1} parent=11 // pred_check_branch
          %796 = sbr.rel (%p794) target = $region60
        $region59: #{tpu_custom_call.1} parent=11 // pred_region
          _
        $region60: #{tpu_custom_call.1} parent=11 // pred_fallthru
          _
        // Predicated region
        $region61: #{tpu_custom_call.1} parent=11 // pred_check
          %p797 = pneg %p447
        $region62: #{tpu_custom_call.1} parent=11 // pred_check_branch
          %799 = sbr.rel (%p797) target = $region64
        $region63: #{tpu_custom_call.1} parent=11 // pred_region
          _
        $region64: #{tpu_custom_call.1} parent=11 // pred_fallthru
          _
        // Predicated region
        $region65: #{tpu_custom_call.1} parent=11 // pred_check
          %p800 = pneg %p468
        $region66: #{tpu_custom_call.1} parent=11 // pred_check_branch
          %802 = sbr.rel (%p800) target = $region68
        $region67: #{tpu_custom_call.1} parent=11 // pred_region
          _
        $region68: #{tpu_custom_call.1} parent=11 // pred_fallthru
          _
        // Predicated region
        $region69: #{tpu_custom_call.1} parent=11 // pred_check
          %p803 = pneg %p489
        $region70: #{tpu_custom_call.1} parent=11 // pred_check_branch
          %805 = sbr.rel (%p803) target = $region72
        $region71: #{tpu_custom_call.1} parent=11 // pred_region
          _
        $region72: #{tpu_custom_call.1} parent=11 // pred_fallthru
          _
        // Predicated region
        $region73: #{tpu_custom_call.1} parent=11 // pred_check
          %p806 = pneg %p510
        $region74: #{tpu_custom_call.1} parent=11 // pred_check_branch
          %808 = sbr.rel (%p806) target = $region76
        $region75: #{tpu_custom_call.1} parent=11 // pred_region
          _
        $region76: #{tpu_custom_call.1} parent=11 // pred_fallthru
          _
        // Predicated region
        $region77: #{tpu_custom_call.1} parent=11 // pred_check
          %p809 = pneg %p531
        $region78: #{tpu_custom_call.1} parent=11 // pred_check_branch
          %811 = sbr.rel (%p809) target = $region80
        $region79: #{tpu_custom_call.1} parent=11 // pred_region
          _
        $region80: #{tpu_custom_call.1} parent=11 // pred_fallthru
          _
        // Predicated region
        $region81: #{tpu_custom_call.1} parent=11 // pred_check
          %p812 = pneg %p552
        $region82: #{tpu_custom_call.1} parent=11 // pred_check_branch
          %814 = sbr.rel (%p812) target = $region84
        $region83: #{tpu_custom_call.1} parent=11 // pred_region
          _
        $region84: #{tpu_custom_call.1} parent=11 // pred_fallthru
          _
        // Predicated region
        $region85: #{tpu_custom_call.1} parent=11 // pred_check
          %p815 = pneg %p573
        $region86: #{tpu_custom_call.1} parent=11 // pred_check_branch
          %817 = sbr.rel (%p815) target = $region88
        $region87: #{tpu_custom_call.1} parent=11 // pred_region
          _
        $region88: #{tpu_custom_call.1} parent=11 // pred_fallthru
          _
        // Predicated region
        $region89: #{tpu_custom_call.1} parent=11 // pred_check
          %p818 = pneg %p594
        $region90: #{tpu_custom_call.1} parent=11 // pred_check_branch
          %820 = sbr.rel (%p818) target = $region92
        $region91: #{tpu_custom_call.1} parent=11 // pred_region
          _
        $region92: #{tpu_custom_call.1} parent=11 // pred_fallthru
          _
        // Predicated region
        $region93: #{tpu_custom_call.1} parent=11 // pred_check
          %p821 = pneg %p615
        $region94: #{tpu_custom_call.1} parent=11 // pred_check_branch
          %823 = sbr.rel (%p821) target = $region96
        $region95: #{tpu_custom_call.1} parent=11 // pred_region
          _
        $region96: #{tpu_custom_call.1} parent=11 // pred_fallthru
          _
        // Predicated region
        $region97: #{tpu_custom_call.1} parent=11 // pred_check
          %p824 = pneg %p636
        $region98: #{tpu_custom_call.1} parent=11 // pred_check_branch
          %826 = sbr.rel (%p824) target = $region100
        $region99: #{tpu_custom_call.1} parent=11 // pred_region
          _
        $region100: #{tpu_custom_call.1} parent=11 // pred_fallthru
          _
        // Predicated region
        $region101: #{tpu_custom_call.1} parent=11 // pred_check
          %p827 = pneg %p657
        $region102: #{tpu_custom_call.1} parent=11 // pred_check_branch
          %829 = sbr.rel (%p827) target = $region104
        $region103: #{tpu_custom_call.1} parent=11 // pred_region
          _
        $region104: #{tpu_custom_call.1} parent=11 // pred_fallthru
          _
        // Predicated region
        $region105: #{tpu_custom_call.1} parent=11 // pred_check
          %p830 = pneg %p678
        $region106: #{tpu_custom_call.1} parent=11 // pred_check_branch
          %832 = sbr.rel (%p830) target = $region108
        $region107: #{tpu_custom_call.1} parent=11 // pred_region
          _
        $region108: #{tpu_custom_call.1} parent=11 // pred_fallthru
          _
        // Predicated region
        $region109: #{tpu_custom_call.1} parent=11 // pred_check
          %p833 = pneg %p699
        $region110: #{tpu_custom_call.1} parent=11 // pred_check_branch
          %835 = sbr.rel (%p833) target = $region112
        $region111: #{tpu_custom_call.1} parent=11 // pred_region
          _
        $region112: #{tpu_custom_call.1} parent=11 // pred_fallthru
          _
        // Predicated region
        $region113: #{tpu_custom_call.1} parent=11 // pred_check
          %p836 = pneg %p720
        $region114: #{tpu_custom_call.1} parent=11 // pred_check_branch
          %838 = sbr.rel (%p836) target = $region116
        $region115: #{tpu_custom_call.1} parent=11 // pred_region
          _
        $region116: #{tpu_custom_call.1} parent=11 // pred_fallthru
          _
      $region12: #{tpu_custom_call.1} parent=5 // pred_fallthru
        _
      %p839 = scmp.lt.s32.totalorder %s70, 2
      // Predicated region
      $region117: #{tpu_custom_call.1} parent=5 // pred_check
        %p840 = pneg %p839
      $region118: #{tpu_custom_call.1} parent=5 // pred_check_branch
        %842 = sbr.rel (%p840) target = $region120
      $region119: #{tpu_custom_call.1} parent=5 // pred_region
        // Predicated region
        $region121: #{tpu_custom_call.1} parent=119 // pred_check
          %p843 = pneg %p90
        $region122: #{tpu_custom_call.1} parent=119 // pred_check_branch
          %845 = sbr.rel (%p843) target = $region124
        $region123: #{tpu_custom_call.1} parent=119 // pred_region
          %p846 = scmp.lt.s32.totalorder %s70, 1
          %s847 = scalar_select %p846, %s70, 1
          %s848 = smul.addr %s847, 16
          %s849 = smul.addr %s848, 4
          %s850 = scalar_lea.vmem %s1, %s849
        $region124: #{tpu_custom_call.1} parent=119 // pred_fallthru
          _
        // Predicated region
        $region125: #{tpu_custom_call.1} parent=119 // pred_check
          %p851 = pneg %p116
        $region126: #{tpu_custom_call.1} parent=119 // pred_check_branch
          %853 = sbr.rel (%p851) target = $region128
        $region127: #{tpu_custom_call.1} parent=119 // pred_region
          %p854 = scmp.lt.s32.totalorder %s70, 1
          %s855 = scalar_select %p854, %s70, 1
          %s856 = smul.addr %s855, 16
          %s857 = smul.addr %s856, 8
          %s858 = scalar_lea.vmem %s3, %s857
        $region128: #{tpu_custom_call.1} parent=119 // pred_fallthru
          _
        // Predicated region
        $region129: #{tpu_custom_call.1} parent=119 // pred_check
          %p859 = pneg %p142
        $region130: #{tpu_custom_call.1} parent=119 // pred_check_branch
          %861 = sbr.rel (%p859) target = $region132
        $region131: #{tpu_custom_call.1} parent=119 // pred_region
          %p862 = scmp.lt.s32.totalorder %s70, 1
          %s863 = scalar_select %p862, %s70, 1
          %s864 = smul.addr %s863, 4
          %s865 = scalar_lea.vmem %s5, %s864
        $region132: #{tpu_custom_call.1} parent=119 // pred_fallthru
          _
        // Predicated region
        $region133: #{tpu_custom_call.1} parent=119 // pred_check
          %p866 = pneg %p168
        $region134: #{tpu_custom_call.1} parent=119 // pred_check_branch
          %868 = sbr.rel (%p866) target = $region136
        $region135: #{tpu_custom_call.1} parent=119 // pred_region
          %p869 = scmp.lt.s32.totalorder %s70, 1
          %s870 = scalar_select %p869, %s70, 1
          %s871 = smul.addr %s870, 2
          %s872 = smul.addr %s871, 8
          %s873 = scalar_lea.vmem %s7, %s872
        $region136: #{tpu_custom_call.1} parent=119 // pred_fallthru
          _
      $region120: #{tpu_custom_call.1} parent=5 // pred_fallthru
        _
      %p874 = scmp.le.s32.totalorder 1, %s70
      %p875 = scmp.lt.s32.totalorder %s70, 3
      %p876 = pnand %p874, %p875
      %p877 = pneg %p876
      // Predicated region
      $region137: #{tpu_custom_call.1} parent=5 // pred_check
        _
      $region138: #{tpu_custom_call.1} parent=5 // pred_check_branch
        %879 = sbr.rel (%p876) target = $region140
      $region139: #{tpu_custom_call.1} parent=5 // pred_region
        %s880 = ssub.s32 %s70, 1
        %p881 = scmp.lt.s32.totalorder %s75, 1
        %s882 = scalar_select %p881, %s75, 1
        %s883 = smul.addr %s882, 16
        %s884 = smul.addr %s883, 4
        %s885 = scalar_lea.vmem %s1, %s884
        %p886 = pneg %p96
        %p887 = pneg %p93
        %p888 = scmp.lt.s32.totalorder %s75, 1
        %s889 = scalar_select %p888, %s75, 1
        %s890 = smul.addr %s889, 16
        %s891 = smul.addr %s890, 8
        %s892 = scalar_lea.vmem %s3, %s891
        %p893 = pneg %p122
        %p894 = pneg %p119
        %p895 = scmp.lt.s32.totalorder %s75, 1
        %s896 = scalar_select %p895, %s75, 1
        %s897 = smul.addr %s896, 4
        %s898 = scalar_lea.vmem %s5, %s897
        %p899 = pneg %p148
        %p900 = pneg %p145
        %p901 = scmp.lt.s32.totalorder %s75, 1
        %s902 = scalar_select %p901, %s75, 1
        %s903 = smul.addr %s902, 2
        %s904 = smul.addr %s903, 8
        %s905 = scalar_lea.vmem %s7, %s904
        %p906 = pneg %p174
        %p907 = pneg %p171
        %p908 = pneg %p195
        %p909 = pneg %p192
        %p910 = pneg %p216
        %p911 = pneg %p213
        %p912 = pneg %p237
        %p913 = pneg %p234
        %p914 = pneg %p258
        %p915 = pneg %p255
        %p916 = pneg %p279
        %p917 = pneg %p276
        %p918 = pneg %p300
        %p919 = pneg %p297
        %p920 = pneg %p321
        %p921 = pneg %p318
        %p922 = pneg %p342
        %p923 = pneg %p339
        %p924 = pneg %p363
        %p925 = pneg %p360
        %p926 = pneg %p384
        %p927 = pneg %p381
        %p928 = pneg %p405
        %p929 = pneg %p402
        %p930 = pneg %p426
        %p931 = pneg %p423
        %p932 = pneg %p447
        %p933 = pneg %p444
        %p934 = pneg %p468
        %p935 = pneg %p465
        %p936 = pneg %p489
        %p937 = pneg %p486
        %p938 = pneg %p510
        %p939 = pneg %p507
        %p940 = pneg %p531
        %p941 = pneg %p528
        %p942 = pneg %p552
        %p943 = pneg %p549
        %p944 = pneg %p573
        %p945 = pneg %p570
        %p946 = pneg %p594
        %p947 = pneg %p591
        %p948 = pneg %p615
        %p949 = pneg %p612
        %p950 = pneg %p636
        %p951 = pneg %p633
        %p952 = pneg %p657
        %p953 = pneg %p654
        %p954 = pneg %p678
        %p955 = pneg %p675
        %p956 = pneg %p699
        %p957 = pneg %p696
        %p958 = pneg %p720
        %p959 = pneg %p717
        %p960 = pneg %p746
        %p961 = pneg %p743
        %s962 = sand.u32 %s733, 1
        %s963 = scalar_lea.sflag [#allocation3], %s962
        %s964 = sand.u32 %s733, 1
        %s965 = scalar_lea.vmem [#allocation2], %s964
        %p966 = scmp.lt.s32.totalorder %s75, 1
        %s967 = scalar_select %p966, %s75, 1
        %s968 = smul.addr %s967, 16
        %s969 = smul.addr %s968, 4
        %s970 = scalar_lea.vmem %s1, %s969
        %p971 = scmp.lt.s32.totalorder %s75, 1
        %s972 = scalar_select %p971, %s75, 1
        %s973 = smul.addr %s972, 16
        %s974 = smul.addr %s973, 8
        %s975 = scalar_lea.vmem %s3, %s974
        %p976 = scmp.lt.s32.totalorder %s75, 1
        %s977 = scalar_select %p976, %s75, 1
        %s978 = smul.addr %s977, 4
        %s979 = scalar_lea.vmem %s5, %s978
        %p980 = scmp.lt.s32.totalorder %s75, 1
        %s981 = scalar_select %p980, %s75, 1
        %s982 = smul.addr %s981, 2
        %s983 = smul.addr %s982, 8
        %s984 = scalar_lea.vmem %s7, %s983
        %v986 = vld [vmem:[%s970] sm:$0xf]
        %v987 = vld [vmem:[%s970 + $0x4] sm:$0xf]
        %v988 = vld [vmem:[%s970 + $0x8] sm:$0xf]
        %v989 = vld [vmem:[%s970 + $0xc] sm:$0xf]
        %v990 = vld [vmem:[%s970 + $0x10] sm:$0xf]
        %v991 = vld [vmem:[%s970 + $0x14] sm:$0xf]
        %v992 = vld [vmem:[%s970 + $0x18] sm:$0xf]
        %v993 = vld [vmem:[%s970 + $0x1c] sm:$0xf]
        %v994 = vld [vmem:[%s970 + $0x20] sm:$0xf]
        %v995 = vld [vmem:[%s970 + $0x24] sm:$0xf]
        %v996 = vld [vmem:[%s970 + $0x28] sm:$0xf]
        %v997 = vld [vmem:[%s970 + $0x2c] sm:$0xf]
        %v998 = vld [vmem:[%s970 + $0x30] sm:$0xf]
        %v999 = vld [vmem:[%s970 + $0x34] sm:$0xf]
        %v1000 = vld [vmem:[%s970 + $0x38] sm:$0xf]
        %v1001 = vld [vmem:[%s970 + $0x3c] sm:$0xf]
        %v1002 = vld [vmem:[%s9] sm:$0xf]
        %v1003 = vld [vmem:[%s9 + $0x4] sm:$0x1]
        %v1004 = vld [vmem:[%s11] sm:$0x1]
        %v1006 = vlaneseq
        %v1007 = vshrl.u32 %v1006, 7
        %v1008 = vsub.s32 0, %v1007
        %v1009 = vrot.slane %v1004, %v1008
        %v1027 = vunpack.c.l.b16 %v986
        %v1028 = vunpack.c.l.b16 %v987
        %v1029 = vunpack.c.l.b16 %v988
        %v1030 = vunpack.c.l.b16 %v989
        %v1031 = vunpack.c.l.b16 %v990
        %v1032 = vunpack.c.l.b16 %v991
        %v1033 = vunpack.c.l.b16 %v992
        %v1034 = vunpack.c.l.b16 %v993
        %v1035 = vunpack.c.l.b16 %v994
        %v1036 = vunpack.c.l.b16 %v995
        %v1037 = vunpack.c.l.b16 %v996
        %v1038 = vunpack.c.l.b16 %v997
        %v1039 = vunpack.c.l.b16 %v998
        %v1040 = vunpack.c.l.b16 %v999
        %v1041 = vunpack.c.l.b16 %v1000
        %v1042 = vunpack.c.l.b16 %v1001
        %v1043 = vpack.c.b16 %v1028, %v1027
        %v1044 = vpack.c.b16 %v1030, %v1029
        %v1045 = vpack.c.b16 %v1032, %v1031
        %v1046 = vpack.c.b16 %v1034, %v1033
        %v1047 = vpack.c.b16 %v1036, %v1035
        %v1048 = vpack.c.b16 %v1038, %v1037
        %v1049 = vpack.c.b16 %v1040, %v1039
        %v1050 = vpack.c.b16 %v1042, %v1041
        %v1053 = vunpack.c.l.b16 %v1002
        %v1054 = vunpack.c.l.b16 %v1003
        %v1055 = vpack.c.b16 %v1054, %v1053
        %vm1056 = vcmask 80896
        %v1058 = vsel %vm1056, %v1043, 0
        %v1061 = vsel %vm1056, %v1044, 0
        %v1064 = vsel %vm1056, %v1045, 0
        %v1067 = vsel %vm1056, %v1046, 0
        %v1070 = vsel %vm1056, %v1047, 0
        %v1073 = vsel %vm1056, %v1048, 0
        %v1076 = vsel %vm1056, %v1049, 0
        %v1079 = vsel %vm1056, %v1050, 0
        %vm1081 = vcmask 1044480
        %v1083 = vsel %vm1081, %v1055, 0
        %1085 = vmatprep.subr.bf16.mxu0 0
        %1086 = vmatpush1.bf16.msra.mxu0 %v1083
        %1087 = vmatprep.subr.bf16.mxu0 0
        %1088 = vmatpush1.bf16.msra.mxu0 0
        %1089 = vmatprep.subr.bf16.mxu0 0
        %1090 = vmatpush1.bf16.msra.mxu0 0
        %1091 = vmatprep.subr.bf16.mxu0 0
        %1092 = vmatpush1.bf16.msra.mxu0 0
        %1093 = vmatprep.subr.bf16.mxu0 0
        %1094 = vmatpush1.bf16.msra.mxu0 0
        %1095 = vmatprep.subr.bf16.mxu0 0
        %1096 = vmatpush1.bf16.msra.mxu0 0
        %1097 = vmatprep.subr.bf16.mxu0 0
        %1098 = vmatpush1.bf16.msra.mxu0 0
        %1099 = vmatprep.subr.bf16.mxu0 0
        %1100 = vmatpush1.bf16.msra.mxu0 0
        %1101 = vmatprep.subr.bf16.mxu0 0
        %1102 = vmatpush1.bf16.msra.mxu0 0
        %1103 = vmatprep.subr.bf16.mxu0 0
        %1104 = vmatpush1.bf16.msra.mxu0 0
        %1105 = vmatprep.subr.bf16.mxu0 0
        %1106 = vmatpush1.bf16.msra.mxu0 0
        %1107 = vmatprep.subr.bf16.mxu0 0
        %1108 = vmatpush1.bf16.msra.mxu0 0
        %1109 = vmatprep.subr.bf16.mxu0 0
        %1110 = vmatpush1.bf16.msra.mxu0 0
        %1111 = vmatprep.subr.bf16.mxu0 0
        %1112 = vmatpush1.bf16.msra.mxu0 0
        %1113 = vmatprep.subr.bf16.mxu0 0
        %1114 = vmatpush1.bf16.msra.mxu0 0
        %1115 = vmatprep.subr.bf16.mxu0 0
        %1116 = vmatpush1.bf16.msra.mxu0 0
        %1117 = vmatprep.mubr.bf16.mxu0 0
        %1118 = vmatmul.mubr.bf16.gmra.mrb[0].mxu0 %v1058
        %v1119 = vpop.f32.mrb[0].mxu0
        %v1120 = vadd.f32 %v1009, %v1119
        %v1121 = vpop.f32.mrb[0].mxu0
        %v1122 = vpop.f32.mrb[0].mxu0
        %v1123 = vadd.f32 %v1009, %v1122
        %v1124 = vpop.f32.mrb[0].mxu0
        %1125 = vmatprep.mubr.bf16.mxu0 0
        %1126 = vmatmul.mubr.bf16.gmra.mrb[0].mxu0 %v1061
        %v1127 = vpop.f32.mrb[0].mxu0
        %v1128 = vadd.f32 %v1009, %v1127
        %v1129 = vpop.f32.mrb[0].mxu0
        %v1130 = vpop.f32.mrb[0].mxu0
        %v1131 = vadd.f32 %v1009, %v1130
        %v1132 = vpop.f32.mrb[0].mxu0
        %1133 = vmatprep.mubr.bf16.mxu0 0
        %1134 = vmatmul.mubr.bf16.gmra.mrb[0].mxu0 %v1064
        %v1135 = vpop.f32.mrb[0].mxu0
        %v1136 = vadd.f32 %v1009, %v1135
        %v1137 = vpop.f32.mrb[0].mxu0
        %v1138 = vpop.f32.mrb[0].mxu0
        %v1139 = vadd.f32 %v1009, %v1138
        %v1140 = vpop.f32.mrb[0].mxu0
        %1141 = vmatprep.mubr.bf16.mxu0 0
        %1142 = vmatmul.mubr.bf16.gmra.mrb[0].mxu0 %v1067
        %v1143 = vpop.f32.mrb[0].mxu0
        %v1144 = vadd.f32 %v1009, %v1143
        %v1145 = vpop.f32.mrb[0].mxu0
        %v1146 = vpop.f32.mrb[0].mxu0
        %v1147 = vadd.f32 %v1009, %v1146
        %v1148 = vpop.f32.mrb[0].mxu0
        %1149 = vmatprep.mubr.bf16.mxu0 0
        %1150 = vmatmul.mubr.bf16.gmra.mrb[0].mxu0 %v1070
        %v1151 = vpop.f32.mrb[0].mxu0
        %v1152 = vadd.f32 %v1009, %v1151
        %v1153 = vpop.f32.mrb[0].mxu0
        %v1154 = vpop.f32.mrb[0].mxu0
        %v1155 = vadd.f32 %v1009, %v1154
        %v1156 = vpop.f32.mrb[0].mxu0
        %1157 = vmatprep.mubr.bf16.mxu0 0
        %1158 = vmatmul.mubr.bf16.gmra.mrb[0].mxu0 %v1073
        %v1159 = vpop.f32.mrb[0].mxu0
        %v1160 = vadd.f32 %v1009, %v1159
        %v1161 = vpop.f32.mrb[0].mxu0
        %v1162 = vpop.f32.mrb[0].mxu0
        %v1163 = vadd.f32 %v1009, %v1162
        %v1164 = vpop.f32.mrb[0].mxu0
        %1165 = vmatprep.mubr.bf16.mxu0 0
        %1166 = vmatmul.mubr.bf16.gmra.mrb[0].mxu0 %v1076
        %v1167 = vpop.f32.mrb[0].mxu0
        %v1168 = vadd.f32 %v1009, %v1167
        %v1169 = vpop.f32.mrb[0].mxu0
        %v1170 = vpop.f32.mrb[0].mxu0
        %v1171 = vadd.f32 %v1009, %v1170
        %v1172 = vpop.f32.mrb[0].mxu0
        %1173 = vmatprep.mubr.bf16.mxu0 0
        %1174 = vmatmul.mubr.bf16.gmra.mrb[0].mxu0 %v1079
        %v1175 = vpop.f32.mrb[0].mxu0
        %v1176 = vadd.f32 %v1009, %v1175
        %v1177 = vpop.f32.mrb[0].mxu0
        %v1178 = vpop.f32.mrb[0].mxu0
        %v1179 = vadd.f32 %v1009, %v1178
        %v1180 = vpop.f32.mrb[0].mxu0
        %1181 = vdwg.mxu0
        %v1182 = vmax.f32 %v1120, 0.0
        %v1183 = vmax.f32 %v1123, 0.0
        %v1184 = vmax.f32 %v1128, 0.0
        %v1185 = vmax.f32 %v1131, 0.0
        %v1186 = vmax.f32 %v1136, 0.0
        %v1187 = vmax.f32 %v1139, 0.0
        %v1188 = vmax.f32 %v1144, 0.0
        %v1189 = vmax.f32 %v1147, 0.0
        %v1190 = vmax.f32 %v1152, 0.0
        %v1191 = vmax.f32 %v1155, 0.0
        %v1192 = vmax.f32 %v1160, 0.0
        %v1193 = vmax.f32 %v1163, 0.0
        %v1194 = vmax.f32 %v1168, 0.0
        %v1195 = vmax.f32 %v1171, 0.0
        %v1196 = vmax.f32 %v1176, 0.0
        %v1197 = vmax.f32 %v1179, 0.0
        %v1198 = vpack.c.bf16 %v1183, %v1182
        %v1199 = vpack.c.bf16 %v1185, %v1184
        %v1200 = vpack.c.bf16 %v1187, %v1186
        %v1201 = vpack.c.bf16 %v1189, %v1188
        %v1202 = vpack.c.bf16 %v1191, %v1190
        %v1203 = vpack.c.bf16 %v1193, %v1192
        %v1204 = vpack.c.bf16 %v1195, %v1194
        %v1205 = vpack.c.bf16 %v1197, %v1196
        %v1206 = vld [vmem:[%s13] sm:$0xf]
        %v1207 = vld [vmem:[%s13 + $0x4] sm:$0xf]
        %v1208 = vld [vmem:[%s13 + $0x8] sm:$0xf]
        %v1209 = vld [vmem:[%s13 + $0xc] sm:$0xf]
        %v1210 = vld [vmem:[%s15] sm:$0x1]
        %v1212 = vlaneseq
        %v1213 = vshrl.u32 %v1212, 7
        %v1214 = vsub.s32 0, %v1213
        %v1215 = vrot.slane %v1210, %v1214
        %v1221 = vunpack.c.l.b16 %v1206
        %v1222 = vunpack.c.l.b16 %v1207
        %v1223 = vunpack.c.l.b16 %v1208
        %v1224 = vunpack.c.l.b16 %v1209
        %v1225 = vpack.c.b16 %v1222, %v1221
        %v1226 = vpack.c.b16 %v1224, %v1223
        %vm1229 = vcmask 261120
        %v1231 = vsel %vm1229, %v1198, 0
        %v1234 = vsel %vm1229, %v1199, 0
        %v1237 = vsel %vm1229, %v1200, 0
        %v1240 = vsel %vm1229, %v1201, 0
        %v1243 = vsel %vm1229, %v1202, 0
        %v1246 = vsel %vm1229, %v1203, 0
        %v1249 = vsel %vm1229, %v1204, 0
        %v1252 = vsel %vm1229, %v1205, 0
        %1254 = vmatprep.subr.bf16.mxu0 0
        %1255 = vmatpush1.bf16.msra.mxu0 %v1225
        %1256 = vmatprep.subr.bf16.mxu0 0
        %1257 = vmatpush1.bf16.msra.mxu0 %v1226
        %1258 = vmatprep.subr.bf16.mxu0 0
        %1259 = vmatpush1.bf16.msra.mxu0 0
        %1260 = vmatprep.subr.bf16.mxu0 0
        %1261 = vmatpush1.bf16.msra.mxu0 0
        %1262 = vmatprep.subr.bf16.mxu0 0
        %1263 = vmatpush1.bf16.msra.mxu0 0
        %1264 = vmatprep.subr.bf16.mxu0 0
        %1265 = vmatpush1.bf16.msra.mxu0 0
        %1266 = vmatprep.subr.bf16.mxu0 0
        %1267 = vmatpush1.bf16.msra.mxu0 0
        %1268 = vmatprep.subr.bf16.mxu0 0
        %1269 = vmatpush1.bf16.msra.mxu0 0
        %1270 = vmatprep.subr.bf16.mxu0 0
        %1271 = vmatpush1.bf16.msra.mxu0 0
        %1272 = vmatprep.subr.bf16.mxu0 0
        %1273 = vmatpush1.bf16.msra.mxu0 0
        %1274 = vmatprep.subr.bf16.mxu0 0
        %1275 = vmatpush1.bf16.msra.mxu0 0
        %1276 = vmatprep.subr.bf16.mxu0 0
        %1277 = vmatpush1.bf16.msra.mxu0 0
        %1278 = vmatprep.subr.bf16.mxu0 0
        %1279 = vmatpush1.bf16.msra.mxu0 0
        %1280 = vmatprep.subr.bf16.mxu0 0
        %1281 = vmatpush1.bf16.msra.mxu0 0
        %1282 = vmatprep.subr.bf16.mxu0 0
        %1283 = vmatpush1.bf16.msra.mxu0 0
        %1284 = vmatprep.subr.bf16.mxu0 0
        %1285 = vmatpush1.bf16.msra.mxu0 0
        %1286 = vmatprep.mubr.bf16.mxu0 0
        %1287 = vmatmul.mubr.bf16.gmra.mrb[0].mxu0 %v1231
        %v1288 = vpop.f32.mrb[0].mxu0
        %v1289 = vadd.f32 %v1215, %v1288
        %v1290 = vpop.f32.mrb[0].mxu0
        %v1291 = vpop.f32.mrb[0].mxu0
        %v1292 = vadd.f32 %v1215, %v1291
        %v1293 = vpop.f32.mrb[0].mxu0
        %1294 = vmatprep.mubr.bf16.mxu0 0
        %1295 = vmatmul.mubr.bf16.gmra.mrb[0].mxu0 %v1234
        %v1296 = vpop.f32.mrb[0].mxu0
        %v1297 = vadd.f32 %v1215, %v1296
        %v1298 = vpop.f32.mrb[0].mxu0
        %v1299 = vpop.f32.mrb[0].mxu0
        %v1300 = vadd.f32 %v1215, %v1299
        %v1301 = vpop.f32.mrb[0].mxu0
        %1302 = vmatprep.mubr.bf16.mxu0 0
        %1303 = vmatmul.mubr.bf16.gmra.mrb[0].mxu0 %v1237
        %v1304 = vpop.f32.mrb[0].mxu0
        %v1305 = vadd.f32 %v1215, %v1304
        %v1306 = vpop.f32.mrb[0].mxu0
        %v1307 = vpop.f32.mrb[0].mxu0
        %v1308 = vadd.f32 %v1215, %v1307
        %v1309 = vpop.f32.mrb[0].mxu0
        %1310 = vmatprep.mubr.bf16.mxu0 0
        %1311 = vmatmul.mubr.bf16.gmra.mrb[0].mxu0 %v1240
        %v1312 = vpop.f32.mrb[0].mxu0
        %v1313 = vadd.f32 %v1215, %v1312
        %v1314 = vpop.f32.mrb[0].mxu0
        %v1315 = vpop.f32.mrb[0].mxu0
        %v1316 = vadd.f32 %v1215, %v1315
        %v1317 = vpop.f32.mrb[0].mxu0
        %1318 = vmatprep.mubr.bf16.mxu0 0
        %1319 = vmatmul.mubr.bf16.gmra.mrb[0].mxu0 %v1243
        %v1320 = vpop.f32.mrb[0].mxu0
        %v1321 = vadd.f32 %v1215, %v1320
        %v1322 = vpop.f32.mrb[0].mxu0
        %v1323 = vpop.f32.mrb[0].mxu0
        %v1324 = vadd.f32 %v1215, %v1323
        %v1325 = vpop.f32.mrb[0].mxu0
        %1326 = vmatprep.mubr.bf16.mxu0 0
        %1327 = vmatmul.mubr.bf16.gmra.mrb[0].mxu0 %v1246
        %v1328 = vpop.f32.mrb[0].mxu0
        %v1329 = vadd.f32 %v1215, %v1328
        %v1330 = vpop.f32.mrb[0].mxu0
        %v1331 = vpop.f32.mrb[0].mxu0
        %v1332 = vadd.f32 %v1215, %v1331
        %v1333 = vpop.f32.mrb[0].mxu0
        %1334 = vmatprep.mubr.bf16.mxu0 0
        %1335 = vmatmul.mubr.bf16.gmra.mrb[0].mxu0 %v1249
        %v1336 = vpop.f32.mrb[0].mxu0
        %v1337 = vadd.f32 %v1215, %v1336
        %v1338 = vpop.f32.mrb[0].mxu0
        %v1339 = vpop.f32.mrb[0].mxu0
        %v1340 = vadd.f32 %v1215, %v1339
        %v1341 = vpop.f32.mrb[0].mxu0
        %1342 = vmatprep.mubr.bf16.mxu0 0
        %1343 = vmatmul.mubr.bf16.gmra.mrb[0].mxu0 %v1252
        %v1344 = vpop.f32.mrb[0].mxu0
        %v1345 = vadd.f32 %v1215, %v1344
        %v1346 = vpop.f32.mrb[0].mxu0
        %v1347 = vpop.f32.mrb[0].mxu0
        %v1348 = vadd.f32 %v1215, %v1347
        %v1349 = vpop.f32.mrb[0].mxu0
        %1350 = vdwg.mxu0
        %v1351 = vmax.f32 %v1289, 0.0
        %v1352 = vmax.f32 %v1292, 0.0
        %v1353 = vmax.f32 %v1297, 0.0
        %v1354 = vmax.f32 %v1300, 0.0
        %v1355 = vmax.f32 %v1305, 0.0
        %v1356 = vmax.f32 %v1308, 0.0
        %v1357 = vmax.f32 %v1313, 0.0
        %v1358 = vmax.f32 %v1316, 0.0
        %v1359 = vmax.f32 %v1321, 0.0
        %v1360 = vmax.f32 %v1324, 0.0
        %v1361 = vmax.f32 %v1329, 0.0
        %v1362 = vmax.f32 %v1332, 0.0
        %v1363 = vmax.f32 %v1337, 0.0
        %v1364 = vmax.f32 %v1340, 0.0
        %v1365 = vmax.f32 %v1345, 0.0
        %v1366 = vmax.f32 %v1348, 0.0
        %v1367 = vld [vmem:[%s975] sm:$0xff]
        %v1368 = vld [vmem:[%s975 + $0x8] sm:$0xff]
        %v1369 = vld [vmem:[%s975 + $0x10] sm:$0xff]
        %v1370 = vld [vmem:[%s975 + $0x18] sm:$0xff]
        %v1371 = vld [vmem:[%s975 + $0x20] sm:$0xff]
        %v1372 = vld [vmem:[%s975 + $0x28] sm:$0xff]
        %v1373 = vld [vmem:[%s975 + $0x30] sm:$0xff]
        %v1374 = vld [vmem:[%s975 + $0x38] sm:$0xff]
        %v1375 = vld [vmem:[%s975 + $0x40] sm:$0xff]
        %v1376 = vld [vmem:[%s975 + $0x48] sm:$0xff]
        %v1377 = vld [vmem:[%s975 + $0x50] sm:$0xff]
        %v1378 = vld [vmem:[%s975 + $0x58] sm:$0xff]
        %v1379 = vld [vmem:[%s975 + $0x60] sm:$0xff]
        %v1380 = vld [vmem:[%s975 + $0x68] sm:$0xff]
        %v1381 = vld [vmem:[%s975 + $0x70] sm:$0xff]
        %v1382 = vld [vmem:[%s975 + $0x78] sm:$0xff]
        %vm1383 = vcmask 7168
        %v1384 = vsel %vm1383, %v1367, 0.0
        %v1385 = vsel %vm1383, %v1368, 0.0
        %v1386 = vadd.f32 %v1384, %v1385
        %v1387 = vrot.slane %v1386, 4
        %v1388 = vadd.f32 %v1386, %v1387
        %v1389 = vrot.slane %v1388, 2
        %v1390 = vadd.f32 %v1388, %v1389
        %v1391 = vrot.slane %v1390, 1
        %v1392 = vadd.f32 %v1390, %v1391
        %v1393 = vsel %vm1383, %v1369, 0.0
        %v1394 = vsel %vm1383, %v1370, 0.0
        %v1395 = vadd.f32 %v1393, %v1394
        %v1396 = vrot.slane %v1395, 4
        %v1397 = vadd.f32 %v1395, %v1396
        %v1398 = vrot.slane %v1397, 2
        %v1399 = vadd.f32 %v1397, %v1398
        %v1400 = vrot.slane %v1399, 1
        %v1401 = vadd.f32 %v1399, %v1400
        %v1402 = vsel %vm1383, %v1371, 0.0
        %v1403 = vsel %vm1383, %v1372, 0.0
        %v1404 = vadd.f32 %v1402, %v1403
        %v1405 = vrot.slane %v1404, 4
        %v1406 = vadd.f32 %v1404, %v1405
        %v1407 = vrot.slane %v1406, 2
        %v1408 = vadd.f32 %v1406, %v1407
        %v1409 = vrot.slane %v1408, 1
        %v1410 = vadd.f32 %v1408, %v1409
        %v1411 = vsel %vm1383, %v1373, 0.0
        %v1412 = vsel %vm1383, %v1374, 0.0
        %v1413 = vadd.f32 %v1411, %v1412
        %v1414 = vrot.slane %v1413, 4
        %v1415 = vadd.f32 %v1413, %v1414
        %v1416 = vrot.slane %v1415, 2
        %v1417 = vadd.f32 %v1415, %v1416
        %v1418 = vrot.slane %v1417, 1
        %v1419 = vadd.f32 %v1417, %v1418
        %v1420 = vsel %vm1383, %v1375, 0.0
        %v1421 = vsel %vm1383, %v1376, 0.0
        %v1422 = vadd.f32 %v1420, %v1421
        %v1423 = vrot.slane %v1422, 4
        %v1424 = vadd.f32 %v1422, %v1423
        %v1425 = vrot.slane %v1424, 2
        %v1426 = vadd.f32 %v1424, %v1425
        %v1427 = vrot.slane %v1426, 1
        %v1428 = vadd.f32 %v1426, %v1427
        %v1429 = vsel %vm1383, %v1377, 0.0
        %v1430 = vsel %vm1383, %v1378, 0.0
        %v1431 = vadd.f32 %v1429, %v1430
        %v1432 = vrot.slane %v1431, 4
        %v1433 = vadd.f32 %v1431, %v1432
        %v1434 = vrot.slane %v1433, 2
        %v1435 = vadd.f32 %v1433, %v1434
        %v1436 = vrot.slane %v1435, 1
        %v1437 = vadd.f32 %v1435, %v1436
        %v1438 = vsel %vm1383, %v1379, 0.0
        %v1439 = vsel %vm1383, %v1380, 0.0
        %v1440 = vadd.f32 %v1438, %v1439
        %v1441 = vrot.slane %v1440, 4
        %v1442 = vadd.f32 %v1440, %v1441
        %v1443 = vrot.slane %v1442, 2
        %v1444 = vadd.f32 %v1442, %v1443
        %v1445 = vrot.slane %v1444, 1
        %v1446 = vadd.f32 %v1444, %v1445
        %v1447 = vsel %vm1383, %v1381, 0.0
        %v1448 = vsel %vm1383, %v1382, 0.0
        %v1449 = vadd.f32 %v1447, %v1448
        %v1450 = vrot.slane %v1449, 4
        %v1451 = vadd.f32 %v1449, %v1450
        %v1452 = vrot.slane %v1451, 2
        %v1453 = vadd.f32 %v1451, %v1452
        %v1454 = vrot.slane %v1453, 1
        %v1455 = vadd.f32 %v1453, %v1454
        %v1456 = vmax.f32 %v1392, 1.0
        %v1457 = vmax.f32 %v1401, 1.0
        %v1458 = vmax.f32 %v1410, 1.0
        %v1459 = vmax.f32 %v1419, 1.0
        %v1460 = vmax.f32 %v1428, 1.0
        %v1461 = vmax.f32 %v1437, 1.0
        %v1462 = vmax.f32 %v1446, 1.0
        %v1463 = vmax.f32 %v1455, 1.0
        %1465 = vset.pattern.permute.xlu0 0
        %1466 = vperm.xlu0 %1465, %v1367
        %v1467 = vpop.permute.xlu0 %1466
        %1470 = vset.pattern.permute.xlu0 0
        %1471 = vperm.xlu0 %1470, %v1368
        %v1472 = vpop.permute.xlu0 %1471
        %1475 = vset.pattern.permute.xlu0 0
        %1476 = vperm.xlu0 %1475, %v1369
        %v1477 = vpop.permute.xlu0 %1476
        %1480 = vset.pattern.permute.xlu0 0
        %1481 = vperm.xlu0 %1480, %v1370
        %v1482 = vpop.permute.xlu0 %1481
        %1485 = vset.pattern.permute.xlu0 0
        %1486 = vperm.xlu0 %1485, %v1371
        %v1487 = vpop.permute.xlu0 %1486
        %1490 = vset.pattern.permute.xlu0 0
        %1491 = vperm.xlu0 %1490, %v1372
        %v1492 = vpop.permute.xlu0 %1491
        %1495 = vset.pattern.permute.xlu0 0
        %1496 = vperm.xlu0 %1495, %v1373
        %v1497 = vpop.permute.xlu0 %1496
        %1500 = vset.pattern.permute.xlu0 0
        %1501 = vperm.xlu0 %1500, %v1374
        %v1502 = vpop.permute.xlu0 %1501
        %1505 = vset.pattern.permute.xlu0 0
        %1506 = vperm.xlu0 %1505, %v1375
        %v1507 = vpop.permute.xlu0 %1506
        %1510 = vset.pattern.permute.xlu0 0
        %1511 = vperm.xlu0 %1510, %v1376
        %v1512 = vpop.permute.xlu0 %1511
        %1515 = vset.pattern.permute.xlu0 0
        %1516 = vperm.xlu0 %1515, %v1377
        %v1517 = vpop.permute.xlu0 %1516
        %1520 = vset.pattern.permute.xlu0 0
        %1521 = vperm.xlu0 %1520, %v1378
        %v1522 = vpop.permute.xlu0 %1521
        %1525 = vset.pattern.permute.xlu0 0
        %1526 = vperm.xlu0 %1525, %v1379
        %v1527 = vpop.permute.xlu0 %1526
        %1530 = vset.pattern.permute.xlu0 0
        %1531 = vperm.xlu0 %1530, %v1380
        %v1532 = vpop.permute.xlu0 %1531
        %1535 = vset.pattern.permute.xlu0 0
        %1536 = vperm.xlu0 %1535, %v1381
        %v1537 = vpop.permute.xlu0 %1536
        %1540 = vset.pattern.permute.xlu0 0
        %1541 = vperm.xlu0 %1540, %v1382
        %v1542 = vpop.permute.xlu0 %1541
        %v1544 = vmul.f32 %v1351, %v1467
        %v1545 = vmul.f32 %v1352, %v1472
        %v1546 = vmul.f32 %v1353, %v1477
        %v1547 = vmul.f32 %v1354, %v1482
        %v1548 = vmul.f32 %v1355, %v1487
        %v1549 = vmul.f32 %v1356, %v1492
        %v1550 = vmul.f32 %v1357, %v1497
        %v1551 = vmul.f32 %v1358, %v1502
        %v1552 = vmul.f32 %v1359, %v1507
        %v1553 = vmul.f32 %v1360, %v1512
        %v1554 = vmul.f32 %v1361, %v1517
        %v1555 = vmul.f32 %v1362, %v1522
        %v1556 = vmul.f32 %v1363, %v1527
        %v1557 = vmul.f32 %v1364, %v1532
        %v1558 = vmul.f32 %v1365, %v1537
        %v1559 = vmul.f32 %v1366, %v1542
        %vm1560 = vcmask 523264
        %v1561 = vsel %vm1560, %v1544, 0.0
        %v1562 = vsel %vm1560, %v1545, 0.0
        %v1563 = vadd.f32 %v1561, %v1562
        %v1564 = vrot.slane %v1563, 4
        %v1565 = vadd.f32 %v1563, %v1564
        %v1566 = vrot.slane %v1565, 2
        %v1567 = vadd.f32 %v1565, %v1566
        %v1568 = vrot.slane %v1567, 1
        %v1569 = vadd.f32 %v1567, %v1568
        %v1570 = vsel %vm1560, %v1546, 0.0
        %v1571 = vsel %vm1560, %v1547, 0.0
        %v1572 = vadd.f32 %v1570, %v1571
        %v1573 = vrot.slane %v1572, 4
        %v1574 = vadd.f32 %v1572, %v1573
        %v1575 = vrot.slane %v1574, 2
        %v1576 = vadd.f32 %v1574, %v1575
        %v1577 = vrot.slane %v1576, 1
        %v1578 = vadd.f32 %v1576, %v1577
        %v1579 = vsel %vm1560, %v1548, 0.0
        %v1580 = vsel %vm1560, %v1549, 0.0
        %v1581 = vadd.f32 %v1579, %v1580
        %v1582 = vrot.slane %v1581, 4
        %v1583 = vadd.f32 %v1581, %v1582
        %v1584 = vrot.slane %v1583, 2
        %v1585 = vadd.f32 %v1583, %v1584
        %v1586 = vrot.slane %v1585, 1
        %v1587 = vadd.f32 %v1585, %v1586
        %v1588 = vsel %vm1560, %v1550, 0.0
        %v1589 = vsel %vm1560, %v1551, 0.0
        %v1590 = vadd.f32 %v1588, %v1589
        %v1591 = vrot.slane %v1590, 4
        %v1592 = vadd.f32 %v1590, %v1591
        %v1593 = vrot.slane %v1592, 2
        %v1594 = vadd.f32 %v1592, %v1593
        %v1595 = vrot.slane %v1594, 1
        %v1596 = vadd.f32 %v1594, %v1595
        %v1597 = vsel %vm1560, %v1552, 0.0
        %v1598 = vsel %vm1560, %v1553, 0.0
        %v1599 = vadd.f32 %v1597, %v1598
        %v1600 = vrot.slane %v1599, 4
        %v1601 = vadd.f32 %v1599, %v1600
        %v1602 = vrot.slane %v1601, 2
        %v1603 = vadd.f32 %v1601, %v1602
        %v1604 = vrot.slane %v1603, 1
        %v1605 = vadd.f32 %v1603, %v1604
        %v1606 = vsel %vm1560, %v1554, 0.0
        %v1607 = vsel %vm1560, %v1555, 0.0
        %v1608 = vadd.f32 %v1606, %v1607
        %v1609 = vrot.slane %v1608, 4
        %v1610 = vadd.f32 %v1608, %v1609
        %v1611 = vrot.slane %v1610, 2
        %v1612 = vadd.f32 %v1610, %v1611
        %v1613 = vrot.slane %v1612, 1
        %v1614 = vadd.f32 %v1612, %v1613
        %v1615 = vsel %vm1560, %v1556, 0.0
        %v1616 = vsel %vm1560, %v1557, 0.0
        %v1617 = vadd.f32 %v1615, %v1616
        %v1618 = vrot.slane %v1617, 4
        %v1619 = vadd.f32 %v1617, %v1618
        %v1620 = vrot.slane %v1619, 2
        %v1621 = vadd.f32 %v1619, %v1620
        %v1622 = vrot.slane %v1621, 1
        %v1623 = vadd.f32 %v1621, %v1622
        %v1624 = vsel %vm1560, %v1558, 0.0
        %v1625 = vsel %vm1560, %v1559, 0.0
        %v1626 = vadd.f32 %v1624, %v1625
        %v1627 = vrot.slane %v1626, 4
        %v1628 = vadd.f32 %v1626, %v1627
        %v1629 = vrot.slane %v1628, 2
        %v1630 = vadd.f32 %v1628, %v1629
        %v1631 = vrot.slane %v1630, 1
        %v1632 = vadd.f32 %v1630, %v1631
        %1634 = vset.pattern.permute.xlu0 0
        %1635 = vperm.xlu0 %1634, %v1456
        %v1636 = vpop.permute.xlu0 %1635
        %1639 = vset.pattern.permute.xlu0 0
        %1640 = vperm.xlu0 %1639, %v1457
        %v1641 = vpop.permute.xlu0 %1640
        %1644 = vset.pattern.permute.xlu0 0
        %1645 = vperm.xlu0 %1644, %v1458
        %v1646 = vpop.permute.xlu0 %1645
        %1649 = vset.pattern.permute.xlu0 0
        %1650 = vperm.xlu0 %1649, %v1459
        %v1651 = vpop.permute.xlu0 %1650
        %1654 = vset.pattern.permute.xlu0 0
        %1655 = vperm.xlu0 %1654, %v1460
        %v1656 = vpop.permute.xlu0 %1655
        %1659 = vset.pattern.permute.xlu0 0
        %1660 = vperm.xlu0 %1659, %v1461
        %v1661 = vpop.permute.xlu0 %1660
        %1664 = vset.pattern.permute.xlu0 0
        %1665 = vperm.xlu0 %1664, %v1462
        %v1666 = vpop.permute.xlu0 %1665
        %1669 = vset.pattern.permute.xlu0 0
        %1670 = vperm.xlu0 %1669, %v1463
        %v1671 = vpop.permute.xlu0 %1670
        %v1673 = vrcp.pop %v1636
        %v1674 = vmul.f32 %v1569, %v1673
        %v1675 = vrcp.pop %v1641
        %v1676 = vmul.f32 %v1578, %v1675
        %v1677 = vrcp.pop %v1646
        %v1678 = vmul.f32 %v1587, %v1677
        %v1679 = vrcp.pop %v1651
        %v1680 = vmul.f32 %v1596, %v1679
        %v1681 = vrcp.pop %v1656
        %v1682 = vmul.f32 %v1605, %v1681
        %v1683 = vrcp.pop %v1661
        %v1684 = vmul.f32 %v1614, %v1683
        %v1685 = vrcp.pop %v1666
        %v1686 = vmul.f32 %v1623, %v1685
        %v1687 = vrcp.pop %v1671
        %v1688 = vmul.f32 %v1632, %v1687
        %v1689 = vsub.f32 %v1351, %v1674
        %v1690 = vsub.f32 %v1352, %v1674
        %v1691 = vsub.f32 %v1353, %v1676
        %v1692 = vsub.f32 %v1354, %v1676
        %v1693 = vsub.f32 %v1355, %v1678
        %v1694 = vsub.f32 %v1356, %v1678
        %v1695 = vsub.f32 %v1357, %v1680
        %v1696 = vsub.f32 %v1358, %v1680
        %v1697 = vsub.f32 %v1359, %v1682
        %v1698 = vsub.f32 %v1360, %v1682
        %v1699 = vsub.f32 %v1361, %v1684
        %v1700 = vsub.f32 %v1362, %v1684
        %v1701 = vsub.f32 %v1363, %v1686
        %v1702 = vsub.f32 %v1364, %v1686
        %v1703 = vsub.f32 %v1365, %v1688
        %v1704 = vsub.f32 %v1366, %v1688
        %v1705 = vmul.f32 %v1689, %v1467
        %v1706 = vmul.f32 %v1690, %v1472
        %v1707 = vmul.f32 %v1691, %v1477
        %v1708 = vmul.f32 %v1692, %v1482
        %v1709 = vmul.f32 %v1693, %v1487
        %v1710 = vmul.f32 %v1694, %v1492
        %v1711 = vmul.f32 %v1695, %v1497
        %v1712 = vmul.f32 %v1696, %v1502
        %v1713 = vmul.f32 %v1697, %v1507
        %v1714 = vmul.f32 %v1698, %v1512
        %v1715 = vmul.f32 %v1699, %v1517
        %v1716 = vmul.f32 %v1700, %v1522
        %v1717 = vmul.f32 %v1701, %v1527
        %v1718 = vmul.f32 %v1702, %v1532
        %v1719 = vmul.f32 %v1703, %v1537
        %v1720 = vmul.f32 %v1704, %v1542
        %vm1721 = vcmp.le.f32.partialorder %v1392, 1.0
        %vm1722 = vcmp.le.f32.partialorder %v1401, 1.0
        %vm1723 = vcmp.le.f32.partialorder %v1410, 1.0
        %vm1724 = vcmp.le.f32.partialorder %v1419, 1.0
        %vm1725 = vcmp.le.f32.partialorder %v1428, 1.0
        %vm1726 = vcmp.le.f32.partialorder %v1437, 1.0
        %vm1727 = vcmp.le.f32.partialorder %v1446, 1.0
        %vm1728 = vcmp.le.f32.partialorder %v1455, 1.0
        %v1729 = vsel %vm1721, 2.0, %v1392
        %v1730 = vsel %vm1722, 2.0, %v1401
        %v1731 = vsel %vm1723, 2.0, %v1410
        %v1732 = vsel %vm1724, 2.0, %v1419
        %v1733 = vsel %vm1725, 2.0, %v1428
        %v1734 = vsel %vm1726, 2.0, %v1437
        %v1735 = vsel %vm1727, 2.0, %v1446
        %v1736 = vsel %vm1728, 2.0, %v1455
        %v1737 = vmul.f32 %v1705, %v1705
        %v1738 = vmul.f32 %v1706, %v1706
        %v1739 = vmul.f32 %v1707, %v1707
        %v1740 = vmul.f32 %v1708, %v1708
        %v1741 = vmul.f32 %v1709, %v1709
        %v1742 = vmul.f32 %v1710, %v1710
        %v1743 = vmul.f32 %v1711, %v1711
        %v1744 = vmul.f32 %v1712, %v1712
        %v1745 = vmul.f32 %v1713, %v1713
        %v1746 = vmul.f32 %v1714, %v1714
        %v1747 = vmul.f32 %v1715, %v1715
        %v1748 = vmul.f32 %v1716, %v1716
        %v1749 = vmul.f32 %v1717, %v1717
        %v1750 = vmul.f32 %v1718, %v1718
        %v1751 = vmul.f32 %v1719, %v1719
        %v1752 = vmul.f32 %v1720, %v1720
        %v1753 = vsel %vm1560, %v1737, 0.0
        %v1754 = vsel %vm1560, %v1738, 0.0
        %v1755 = vadd.f32 %v1753, %v1754
        %v1756 = vrot.slane %v1755, 4
        %v1757 = vadd.f32 %v1755, %v1756
        %v1758 = vrot.slane %v1757, 2
        %v1759 = vadd.f32 %v1757, %v1758
        %v1760 = vrot.slane %v1759, 1
        %v1761 = vadd.f32 %v1759, %v1760
        %v1762 = vsel %vm1560, %v1739, 0.0
        %v1763 = vsel %vm1560, %v1740, 0.0
        %v1764 = vadd.f32 %v1762, %v1763
        %v1765 = vrot.slane %v1764, 4
        %v1766 = vadd.f32 %v1764, %v1765
        %v1767 = vrot.slane %v1766, 2
        %v1768 = vadd.f32 %v1766, %v1767
        %v1769 = vrot.slane %v1768, 1
        %v1770 = vadd.f32 %v1768, %v1769
        %v1771 = vsel %vm1560, %v1741, 0.0
        %v1772 = vsel %vm1560, %v1742, 0.0
        %v1773 = vadd.f32 %v1771, %v1772
        %v1774 = vrot.slane %v1773, 4
        %v1775 = vadd.f32 %v1773, %v1774
        %v1776 = vrot.slane %v1775, 2
        %v1777 = vadd.f32 %v1775, %v1776
        %v1778 = vrot.slane %v1777, 1
        %v1779 = vadd.f32 %v1777, %v1778
        %v1780 = vsel %vm1560, %v1743, 0.0
        %v1781 = vsel %vm1560, %v1744, 0.0
        %v1782 = vadd.f32 %v1780, %v1781
        %v1783 = vrot.slane %v1782, 4
        %v1784 = vadd.f32 %v1782, %v1783
        %v1785 = vrot.slane %v1784, 2
        %v1786 = vadd.f32 %v1784, %v1785
        %v1787 = vrot.slane %v1786, 1
        %v1788 = vadd.f32 %v1786, %v1787
        %v1789 = vsel %vm1560, %v1745, 0.0
        %v1790 = vsel %vm1560, %v1746, 0.0
        %v1791 = vadd.f32 %v1789, %v1790
        %v1792 = vrot.slane %v1791, 4
        %v1793 = vadd.f32 %v1791, %v1792
        %v1794 = vrot.slane %v1793, 2
        %v1795 = vadd.f32 %v1793, %v1794
        %v1796 = vrot.slane %v1795, 1
        %v1797 = vadd.f32 %v1795, %v1796
        %v1798 = vsel %vm1560, %v1747, 0.0
        %v1799 = vsel %vm1560, %v1748, 0.0
        %v1800 = vadd.f32 %v1798, %v1799
        %v1801 = vrot.slane %v1800, 4
        %v1802 = vadd.f32 %v1800, %v1801
        %v1803 = vrot.slane %v1802, 2
        %v1804 = vadd.f32 %v1802, %v1803
        %v1805 = vrot.slane %v1804, 1
        %v1806 = vadd.f32 %v1804, %v1805
        %v1807 = vsel %vm1560, %v1749, 0.0
        %v1808 = vsel %vm1560, %v1750, 0.0
        %v1809 = vadd.f32 %v1807, %v1808
        %v1810 = vrot.slane %v1809, 4
        %v1811 = vadd.f32 %v1809, %v1810
        %v1812 = vrot.slane %v1811, 2
        %v1813 = vadd.f32 %v1811, %v1812
        %v1814 = vrot.slane %v1813, 1
        %v1815 = vadd.f32 %v1813, %v1814
        %v1816 = vsel %vm1560, %v1751, 0.0
        %v1817 = vsel %vm1560, %v1752, 0.0
        %v1818 = vadd.f32 %v1816, %v1817
        %v1819 = vrot.slane %v1818, 4
        %v1820 = vadd.f32 %v1818, %v1819
        %v1821 = vrot.slane %v1820, 2
        %v1822 = vadd.f32 %v1820, %v1821
        %v1823 = vrot.slane %v1822, 1
        %v1824 = vadd.f32 %v1822, %v1823
        %v1825 = vsub.f32 %v1729, 1.0
        %v1826 = vsub.f32 %v1730, 1.0
        %v1827 = vsub.f32 %v1731, 1.0
        %v1828 = vsub.f32 %v1732, 1.0
        %v1829 = vsub.f32 %v1733, 1.0
        %v1830 = vsub.f32 %v1734, 1.0
        %v1831 = vsub.f32 %v1735, 1.0
        %v1832 = vsub.f32 %v1736, 1.0
        %1834 = vset.pattern.permute.xlu0 0
        %1835 = vperm.xlu0 %1834, %v1825
        %v1836 = vpop.permute.xlu0 %1835
        %1839 = vset.pattern.permute.xlu0 0
        %1840 = vperm.xlu0 %1839, %v1826
        %v1841 = vpop.permute.xlu0 %1840
        %1844 = vset.pattern.permute.xlu0 0
        %1845 = vperm.xlu0 %1844, %v1827
        %v1846 = vpop.permute.xlu0 %1845
        %1849 = vset.pattern.permute.xlu0 0
        %1850 = vperm.xlu0 %1849, %v1828
        %v1851 = vpop.permute.xlu0 %1850
        %1854 = vset.pattern.permute.xlu0 0
        %1855 = vperm.xlu0 %1854, %v1829
        %v1856 = vpop.permute.xlu0 %1855
        %1859 = vset.pattern.permute.xlu0 0
        %1860 = vperm.xlu0 %1859, %v1830
        %v1861 = vpop.permute.xlu0 %1860
        %1864 = vset.pattern.permute.xlu0 0
        %1865 = vperm.xlu0 %1864, %v1831
        %v1866 = vpop.permute.xlu0 %1865
        %1869 = vset.pattern.permute.xlu0 0
        %1870 = vperm.xlu0 %1869, %v1832
        %v1871 = vpop.permute.xlu0 %1870
        %v1873 = vrcp.pop %v1836
        %v1874 = vmul.f32 %v1761, %v1873
        %v1875 = vrcp.pop %v1841
        %v1876 = vmul.f32 %v1770, %v1875
        %v1877 = vrcp.pop %v1846
        %v1878 = vmul.f32 %v1779, %v1877
        %v1879 = vrcp.pop %v1851
        %v1880 = vmul.f32 %v1788, %v1879
        %v1881 = vrcp.pop %v1856
        %v1882 = vmul.f32 %v1797, %v1881
        %v1883 = vrcp.pop %v1861
        %v1884 = vmul.f32 %v1806, %v1883
        %v1885 = vrcp.pop %v1866
        %v1886 = vmul.f32 %v1815, %v1885
        %v1887 = vrcp.pop %v1871
        %v1888 = vmul.f32 %v1824, %v1887
        %v1889 = vadd.f32 %v1874, 1e-31
        %v1890 = vadd.f32 %v1876, 1e-31
        %v1891 = vadd.f32 %v1878, 1e-31
        %v1892 = vadd.f32 %v1880, 1e-31
        %v1893 = vadd.f32 %v1882, 1e-31
        %v1894 = vadd.f32 %v1884, 1e-31
        %v1895 = vadd.f32 %v1886, 1e-31
        %v1896 = vadd.f32 %v1888, 1e-31
        %v1897 = vrsqrt.pop %v1889
        %v1898 = vmul.f32 %v1889, %v1897
        %vm1899 = vcmp.eq.f32.partialorder %v1889, inf
        %v1900 = vsel %vm1899, %v1889, %v1898
        %vm1901 = vcmp.eq.f32.partialorder %v1889, 0.0
        %v1902 = vand.u32 %v1889, 2147483648
        %v1903 = vsel %vm1901, %v1902, %v1900
        %v1904 = vrsqrt.pop %v1890
        %v1905 = vmul.f32 %v1890, %v1904
        %vm1906 = vcmp.eq.f32.partialorder %v1890, inf
        %v1907 = vsel %vm1906, %v1890, %v1905
        %vm1908 = vcmp.eq.f32.partialorder %v1890, 0.0
        %v1909 = vand.u32 %v1890, 2147483648
        %v1910 = vsel %vm1908, %v1909, %v1907
        %v1911 = vrsqrt.pop %v1891
        %v1912 = vmul.f32 %v1891, %v1911
        %vm1913 = vcmp.eq.f32.partialorder %v1891, inf
        %v1914 = vsel %vm1913, %v1891, %v1912
        %vm1915 = vcmp.eq.f32.partialorder %v1891, 0.0
        %v1916 = vand.u32 %v1891, 2147483648
        %v1917 = vsel %vm1915, %v1916, %v1914
        %v1918 = vrsqrt.pop %v1892
        %v1919 = vmul.f32 %v1892, %v1918
        %vm1920 = vcmp.eq.f32.partialorder %v1892, inf
        %v1921 = vsel %vm1920, %v1892, %v1919
        %vm1922 = vcmp.eq.f32.partialorder %v1892, 0.0
        %v1923 = vand.u32 %v1892, 2147483648
        %v1924 = vsel %vm1922, %v1923, %v1921
        %v1925 = vrsqrt.pop %v1893
        %v1926 = vmul.f32 %v1893, %v1925
        %vm1927 = vcmp.eq.f32.partialorder %v1893, inf
        %v1928 = vsel %vm1927, %v1893, %v1926
        %vm1929 = vcmp.eq.f32.partialorder %v1893, 0.0
        %v1930 = vand.u32 %v1893, 2147483648
        %v1931 = vsel %vm1929, %v1930, %v1928
        %v1932 = vrsqrt.pop %v1894
        %v1933 = vmul.f32 %v1894, %v1932
        %vm1934 = vcmp.eq.f32.partialorder %v1894, inf
        %v1935 = vsel %vm1934, %v1894, %v1933
        %vm1936 = vcmp.eq.f32.partialorder %v1894, 0.0
        %v1937 = vand.u32 %v1894, 2147483648
        %v1938 = vsel %vm1936, %v1937, %v1935
        %v1939 = vrsqrt.pop %v1895
        %v1940 = vmul.f32 %v1895, %v1939
        %vm1941 = vcmp.eq.f32.partialorder %v1895, inf
        %v1942 = vsel %vm1941, %v1895, %v1940
        %vm1943 = vcmp.eq.f32.partialorder %v1895, 0.0
        %v1944 = vand.u32 %v1895, 2147483648
        %v1945 = vsel %vm1943, %v1944, %v1942
        %v1946 = vrsqrt.pop %v1896
        %v1947 = vmul.f32 %v1896, %v1946
        %vm1948 = vcmp.eq.f32.partialorder %v1896, inf
        %v1949 = vsel %vm1948, %v1896, %v1947
        %vm1950 = vcmp.eq.f32.partialorder %v1896, 0.0
        %v1951 = vand.u32 %v1896, 2147483648
        %v1952 = vsel %vm1950, %v1951, %v1949
        %v1953 = vld [vmem:[%s979] sm:$0xf]
        %v1954 = vpack.c.bf16 %v1674, %v1674
        %v1955 = vpack.c.bf16 %v1676, %v1676
        %v1956 = vpack.c.bf16 %v1678, %v1678
        %v1957 = vpack.c.bf16 %v1680, %v1680
        %v1958 = vpack.c.bf16 %v1682, %v1682
        %v1959 = vpack.c.bf16 %v1684, %v1684
        %v1960 = vpack.c.bf16 %v1686, %v1686
        %v1961 = vpack.c.bf16 %v1688, %v1688
        %v1962 = vld [vmem:[%s17] sm:$0xf]
        %v1963 = vld [vmem:[%s17 + $0x4] sm:$0xf]
        %v1964 = vld [vmem:[%s17 + $0x8] sm:$0xf]
        %v1965 = vld [vmem:[%s17 + $0xc] sm:$0xf]
        %v1966 = vld [vmem:[%s17 + $0x10] sm:$0xf]
        %v1967 = vld [vmem:[%s17 + $0x14] sm:$0xf]
        %v1968 = vld [vmem:[%s17 + $0x18] sm:$0xf]
        %v1969 = vld [vmem:[%s17 + $0x1c] sm:$0xf]
        %v1970 = vpack.c.bf16 %v1903, %v1903
        %v1971 = vpack.c.bf16 %v1910, %v1910
        %v1972 = vpack.c.bf16 %v1917, %v1917
        %v1973 = vpack.c.bf16 %v1924, %v1924
        %v1974 = vpack.c.bf16 %v1931, %v1931
        %v1975 = vpack.c.bf16 %v1938, %v1938
        %v1976 = vpack.c.bf16 %v1945, %v1945
        %v1977 = vpack.c.bf16 %v1952, %v1952
        %v1978 = vld [vmem:[%s19] sm:$0xf]
        %v1979 = vld [vmem:[%s19 + $0x4] sm:$0xf]
        %v1980 = vld [vmem:[%s19 + $0x8] sm:$0xf]
        %v1981 = vld [vmem:[%s19 + $0xc] sm:$0xf]
        %v1982 = vld [vmem:[%s19 + $0x10] sm:$0xf]
        %v1983 = vld [vmem:[%s19 + $0x14] sm:$0xf]
        %v1984 = vld [vmem:[%s19 + $0x18] sm:$0xf]
        %v1985 = vld [vmem:[%s19 + $0x1c] sm:$0xf]
        %v1994 = vunpack.c.l.b16 %v1970
        %v1995 = vunpack.c.l.b16 %v1971
        %v1996 = vunpack.c.l.b16 %v1972
        %v1997 = vunpack.c.l.b16 %v1973
        %v1998 = vunpack.c.l.b16 %v1974
        %v1999 = vunpack.c.l.b16 %v1975
        %v2000 = vunpack.c.l.b16 %v1976
        %v2001 = vunpack.c.l.b16 %v1977
        %vm2002 = vcmask 1041409
        %v2003 = vsel %vm2002, %v1995, %v1994
        %vm2004 = vcmask 1042434
        %v2005 = vsel %vm2004, %v1996, %v2003
        %vm2006 = vcmask 1043459
        %v2007 = vsel %vm2006, %v1997, %v2005
        %vm2008 = vcmask 1044484
        %v2009 = vsel %vm2008, %v1998, %v2007
        %vm2010 = vcmask 1045509
        %v2011 = vsel %vm2010, %v1999, %v2009
        %vm2012 = vcmask 1046534
        %v2013 = vsel %vm2012, %v2000, %v2011
        %vm2014 = vcmask 1047559
        %v2015 = vsel %vm2014, %v2001, %v2013
        %v2016 = vpack.c.b16 %v2015, %v2015
        %v2025 = vunpack.c.l.b16 %v1978
        %v2026 = vunpack.c.l.b16 %v1979
        %v2027 = vunpack.c.l.b16 %v1980
        %v2028 = vunpack.c.l.b16 %v1981
        %v2029 = vunpack.c.l.b16 %v1982
        %v2030 = vunpack.c.l.b16 %v1983
        %v2031 = vunpack.c.l.b16 %v1984
        %v2032 = vunpack.c.l.b16 %v1985
        %v2033 = vpack.c.b16 %v2026, %v2025
        %v2034 = vpack.c.b16 %v2028, %v2027
        %v2035 = vpack.c.b16 %v2030, %v2029
        %v2036 = vpack.c.b16 %v2032, %v2031
        %v2042 = vsel %vm1560, %v2016, 0
        %2044 = vmatprep.subr.bf16.mxu0 0
        %2045 = vmatpush1.bf16.msra.mxu0 %v2033
        %2046 = vmatprep.subr.bf16.mxu0 0
        %2047 = vmatpush1.bf16.msra.mxu0 %v2034
        %2048 = vmatprep.subr.bf16.mxu0 0
        %2049 = vmatpush1.bf16.msra.mxu0 %v2035
        %2050 = vmatprep.subr.bf16.mxu0 0
        %2051 = vmatpush1.bf16.msra.mxu0 %v2036
        %2052 = vmatprep.subr.bf16.mxu0 0
        %2053 = vmatpush1.bf16.msra.mxu0 0
        %2054 = vmatprep.subr.bf16.mxu0 0
        %2055 = vmatpush1.bf16.msra.mxu0 0
        %2056 = vmatprep.subr.bf16.mxu0 0
        %2057 = vmatpush1.bf16.msra.mxu0 0
        %2058 = vmatprep.subr.bf16.mxu0 0
        %2059 = vmatpush1.bf16.msra.mxu0 0
        %2060 = vmatprep.subr.bf16.mxu0 0
        %2061 = vmatpush1.bf16.msra.mxu0 0
        %2062 = vmatprep.subr.bf16.mxu0 0
        %2063 = vmatpush1.bf16.msra.mxu0 0
        %2064 = vmatprep.subr.bf16.mxu0 0
        %2065 = vmatpush1.bf16.msra.mxu0 0
        %2066 = vmatprep.subr.bf16.mxu0 0
        %2067 = vmatpush1.bf16.msra.mxu0 0
        %2068 = vmatprep.subr.bf16.mxu0 0
        %2069 = vmatpush1.bf16.msra.mxu0 0
        %2070 = vmatprep.subr.bf16.mxu0 0
        %2071 = vmatpush1.bf16.msra.mxu0 0
        %2072 = vmatprep.subr.bf16.mxu0 0
        %2073 = vmatpush1.bf16.msra.mxu0 0
        %2074 = vmatprep.subr.bf16.mxu0 0
        %2075 = vmatpush1.bf16.msra.mxu0 0
        %2076 = vmatprep.mubr.bf16.mxu0 0
        %2077 = vmatmul.mubr.bf16.gmra.mrb[0].mxu0 %v2042
        %v2078 = vpop.f32.mrb[0].mxu0
        %v2079 = vadd.f32 0.0, %v2078
        %v2080 = vpop.f32.mrb[0].mxu0
        %v2081 = vpop.f32.mrb[0].mxu0
        %v2082 = vpop.f32.mrb[0].mxu0
        %2083 = vdwg.mxu0
        %v2092 = vunpack.c.l.b16 %v1954
        %v2093 = vunpack.c.l.b16 %v1955
        %v2094 = vunpack.c.l.b16 %v1956
        %v2095 = vunpack.c.l.b16 %v1957
        %v2096 = vunpack.c.l.b16 %v1958
        %v2097 = vunpack.c.l.b16 %v1959
        %v2098 = vunpack.c.l.b16 %v1960
        %v2099 = vunpack.c.l.b16 %v1961
        %v2100 = vsel %vm2002, %v2093, %v2092
        %v2101 = vsel %vm2004, %v2094, %v2100
        %v2102 = vsel %vm2006, %v2095, %v2101
        %v2103 = vsel %vm2008, %v2096, %v2102
        %v2104 = vsel %vm2010, %v2097, %v2103
        %v2105 = vsel %vm2012, %v2098, %v2104
        %v2106 = vsel %vm2014, %v2099, %v2105
        %v2107 = vpack.c.b16 %v2106, %v2106
        %v2116 = vunpack.c.l.b16 %v1962
        %v2117 = vunpack.c.l.b16 %v1963
        %v2118 = vunpack.c.l.b16 %v1964
        %v2119 = vunpack.c.l.b16 %v1965
        %v2120 = vunpack.c.l.b16 %v1966
        %v2121 = vunpack.c.l.b16 %v1967
        %v2122 = vunpack.c.l.b16 %v1968
        %v2123 = vunpack.c.l.b16 %v1969
        %v2124 = vpack.c.b16 %v2117, %v2116
        %v2125 = vpack.c.b16 %v2119, %v2118
        %v2126 = vpack.c.b16 %v2121, %v2120
        %v2127 = vpack.c.b16 %v2123, %v2122
        %v2133 = vsel %vm1560, %v2107, 0
        %2135 = vmatprep.subr.bf16.mxu0 0
        %2136 = vmatpush1.bf16.msra.mxu0 %v2124
        %2137 = vmatprep.subr.bf16.mxu0 0
        %2138 = vmatpush1.bf16.msra.mxu0 %v2125
        %2139 = vmatprep.subr.bf16.mxu0 0
        %2140 = vmatpush1.bf16.msra.mxu0 %v2126
        %2141 = vmatprep.subr.bf16.mxu0 0
        %2142 = vmatpush1.bf16.msra.mxu0 %v2127
        %2143 = vmatprep.subr.bf16.mxu0 0
        %2144 = vmatpush1.bf16.msra.mxu0 0
        %2145 = vmatprep.subr.bf16.mxu0 0
        %2146 = vmatpush1.bf16.msra.mxu0 0
        %2147 = vmatprep.subr.bf16.mxu0 0
        %2148 = vmatpush1.bf16.msra.mxu0 0
        %2149 = vmatprep.subr.bf16.mxu0 0
        %2150 = vmatpush1.bf16.msra.mxu0 0
        %2151 = vmatprep.subr.bf16.mxu0 0
        %2152 = vmatpush1.bf16.msra.mxu0 0
        %2153 = vmatprep.subr.bf16.mxu0 0
        %2154 = vmatpush1.bf16.msra.mxu0 0
        %2155 = vmatprep.subr.bf16.mxu0 0
        %2156 = vmatpush1.bf16.msra.mxu0 0
        %2157 = vmatprep.subr.bf16.mxu0 0
        %2158 = vmatpush1.bf16.msra.mxu0 0
        %2159 = vmatprep.subr.bf16.mxu0 0
        %2160 = vmatpush1.bf16.msra.mxu0 0
        %2161 = vmatprep.subr.bf16.mxu0 0
        %2162 = vmatpush1.bf16.msra.mxu0 0
        %2163 = vmatprep.subr.bf16.mxu0 0
        %2164 = vmatpush1.bf16.msra.mxu0 0
        %2165 = vmatprep.subr.bf16.mxu0 0
        %2166 = vmatpush1.bf16.msra.mxu0 0
        %2167 = vmatprep.mubr.bf16.mxu0 0
        %2168 = vmatmul.mubr.bf16.gmra.mrb[0].mxu0 %v2133
        %v2169 = vpop.f32.mrb[0].mxu0
        %v2170 = vadd.f32 %v2079, %v2169
        %v2171 = vpop.f32.mrb[0].mxu0
        %v2172 = vpop.f32.mrb[0].mxu0
        %v2173 = vpop.f32.mrb[0].mxu0
        %2174 = vdwg.mxu0
        %v2175 = vld [vmem:[%s21] sm:$0x3]
        %vm2176 = vcmask 31744
        %v2178 = vsel %vm2176, %v1953, 0
        %vm2180 = vcmask 1041408
        %v2182 = vsel %vm2180, %v2175, 0
        %2184 = vmatprep.subr.bf16.mxu0 0
        %2185 = vmatpush1.bf16.msra.mxu0 %v2182
        %2186 = vmatprep.subr.bf16.mxu0 0
        %2187 = vmatpush1.bf16.msra.mxu0 0
        %2188 = vmatprep.subr.bf16.mxu0 0
        %2189 = vmatpush1.bf16.msra.mxu0 0
        %2190 = vmatprep.subr.bf16.mxu0 0
        %2191 = vmatpush1.bf16.msra.mxu0 0
        %2192 = vmatprep.subr.bf16.mxu0 0
        %2193 = vmatpush1.bf16.msra.mxu0 0
        %2194 = vmatprep.subr.bf16.mxu0 0
        %2195 = vmatpush1.bf16.msra.mxu0 0
        %2196 = vmatprep.subr.bf16.mxu0 0
        %2197 = vmatpush1.bf16.msra.mxu0 0
        %2198 = vmatprep.subr.bf16.mxu0 0
        %2199 = vmatpush1.bf16.msra.mxu0 0
        %2200 = vmatprep.subr.bf16.mxu0 0
        %2201 = vmatpush1.bf16.msra.mxu0 0
        %2202 = vmatprep.subr.bf16.mxu0 0
        %2203 = vmatpush1.bf16.msra.mxu0 0
        %2204 = vmatprep.subr.bf16.mxu0 0
        %2205 = vmatpush1.bf16.msra.mxu0 0
        %2206 = vmatprep.subr.bf16.mxu0 0
        %2207 = vmatpush1.bf16.msra.mxu0 0
        %2208 = vmatprep.subr.bf16.mxu0 0
        %2209 = vmatpush1.bf16.msra.mxu0 0
        %2210 = vmatprep.subr.bf16.mxu0 0
        %2211 = vmatpush1.bf16.msra.mxu0 0
        %2212 = vmatprep.subr.bf16.mxu0 0
        %2213 = vmatpush1.bf16.msra.mxu0 0
        %2214 = vmatprep.subr.bf16.mxu0 0
        %2215 = vmatpush1.bf16.msra.mxu0 0
        %2216 = vmatprep.mubr.bf16.mxu0 0
        %2217 = vmatmul.mubr.bf16.gmra.mrb[0].mxu0 %v2178
        %v2218 = vpop.f32.mrb[0].mxu0
        %v2219 = vadd.f32 0.0, %v2218
        %v2220 = vpop.f32.mrb[0].mxu0
        %v2221 = vpop.f32.mrb[0].mxu0
        %v2222 = vpop.f32.mrb[0].mxu0
        %2223 = vdwg.mxu0
        %v2224 = vadd.f32 %v2170, %v2219
        %v2225 = vld [vmem:[%s23] sm:$0x1]
        %v2227 = vlaneseq
        %v2228 = vshrl.u32 %v2227, 7
        %v2229 = vsub.s32 0, %v2228
        %v2230 = vrot.slane %v2225, %v2229
        %v2232 = vadd.f32 %v2224, %v2230
        %2233 = vadd.xlane.f32.xlu0 %v2232
        %v2234 = vpop.xlane.xlu0 %2233
        %v2235 = vrcp.pop 128.0
        %v2236 = vmul.f32 %v2234, %v2235
        %v2237 = vsub.f32 %v2232, %v2236
        %v2238 = vmul.f32 %v2237, %v2237
        %2239 = vadd.xlane.f32.xlu0 %v2238
        %v2240 = vpop.xlane.xlu0 %2239
        %v2241 = vmul.f32 %v2240, %v2235
        %v2242 = vadd.f32 %v2241, 1e-05
        %v2243 = vrsqrt.pop %v2242
        %v2244 = vmul.f32 %v2237, %v2243
        %v2245 = vld [vmem:[%s25] sm:$0x1]
        %v2247 = vlaneseq
        %v2248 = vshrl.u32 %v2247, 7
        %v2249 = vsub.s32 0, %v2248
        %v2250 = vrot.slane %v2245, %v2249
        %v2252 = vmul.f32 %v2244, %v2250
        %v2253 = vld [vmem:[%s27] sm:$0x1]
        %v2255 = vlaneseq
        %v2256 = vshrl.u32 %v2255, 7
        %v2257 = vsub.s32 0, %v2256
        %v2258 = vrot.slane %v2253, %v2257
        %v2260 = vadd.f32 %v2252, %v2258
        %v2261 = vpack.c.bf16 %v2260, %v2260
        %v2262 = vld [vmem:[%s29] sm:$0xff]
        %v2263 = vld [vmem:[%s29 + $0x8] sm:$0xff]
        %v2264 = vld [vmem:[%s29 + $0x10] sm:$0xff]
        %v2265 = vld [vmem:[%s29 + $0x18] sm:$0xff]
        %v2266 = vld [vmem:[%s29 + $0x20] sm:$0xff]
        %v2267 = vld [vmem:[%s29 + $0x28] sm:$0xff]
        %v2268 = vld [vmem:[%s29 + $0x30] sm:$0xff]
        %v2269 = vld [vmem:[%s29 + $0x38] sm:$0xff]
        %v2270 = vld [vmem:[%s29 + $0x40] sm:$0xff]
        %v2271 = vld [vmem:[%s29 + $0x48] sm:$0xff]
        %v2272 = vld [vmem:[%s29 + $0x50] sm:$0xff]
        %v2273 = vld [vmem:[%s29 + $0x58] sm:$0xff]
        %v2274 = vld [vmem:[%s29 + $0x60] sm:$0xff]
        %v2275 = vld [vmem:[%s29 + $0x68] sm:$0xff]
        %v2276 = vld [vmem:[%s29 + $0x70] sm:$0xff]
        %v2277 = vld [vmem:[%s29 + $0x78] sm:$0xff]
        %v2278 = vld [vmem:[%s31] sm:$0x3]
        %v2280 = vlaneseq
        %v2281 = vshrl.u32 %v2280, 7
        %v2282 = vsub.s32 0, %v2281
        %v2283 = vrot.slane %v2278, %v2282
        %v2284 = vlaneseq
        %v2285 = vshrl.u32 %v2284, 7
        %v2286 = vsub.s32 1, %v2285
        %v2287 = vrot.slane %v2278, %v2286
        %v2306 = vunpack.c.l.b16 %v2262
        %v2307 = vunpack.c.h.b16 %v2262
        %v2308 = vunpack.c.l.b16 %v2263
        %v2309 = vunpack.c.h.b16 %v2263
        %v2310 = vunpack.c.l.b16 %v2264
        %v2311 = vunpack.c.h.b16 %v2264
        %v2312 = vunpack.c.l.b16 %v2265
        %v2313 = vunpack.c.h.b16 %v2265
        %v2314 = vunpack.c.l.b16 %v2266
        %v2315 = vunpack.c.h.b16 %v2266
        %v2316 = vunpack.c.l.b16 %v2267
        %v2317 = vunpack.c.h.b16 %v2267
        %v2318 = vunpack.c.l.b16 %v2268
        %v2319 = vunpack.c.h.b16 %v2268
        %v2320 = vunpack.c.l.b16 %v2269
        %v2321 = vunpack.c.h.b16 %v2269
        %v2322 = vunpack.c.l.b16 %v2270
        %v2323 = vunpack.c.h.b16 %v2270
        %v2324 = vunpack.c.l.b16 %v2271
        %v2325 = vunpack.c.h.b16 %v2271
        %v2326 = vunpack.c.l.b16 %v2272
        %v2327 = vunpack.c.h.b16 %v2272
        %v2328 = vunpack.c.l.b16 %v2273
        %v2329 = vunpack.c.h.b16 %v2273
        %v2330 = vunpack.c.l.b16 %v2274
        %v2331 = vunpack.c.h.b16 %v2274
        %v2332 = vunpack.c.l.b16 %v2275
        %v2333 = vunpack.c.h.b16 %v2275
        %v2334 = vunpack.c.l.b16 %v2276
        %v2335 = vunpack.c.h.b16 %v2276
        %v2336 = vunpack.c.l.b16 %v2277
        %v2337 = vunpack.c.h.b16 %v2277
        %v2338 = vpack.c.b16 %v2308, %v2306
        %v2339 = vpack.c.b16 %v2309, %v2307
        %v2340 = vpack.c.b16 %v2312, %v2310
        %v2341 = vpack.c.b16 %v2313, %v2311
        %v2342 = vpack.c.b16 %v2316, %v2314
        %v2343 = vpack.c.b16 %v2317, %v2315
        %v2344 = vpack.c.b16 %v2320, %v2318
        %v2345 = vpack.c.b16 %v2321, %v2319
        %v2346 = vpack.c.b16 %v2324, %v2322
        %v2347 = vpack.c.b16 %v2325, %v2323
        %v2348 = vpack.c.b16 %v2328, %v2326
        %v2349 = vpack.c.b16 %v2329, %v2327
        %v2350 = vpack.c.b16 %v2332, %v2330
        %v2351 = vpack.c.b16 %v2333, %v2331
        %v2352 = vpack.c.b16 %v2336, %v2334
        %v2353 = vpack.c.b16 %v2337, %v2335
        %2370 = vmatprep.subr.bf16.mxu0 %v2339
        %2371 = vmatpush1.bf16.msra.mxu0 %v2338
        %2372 = vmatprep.subr.bf16.mxu0 %v2341
        %2373 = vmatpush1.bf16.msra.mxu0 %v2340
        %2374 = vmatprep.subr.bf16.mxu0 %v2343
        %2375 = vmatpush1.bf16.msra.mxu0 %v2342
        %2376 = vmatprep.subr.bf16.mxu0 %v2345
        %2377 = vmatpush1.bf16.msra.mxu0 %v2344
        %2378 = vmatprep.subr.bf16.mxu0 %v2347
        %2379 = vmatpush1.bf16.msra.mxu0 %v2346
        %2380 = vmatprep.subr.bf16.mxu0 %v2349
        %2381 = vmatpush1.bf16.msra.mxu0 %v2348
        %2382 = vmatprep.subr.bf16.mxu0 %v2351
        %2383 = vmatpush1.bf16.msra.mxu0 %v2350
        %2384 = vmatprep.subr.bf16.mxu0 %v2353
        %2385 = vmatpush1.bf16.msra.mxu0 %v2352
        %2386 = vmatprep.subr.bf16.mxu0 0
        %2387 = vmatpush1.bf16.msra.mxu0 0
        %2388 = vmatprep.subr.bf16.mxu0 0
        %2389 = vmatpush1.bf16.msra.mxu0 0
        %2390 = vmatprep.subr.bf16.mxu0 0
        %2391 = vmatpush1.bf16.msra.mxu0 0
        %2392 = vmatprep.subr.bf16.mxu0 0
        %2393 = vmatpush1.bf16.msra.mxu0 0
        %2394 = vmatprep.subr.bf16.mxu0 0
        %2395 = vmatpush1.bf16.msra.mxu0 0
        %2396 = vmatprep.subr.bf16.mxu0 0
        %2397 = vmatpush1.bf16.msra.mxu0 0
        %2398 = vmatprep.subr.bf16.mxu0 0
        %2399 = vmatpush1.bf16.msra.mxu0 0
        %2400 = vmatprep.subr.bf16.mxu0 0
        %2401 = vmatpush1.bf16.msra.mxu0 0
        %2402 = vmatprep.mubr.bf16.mxu0 0
        %2403 = vmatmul.mubr.bf16.gmra.mrb[0].mxu0 %v2261
        %v2404 = vpop.f32.mrb[0].mxu0
        %v2405 = vadd.f32 %v2283, %v2404
        %v2406 = vpop.f32.mrb[0].mxu0
        %v2407 = vadd.f32 %v2287, %v2406
        %v2408 = vpop.f32.mrb[0].mxu0
        %v2409 = vpop.f32.mrb[0].mxu0
        %2410 = vdwg.mxu0
        %v2411 = vld [vmem:[%s984] sm:$0xff]
        %v2412 = vld [vmem:[%s984 + $0x8] sm:$0xff]
        %v2413 = vadd.f32 %v2405, %v2411
        %v2414 = vadd.f32 %v2407, %v2412
        %v2415 = vpack.c.bf16 %v2413, %v2413
        %v2416 = vpack.c.bf16 %v2414, %v2414
        %v2417 = vld [vmem:[%s33] sm:$0xf]
        %v2418 = vld [vmem:[%s33 + $0x4] sm:$0xf]
        %v2419 = vld [vmem:[%s33 + $0x8] sm:$0xf]
        %v2420 = vld [vmem:[%s33 + $0xc] sm:$0xf]
        %v2421 = vld [vmem:[%s33 + $0x10] sm:$0xf]
        %v2422 = vld [vmem:[%s33 + $0x14] sm:$0xf]
        %v2423 = vld [vmem:[%s33 + $0x18] sm:$0xf]
        %v2424 = vld [vmem:[%s33 + $0x1c] sm:$0xf]
        %v2425 = vld [vmem:[%s33 + $0x20] sm:$0xf]
        %v2426 = vld [vmem:[%s33 + $0x24] sm:$0xf]
        %v2427 = vld [vmem:[%s33 + $0x28] sm:$0xf]
        %v2428 = vld [vmem:[%s33 + $0x2c] sm:$0xf]
        %v2429 = vld [vmem:[%s33 + $0x30] sm:$0xf]
        %v2430 = vld [vmem:[%s33 + $0x34] sm:$0xf]
        %v2431 = vld [vmem:[%s33 + $0x38] sm:$0xf]
        %v2432 = vld [vmem:[%s33 + $0x3c] sm:$0xf]
        %v2433 = vld [vmem:[%s33 + $0x40] sm:$0xf]
        %v2434 = vld [vmem:[%s33 + $0x44] sm:$0xf]
        %v2435 = vld [vmem:[%s33 + $0x48] sm:$0xf]
        %v2436 = vld [vmem:[%s33 + $0x4c] sm:$0xf]
        %v2437 = vld [vmem:[%s33 + $0x50] sm:$0xf]
        %v2438 = vld [vmem:[%s33 + $0x54] sm:$0xf]
        %v2439 = vld [vmem:[%s33 + $0x58] sm:$0xf]
        %v2440 = vld [vmem:[%s33 + $0x5c] sm:$0xf]
        %v2441 = vld [vmem:[%s33 + $0x60] sm:$0xf]
        %v2442 = vld [vmem:[%s33 + $0x64] sm:$0xf]
        %v2443 = vld [vmem:[%s33 + $0x68] sm:$0xf]
        %v2444 = vld [vmem:[%s33 + $0x6c] sm:$0xf]
        %v2445 = vld [vmem:[%s33 + $0x70] sm:$0xf]
        %v2446 = vld [vmem:[%s33 + $0x74] sm:$0xf]
        %v2447 = vld [vmem:[%s33 + $0x78] sm:$0xf]
        %v2448 = vld [vmem:[%s33 + $0x7c] sm:$0xf]
        %v2449 = vld [vmem:[%s35] sm:$0x1]
        %v2451 = vlaneseq
        %v2452 = vshrl.u32 %v2451, 7
        %v2453 = vsub.s32 0, %v2452
        %v2454 = vrot.slane %v2449, %v2453
        %v2488 = vunpack.c.l.b16 %v2417
        %v2489 = vunpack.c.l.b16 %v2418
        %v2490 = vunpack.c.l.b16 %v2419
        %v2491 = vunpack.c.l.b16 %v2420
        %v2492 = vunpack.c.l.b16 %v2421
        %v2493 = vunpack.c.l.b16 %v2422
        %v2494 = vunpack.c.l.b16 %v2423
        %v2495 = vunpack.c.l.b16 %v2424
        %v2496 = vunpack.c.l.b16 %v2425
        %v2497 = vunpack.c.l.b16 %v2426
        %v2498 = vunpack.c.l.b16 %v2427
        %v2499 = vunpack.c.l.b16 %v2428
        %v2500 = vunpack.c.l.b16 %v2429
        %v2501 = vunpack.c.l.b16 %v2430
        %v2502 = vunpack.c.l.b16 %v2431
        %v2503 = vunpack.c.l.b16 %v2432
        %v2504 = vunpack.c.l.b16 %v2433
        %v2505 = vunpack.c.l.b16 %v2434
        %v2506 = vunpack.c.l.b16 %v2435
        %v2507 = vunpack.c.l.b16 %v2436
        %v2508 = vunpack.c.l.b16 %v2437
        %v2509 = vunpack.c.l.b16 %v2438
        %v2510 = vunpack.c.l.b16 %v2439
        %v2511 = vunpack.c.l.b16 %v2440
        %v2512 = vunpack.c.l.b16 %v2441
        %v2513 = vunpack.c.l.b16 %v2442
        %v2514 = vunpack.c.l.b16 %v2443
        %v2515 = vunpack.c.l.b16 %v2444
        %v2516 = vunpack.c.l.b16 %v2445
        %v2517 = vunpack.c.l.b16 %v2446
        %v2518 = vunpack.c.l.b16 %v2447
        %v2519 = vunpack.c.l.b16 %v2448
        %v2520 = vpack.c.b16 %v2489, %v2488
        %v2521 = vpack.c.b16 %v2491, %v2490
        %v2522 = vpack.c.b16 %v2493, %v2492
        %v2523 = vpack.c.b16 %v2495, %v2494
        %v2524 = vpack.c.b16 %v2497, %v2496
        %v2525 = vpack.c.b16 %v2499, %v2498
        %v2526 = vpack.c.b16 %v2501, %v2500
        %v2527 = vpack.c.b16 %v2503, %v2502
        %v2528 = vpack.c.b16 %v2505, %v2504
        %v2529 = vpack.c.b16 %v2507, %v2506
        %v2530 = vpack.c.b16 %v2509, %v2508
        %v2531 = vpack.c.b16 %v2511, %v2510
        %v2532 = vpack.c.b16 %v2513, %v2512
        %v2533 = vpack.c.b16 %v2515, %v2514
        %v2534 = vpack.c.b16 %v2517, %v2516
        %v2535 = vpack.c.b16 %v2519, %v2518
        %2552 = vmatprep.subr.bf16.mxu0 0
        %2553 = vmatpush1.bf16.msra.mxu0 %v2520
        %2554 = vmatprep.subr.bf16.mxu0 0
        %2555 = vmatpush1.bf16.msra.mxu0 %v2521
        %2556 = vmatprep.subr.bf16.mxu0 0
        %2557 = vmatpush1.bf16.msra.mxu0 %v2522
        %2558 = vmatprep.subr.bf16.mxu0 0
        %2559 = vmatpush1.bf16.msra.mxu0 %v2523
        %2560 = vmatprep.subr.bf16.mxu0 0
        %2561 = vmatpush1.bf16.msra.mxu0 %v2524
        %2562 = vmatprep.subr.bf16.mxu0 0
        %2563 = vmatpush1.bf16.msra.mxu0 %v2525
        %2564 = vmatprep.subr.bf16.mxu0 0
        %2565 = vmatpush1.bf16.msra.mxu0 %v2526
        %2566 = vmatprep.subr.bf16.mxu0 0
        %2567 = vmatpush1.bf16.msra.mxu0 %v2527
        %2568 = vmatprep.subr.bf16.mxu0 0
        %2569 = vmatpush1.bf16.msra.mxu0 %v2528
        %2570 = vmatprep.subr.bf16.mxu0 0
        %2571 = vmatpush1.bf16.msra.mxu0 %v2529
        %2572 = vmatprep.subr.bf16.mxu0 0
        %2573 = vmatpush1.bf16.msra.mxu0 %v2530
        %2574 = vmatprep.subr.bf16.mxu0 0
        %2575 = vmatpush1.bf16.msra.mxu0 %v2531
        %2576 = vmatprep.subr.bf16.mxu0 0
        %2577 = vmatpush1.bf16.msra.mxu0 %v2532
        %2578 = vmatprep.subr.bf16.mxu0 0
        %2579 = vmatpush1.bf16.msra.mxu0 %v2533
        %2580 = vmatprep.subr.bf16.mxu0 0
        %2581 = vmatpush1.bf16.msra.mxu0 %v2534
        %2582 = vmatprep.subr.bf16.mxu0 0
        %2583 = vmatpush1.bf16.msra.mxu0 %v2535
        %2584 = vmatprep.mubr.bf16.mxu0 %v2416
        %2585 = vmatmul.mubr.bf16.gmra.mrb[0].mxu0 %v2415
        %v2586 = vpop.f32.mrb[0].mxu0
        %v2587 = vadd.f32 %v2454, %v2586
        %v2588 = vpop.f32.mrb[0].mxu0
        %v2589 = vpop.f32.mrb[0].mxu0
        %v2590 = vpop.f32.mrb[0].mxu0
        %2591 = vdwg.mxu0
        %v2592 = vpack.c.bf16 %v2587, %v2587
        %v2593 = vld [vmem:[%s37] sm:$0xf]
        %v2594 = vld [vmem:[%s37 + $0x4] sm:$0xf]
        %v2595 = vld [vmem:[%s37 + $0x8] sm:$0xf]
        %v2596 = vld [vmem:[%s37 + $0xc] sm:$0xf]
        %v2597 = vld [vmem:[%s37 + $0x10] sm:$0xf]
        %v2598 = vld [vmem:[%s37 + $0x14] sm:$0xf]
        %v2599 = vld [vmem:[%s37 + $0x18] sm:$0xf]
        %v2600 = vld [vmem:[%s37 + $0x1c] sm:$0xf]
        %v2601 = vld [vmem:[%s37 + $0x20] sm:$0xf]
        %v2602 = vld [vmem:[%s37 + $0x24] sm:$0xf]
        %v2603 = vld [vmem:[%s37 + $0x28] sm:$0xf]
        %v2604 = vld [vmem:[%s37 + $0x2c] sm:$0xf]
        %v2605 = vld [vmem:[%s37 + $0x30] sm:$0xf]
        %v2606 = vld [vmem:[%s37 + $0x34] sm:$0xf]
        %v2607 = vld [vmem:[%s37 + $0x38] sm:$0xf]
        %v2608 = vld [vmem:[%s37 + $0x3c] sm:$0xf]
        %v2625 = vunpack.c.l.b16 %v2593
        %v2626 = vunpack.c.l.b16 %v2594
        %v2627 = vunpack.c.l.b16 %v2595
        %v2628 = vunpack.c.l.b16 %v2596
        %v2629 = vunpack.c.l.b16 %v2597
        %v2630 = vunpack.c.l.b16 %v2598
        %v2631 = vunpack.c.l.b16 %v2599
        %v2632 = vunpack.c.l.b16 %v2600
        %v2633 = vunpack.c.l.b16 %v2601
        %v2634 = vunpack.c.l.b16 %v2602
        %v2635 = vunpack.c.l.b16 %v2603
        %v2636 = vunpack.c.l.b16 %v2604
        %v2637 = vunpack.c.l.b16 %v2605
        %v2638 = vunpack.c.l.b16 %v2606
        %v2639 = vunpack.c.l.b16 %v2607
        %v2640 = vunpack.c.l.b16 %v2608
        %v2641 = vpack.c.b16 %v2626, %v2625
        %v2642 = vpack.c.b16 %v2628, %v2627
        %v2643 = vpack.c.b16 %v2630, %v2629
        %v2644 = vpack.c.b16 %v2632, %v2631
        %v2645 = vpack.c.b16 %v2634, %v2633
        %v2646 = vpack.c.b16 %v2636, %v2635
        %v2647 = vpack.c.b16 %v2638, %v2637
        %v2648 = vpack.c.b16 %v2640, %v2639
        %2657 = vmatprep.subr.bf16.mxu0 0
        %2658 = vmatpush1.bf16.msra.mxu0 %v2641
        %2659 = vmatprep.subr.bf16.mxu0 0
        %2660 = vmatpush1.bf16.msra.mxu0 %v2642
        %2661 = vmatprep.subr.bf16.mxu0 0
        %2662 = vmatpush1.bf16.msra.mxu0 %v2643
        %2663 = vmatprep.subr.bf16.mxu0 0
        %2664 = vmatpush1.bf16.msra.mxu0 %v2644
        %2665 = vmatprep.subr.bf16.mxu0 0
        %2666 = vmatpush1.bf16.msra.mxu0 %v2645
        %2667 = vmatprep.subr.bf16.mxu0 0
        %2668 = vmatpush1.bf16.msra.mxu0 %v2646
        %2669 = vmatprep.subr.bf16.mxu0 0
        %2670 = vmatpush1.bf16.msra.mxu0 %v2647
        %2671 = vmatprep.subr.bf16.mxu0 0
        %2672 = vmatpush1.bf16.msra.mxu0 %v2648
        %2673 = vmatprep.subr.bf16.mxu0 0
        %2674 = vmatpush1.bf16.msra.mxu0 0
        %2675 = vmatprep.subr.bf16.mxu0 0
        %2676 = vmatpush1.bf16.msra.mxu0 0
        %2677 = vmatprep.subr.bf16.mxu0 0
        %2678 = vmatpush1.bf16.msra.mxu0 0
        %2679 = vmatprep.subr.bf16.mxu0 0
        %2680 = vmatpush1.bf16.msra.mxu0 0
        %2681 = vmatprep.subr.bf16.mxu0 0
        %2682 = vmatpush1.bf16.msra.mxu0 0
        %2683 = vmatprep.subr.bf16.mxu0 0
        %2684 = vmatpush1.bf16.msra.mxu0 0
        %2685 = vmatprep.subr.bf16.mxu0 0
        %2686 = vmatpush1.bf16.msra.mxu0 0
        %2687 = vmatprep.subr.bf16.mxu0 0
        %2688 = vmatpush1.bf16.msra.mxu0 0
        %2689 = vmatprep.mubr.bf16.mxu0 0
        %2690 = vmatmul.mubr.bf16.gmra.mrb[0].mxu0 %v2592
        %v2691 = vpop.f32.mrb[0].mxu0
        %v2692 = vadd.f32 0.0, %v2691
        %v2693 = vpop.f32.mrb[0].mxu0
        %v2694 = vpop.f32.mrb[0].mxu0
        %v2695 = vpop.f32.mrb[0].mxu0
        %2696 = vdwg.mxu0
        %v2697 = vmul.f32 %v2692, 0.35355338
        %vm2698 = vcmask 130048
        %v2699 = vsel %vm2698, %v2697, -inf
        %v2700 = vrot.slane %v2699, 4
        %v2701 = vmax.f32 %v2699, %v2700
        %v2702 = vrot.slane %v2701, 2
        %v2703 = vmax.f32 %v2701, %v2702
        %v2704 = vrot.slane %v2703, 1
        %v2705 = vmax.f32 %v2703, %v2704
        %v2706 = vsub.f32 %v2697, %v2705
        %v2707 = vmul.f32 %v2706, 1.442695
        %v2708 = vpow.pop %v2707
        %v2709 = vsel %vm2698, %v2708, 0.0
        %v2710 = vrot.slane %v2709, 4
        %v2711 = vadd.f32 %v2709, %v2710
        %v2712 = vrot.slane %v2711, 2
        %v2713 = vadd.f32 %v2711, %v2712
        %v2714 = vrot.slane %v2713, 1
        %v2715 = vadd.f32 %v2713, %v2714
        %v2716 = vrcp.pop %v2715
        %v2717 = vmul.f32 %v2708, %v2716
        %v2718 = vld [vmem:[%s39] sm:$0xff]
        %v2719 = vld [vmem:[%s39 + $0x8] sm:$0xff]
        %v2720 = vld [vmem:[%s39 + $0x10] sm:$0xff]
        %v2721 = vld [vmem:[%s39 + $0x18] sm:$0xff]
        %v2723 = vsel %vm2698, %v2717, 0
        %2725 = vmatprep.subr.mxu0 %v2719
        %2726 = vmatpush1.msra.mxu0 %v2718
        %2727 = vmatprep.subr.mxu0 %v2721
        %2728 = vmatpush1.msra.mxu0 %v2720
        %2729 = vmatprep.subr.mxu0 0.0
        %2730 = vmatpush1.msra.mxu0 0.0
        %2731 = vmatprep.subr.mxu0 0.0
        %2732 = vmatpush1.msra.mxu0 0.0
        %2733 = vmatprep.subr.mxu0 0.0
        %2734 = vmatpush1.msra.mxu0 0.0
        %2735 = vmatprep.subr.mxu0 0.0
        %2736 = vmatpush1.msra.mxu0 0.0
        %2737 = vmatprep.subr.mxu0 0.0
        %2738 = vmatpush1.msra.mxu0 0.0
        %2739 = vmatprep.subr.mxu0 0.0
        %2740 = vmatpush1.msra.mxu0 0.0
        %2741 = vmatprep.subr.mxu0 0.0
        %2742 = vmatpush1.msra.mxu0 0.0
        %2743 = vmatprep.subr.mxu0 0.0
        %2744 = vmatpush1.msra.mxu0 0.0
        %2745 = vmatprep.subr.mxu0 0.0
        %2746 = vmatpush1.msra.mxu0 0.0
        %2747 = vmatprep.subr.mxu0 0.0
        %2748 = vmatpush1.msra.mxu0 0.0
        %2749 = vmatprep.subr.mxu0 0.0
        %2750 = vmatpush1.msra.mxu0 0.0
        %2751 = vmatprep.subr.mxu0 0.0
        %2752 = vmatpush1.msra.mxu0 0.0
        %2753 = vmatprep.subr.mxu0 0.0
        %2754 = vmatpush1.msra.mxu0 0.0
        %2755 = vmatprep.subr.mxu0 0.0
        %2756 = vmatpush1.msra.mxu0 0.0
        %2757 = vmatprep.subr.mxu0 0.0
        %2758 = vmatpush1.msra.mxu0 0.0
        %2759 = vmatprep.subr.mxu0 0.0
        %2760 = vmatpush1.msra.mxu0 0.0
        %2761 = vmatprep.subr.mxu0 0.0
        %2762 = vmatpush1.msra.mxu0 0.0
        %2763 = vmatprep.subr.mxu0 0.0
        %2764 = vmatpush1.msra.mxu0 0.0
        %2765 = vmatprep.subr.mxu0 0.0
        %2766 = vmatpush1.msra.mxu0 0.0
        %2767 = vmatprep.subr.mxu0 0.0
        %2768 = vmatpush1.msra.mxu0 0.0
        %2769 = vmatprep.subr.mxu0 0.0
        %2770 = vmatpush1.msra.mxu0 0.0
        %2771 = vmatprep.subr.mxu0 0.0
        %2772 = vmatpush1.msra.mxu0 0.0
        %2773 = vmatprep.subr.mxu0 0.0
        %2774 = vmatpush1.msra.mxu0 0.0
        %2775 = vmatprep.subr.mxu0 0.0
        %2776 = vmatpush1.msra.mxu0 0.0
        %2777 = vmatprep.subr.mxu0 0.0
        %2778 = vmatpush1.msra.mxu0 0.0
        %2779 = vmatprep.subr.mxu0 0.0
        %2780 = vmatpush1.msra.mxu0 0.0
        %2781 = vmatprep.subr.mxu0 0.0
        %2782 = vmatpush1.msra.mxu0 0.0
        %2783 = vmatprep.subr.mxu0 0.0
        %2784 = vmatpush1.msra.mxu0 0.0
        %2785 = vmatprep.subr.mxu0 0.0
        %2786 = vmatpush1.msra.mxu0 0.0
        %2787 = vmatprep.subr.mxu0 0.0
        %2788 = vmatpush1.msra.mxu0 0.0
        %2789 = vmatprep.mubr.f32.mxu0 0.0
        %2790 = vmatmul.mubr.f32.gmra.mrb[0].mxu0 %v2723
        %v2791 = vpop.f32.mrb[0].mxu0
        %v2792 = vadd.f32 0.0, %v2791
        %v2793 = vpop.f32.mrb[0].mxu0
        %v2794 = vadd.f32 0.0, %v2793
        %2795 = vdwg.mxu0
        %v2796 = vmul.f32 %v2792, %v2413
        %v2797 = vmul.f32 %v2794, %v2414
        %v2798 = vrot.slane %v2796, 4
        %v2799 = vadd.f32 %v2796, %v2798
        %v2800 = vrot.slane %v2799, 2
        %v2801 = vadd.f32 %v2799, %v2800
        %v2802 = vrot.slane %v2801, 1
        %v2803 = vadd.f32 %v2801, %v2802
        %v2804 = vrot.slane %v2797, 4
        %v2805 = vadd.f32 %v2797, %v2804
        %v2806 = vrot.slane %v2805, 2
        %v2807 = vadd.f32 %v2805, %v2806
        %v2808 = vrot.slane %v2807, 1
        %v2809 = vadd.f32 %v2807, %v2808
        %v2810 = vpack.c.bf16 %v2803, %v2803
        %v2811 = vpack.c.bf16 %v2809, %v2809
        %v2812 = vld [vmem:[%s41] sm:$0xf]
        %v2813 = vld [vmem:[%s41 + $0x4] sm:$0xf]
        %v2814 = vld [vmem:[%s41 + $0x8] sm:$0xf]
        %v2815 = vld [vmem:[%s41 + $0xc] sm:$0xf]
        %v2816 = vld [vmem:[%s41 + $0x10] sm:$0xf]
        %v2817 = vld [vmem:[%s41 + $0x14] sm:$0xf]
        %v2818 = vld [vmem:[%s41 + $0x18] sm:$0xf]
        %v2819 = vld [vmem:[%s41 + $0x1c] sm:$0xf]
        %v2820 = vld [vmem:[%s41 + $0x20] sm:$0xf]
        %v2821 = vld [vmem:[%s41 + $0x24] sm:$0xf]
        %v2822 = vld [vmem:[%s41 + $0x28] sm:$0xf]
        %v2823 = vld [vmem:[%s41 + $0x2c] sm:$0xf]
        %v2824 = vld [vmem:[%s41 + $0x30] sm:$0xf]
        %v2825 = vld [vmem:[%s41 + $0x34] sm:$0xf]
        %v2826 = vld [vmem:[%s41 + $0x38] sm:$0xf]
        %v2827 = vld [vmem:[%s41 + $0x3c] sm:$0xf]
        %v2828 = vld [vmem:[%s41 + $0x40] sm:$0xf]
        %v2829 = vld [vmem:[%s41 + $0x44] sm:$0xf]
        %v2830 = vld [vmem:[%s41 + $0x48] sm:$0xf]
        %v2831 = vld [vmem:[%s41 + $0x4c] sm:$0xf]
        %v2832 = vld [vmem:[%s41 + $0x50] sm:$0xf]
        %v2833 = vld [vmem:[%s41 + $0x54] sm:$0xf]
        %v2834 = vld [vmem:[%s41 + $0x58] sm:$0xf]
        %v2835 = vld [vmem:[%s41 + $0x5c] sm:$0xf]
        %v2836 = vld [vmem:[%s41 + $0x60] sm:$0xf]
        %v2837 = vld [vmem:[%s41 + $0x64] sm:$0xf]
        %v2838 = vld [vmem:[%s41 + $0x68] sm:$0xf]
        %v2839 = vld [vmem:[%s41 + $0x6c] sm:$0xf]
        %v2840 = vld [vmem:[%s41 + $0x70] sm:$0xf]
        %v2841 = vld [vmem:[%s41 + $0x74] sm:$0xf]
        %v2842 = vld [vmem:[%s41 + $0x78] sm:$0xf]
        %v2843 = vld [vmem:[%s41 + $0x7c] sm:$0xf]
        %v2844 = vld [vmem:[%s43] sm:$0x1]
        %v2877 = vunpack.c.l.b16 %v2812
        %v2878 = vunpack.c.l.b16 %v2813
        %v2879 = vunpack.c.l.b16 %v2814
        %v2880 = vunpack.c.l.b16 %v2815
        %v2881 = vunpack.c.l.b16 %v2816
        %v2882 = vunpack.c.l.b16 %v2817
        %v2883 = vunpack.c.l.b16 %v2818
        %v2884 = vunpack.c.l.b16 %v2819
        %v2885 = vunpack.c.l.b16 %v2820
        %v2886 = vunpack.c.l.b16 %v2821
        %v2887 = vunpack.c.l.b16 %v2822
        %v2888 = vunpack.c.l.b16 %v2823
        %v2889 = vunpack.c.l.b16 %v2824
        %v2890 = vunpack.c.l.b16 %v2825
        %v2891 = vunpack.c.l.b16 %v2826
        %v2892 = vunpack.c.l.b16 %v2827
        %v2893 = vunpack.c.l.b16 %v2828
        %v2894 = vunpack.c.l.b16 %v2829
        %v2895 = vunpack.c.l.b16 %v2830
        %v2896 = vunpack.c.l.b16 %v2831
        %v2897 = vunpack.c.l.b16 %v2832
        %v2898 = vunpack.c.l.b16 %v2833
        %v2899 = vunpack.c.l.b16 %v2834
        %v2900 = vunpack.c.l.b16 %v2835
        %v2901 = vunpack.c.l.b16 %v2836
        %v2902 = vunpack.c.l.b16 %v2837
        %v2903 = vunpack.c.l.b16 %v2838
        %v2904 = vunpack.c.l.b16 %v2839
        %v2905 = vunpack.c.l.b16 %v2840
        %v2906 = vunpack.c.l.b16 %v2841
        %v2907 = vunpack.c.l.b16 %v2842
        %v2908 = vunpack.c.l.b16 %v2843
        %v2909 = vpack.c.b16 %v2878, %v2877
        %v2910 = vpack.c.b16 %v2880, %v2879
        %v2911 = vpack.c.b16 %v2882, %v2881
        %v2912 = vpack.c.b16 %v2884, %v2883
        %v2913 = vpack.c.b16 %v2886, %v2885
        %v2914 = vpack.c.b16 %v2888, %v2887
        %v2915 = vpack.c.b16 %v2890, %v2889
        %v2916 = vpack.c.b16 %v2892, %v2891
        %v2917 = vpack.c.b16 %v2894, %v2893
        %v2918 = vpack.c.b16 %v2896, %v2895
        %v2919 = vpack.c.b16 %v2898, %v2897
        %v2920 = vpack.c.b16 %v2900, %v2899
        %v2921 = vpack.c.b16 %v2902, %v2901
        %v2922 = vpack.c.b16 %v2904, %v2903
        %v2923 = vpack.c.b16 %v2906, %v2905
        %v2924 = vpack.c.b16 %v2908, %v2907
        %2941 = vmatprep.subr.bf16.mxu0 0
        %2942 = vmatpush1.bf16.msra.mxu0 %v2909
        %2943 = vmatprep.subr.bf16.mxu0 0
        %2944 = vmatpush1.bf16.msra.mxu0 %v2910
        %2945 = vmatprep.subr.bf16.mxu0 0
        %2946 = vmatpush1.bf16.msra.mxu0 %v2911
        %2947 = vmatprep.subr.bf16.mxu0 0
        %2948 = vmatpush1.bf16.msra.mxu0 %v2912
        %2949 = vmatprep.subr.bf16.mxu0 0
        %2950 = vmatpush1.bf16.msra.mxu0 %v2913
        %2951 = vmatprep.subr.bf16.mxu0 0
        %2952 = vmatpush1.bf16.msra.mxu0 %v2914
        %2953 = vmatprep.subr.bf16.mxu0 0
        %2954 = vmatpush1.bf16.msra.mxu0 %v2915
        %2955 = vmatprep.subr.bf16.mxu0 0
        %2956 = vmatpush1.bf16.msra.mxu0 %v2916
        %2957 = vmatprep.subr.bf16.mxu0 0
        %2958 = vmatpush1.bf16.msra.mxu0 %v2917
        %2959 = vmatprep.subr.bf16.mxu0 0
        %2960 = vmatpush1.bf16.msra.mxu0 %v2918
        %2961 = vmatprep.subr.bf16.mxu0 0
        %2962 = vmatpush1.bf16.msra.mxu0 %v2919
        %2963 = vmatprep.subr.bf16.mxu0 0
        %2964 = vmatpush1.bf16.msra.mxu0 %v2920
        %2965 = vmatprep.subr.bf16.mxu0 0
        %2966 = vmatpush1.bf16.msra.mxu0 %v2921
        %2967 = vmatprep.subr.bf16.mxu0 0
        %2968 = vmatpush1.bf16.msra.mxu0 %v2922
        %2969 = vmatprep.subr.bf16.mxu0 0
        %2970 = vmatpush1.bf16.msra.mxu0 %v2923
        %2971 = vmatprep.subr.bf16.mxu0 0
        %2972 = vmatpush1.bf16.msra.mxu0 %v2924
        %2973 = vmatprep.mubr.bf16.mxu0 %v2811
        %2974 = vmatmul.mubr.bf16.gmra.mrb[0].mxu0 %v2810
        %v2975 = vpop.f32.mrb[0].mxu0
        %v2976 = vadd.f32 %v2844, %v2975
        %v2977 = vpop.f32.mrb[0].mxu0
        %v2978 = vpop.f32.mrb[0].mxu0
        %v2979 = vpop.f32.mrb[0].mxu0
        %2980 = vdwg.mxu0
        %v2981 = vmax.f32 %v2976, 0.0
        %vm2982 = vcmask 1040384
        %v2983 = vsel %vm2982, %v2981, 0.0
        %2984 = vadd.xlane.f32.xlu0 %v2983
        %v2985 = vpop.xlane.xlu0 %2984
        %v2986 = vmul.f32 %v2985, %v2235
        %v2987 = vsub.f32 %v2981, %v2986
        %v2988 = vmul.f32 %v2987, %v2987
        %v2989 = vsel %vm2982, %v2988, 0.0
        %2990 = vadd.xlane.f32.xlu0 %v2989
        %v2991 = vpop.xlane.xlu0 %2990
        %v2992 = vmul.f32 %v2991, %v2235
        %v2993 = vadd.f32 %v2992, 1e-05
        %v2994 = vrsqrt.pop %v2993
        %v2995 = vmul.f32 %v2987, %v2994
        %v2996 = vld [vmem:[%s45] sm:$0x1]
        %v2997 = vmul.f32 %v2995, %v2996
        %v2998 = vld [vmem:[%s47] sm:$0x1]
        %v2999 = vadd.f32 %v2997, %v2998
        %v3000 = vpack.c.bf16 %v2999, %v2999
        %v3001 = vld [vmem:[%s49] sm:$0xf]
        %v3002 = vld [vmem:[%s49 + $0x4] sm:$0xf]
        %v3003 = vld [vmem:[%s49 + $0x8] sm:$0xf]
        %v3004 = vld [vmem:[%s49 + $0xc] sm:$0xf]
        %v3005 = vld [vmem:[%s49 + $0x10] sm:$0xf]
        %v3006 = vld [vmem:[%s49 + $0x14] sm:$0xf]
        %v3007 = vld [vmem:[%s49 + $0x18] sm:$0xf]
        %v3008 = vld [vmem:[%s49 + $0x1c] sm:$0xf]
        %v3009 = vld [vmem:[%s49 + $0x20] sm:$0xf]
        %v3010 = vld [vmem:[%s49 + $0x24] sm:$0xf]
        %v3011 = vld [vmem:[%s49 + $0x28] sm:$0xf]
        %v3012 = vld [vmem:[%s49 + $0x2c] sm:$0xf]
        %v3013 = vld [vmem:[%s49 + $0x30] sm:$0xf]
        %v3014 = vld [vmem:[%s49 + $0x34] sm:$0xf]
        %v3015 = vld [vmem:[%s49 + $0x38] sm:$0xf]
        %v3016 = vld [vmem:[%s49 + $0x3c] sm:$0xf]
        %v3017 = vld [vmem:[%s51] sm:$0x1]
        %v3034 = vunpack.c.l.b16 %v3001
        %v3035 = vunpack.c.l.b16 %v3002
        %v3036 = vunpack.c.l.b16 %v3003
        %v3037 = vunpack.c.l.b16 %v3004
        %v3038 = vunpack.c.l.b16 %v3005
        %v3039 = vunpack.c.l.b16 %v3006
        %v3040 = vunpack.c.l.b16 %v3007
        %v3041 = vunpack.c.l.b16 %v3008
        %v3042 = vunpack.c.l.b16 %v3009
        %v3043 = vunpack.c.l.b16 %v3010
        %v3044 = vunpack.c.l.b16 %v3011
        %v3045 = vunpack.c.l.b16 %v3012
        %v3046 = vunpack.c.l.b16 %v3013
        %v3047 = vunpack.c.l.b16 %v3014
        %v3048 = vunpack.c.l.b16 %v3015
        %v3049 = vunpack.c.l.b16 %v3016
        %v3050 = vpack.c.b16 %v3035, %v3034
        %v3051 = vpack.c.b16 %v3037, %v3036
        %v3052 = vpack.c.b16 %v3039, %v3038
        %v3053 = vpack.c.b16 %v3041, %v3040
        %v3054 = vpack.c.b16 %v3043, %v3042
        %v3055 = vpack.c.b16 %v3045, %v3044
        %v3056 = vpack.c.b16 %v3047, %v3046
        %v3057 = vpack.c.b16 %v3049, %v3048
        %3066 = vmatprep.subr.bf16.mxu0 0
        %3067 = vmatpush1.bf16.msra.mxu0 %v3050
        %3068 = vmatprep.subr.bf16.mxu0 0
        %3069 = vmatpush1.bf16.msra.mxu0 %v3051
        %3070 = vmatprep.subr.bf16.mxu0 0
        %3071 = vmatpush1.bf16.msra.mxu0 %v3052
        %3072 = vmatprep.subr.bf16.mxu0 0
        %3073 = vmatpush1.bf16.msra.mxu0 %v3053
        %3074 = vmatprep.subr.bf16.mxu0 0
        %3075 = vmatpush1.bf16.msra.mxu0 %v3054
        %3076 = vmatprep.subr.bf16.mxu0 0
        %3077 = vmatpush1.bf16.msra.mxu0 %v3055
        %3078 = vmatprep.subr.bf16.mxu0 0
        %3079 = vmatpush1.bf16.msra.mxu0 %v3056
        %3080 = vmatprep.subr.bf16.mxu0 0
        %3081 = vmatpush1.bf16.msra.mxu0 %v3057
        %3082 = vmatprep.subr.bf16.mxu0 0
        %3083 = vmatpush1.bf16.msra.mxu0 0
        %3084 = vmatprep.subr.bf16.mxu0 0
        %3085 = vmatpush1.bf16.msra.mxu0 0
        %3086 = vmatprep.subr.bf16.mxu0 0
        %3087 = vmatpush1.bf16.msra.mxu0 0
        %3088 = vmatprep.subr.bf16.mxu0 0
        %3089 = vmatpush1.bf16.msra.mxu0 0
        %3090 = vmatprep.subr.bf16.mxu0 0
        %3091 = vmatpush1.bf16.msra.mxu0 0
        %3092 = vmatprep.subr.bf16.mxu0 0
        %3093 = vmatpush1.bf16.msra.mxu0 0
        %3094 = vmatprep.subr.bf16.mxu0 0
        %3095 = vmatpush1.bf16.msra.mxu0 0
        %3096 = vmatprep.subr.bf16.mxu0 0
        %3097 = vmatpush1.bf16.msra.mxu0 0
        %3098 = vmatprep.mubr.bf16.mxu0 0
        %3099 = vmatmul.mubr.bf16.gmra.mrb[0].mxu0 %v3000
        %v3100 = vpop.f32.mrb[0].mxu0
        %v3101 = vadd.f32 %v3017, %v3100
        %v3102 = vpop.f32.mrb[0].mxu0
        %v3103 = vpop.f32.mrb[0].mxu0
        %v3104 = vpop.f32.mrb[0].mxu0
        %3105 = vdwg.mxu0
        %v3106 = vmax.f32 %v3101, 0.0
        %v3107 = vpack.c.bf16 %v3106, %v3106
        %v3108 = vld [vmem:[%s53] sm:$0xf]
        %v3109 = vld [vmem:[%s53 + $0x4] sm:$0xf]
        %v3110 = vld [vmem:[%s53 + $0x8] sm:$0xf]
        %v3111 = vld [vmem:[%s53 + $0xc] sm:$0xf]
        %v3112 = vld [vmem:[%s53 + $0x10] sm:$0xf]
        %v3113 = vld [vmem:[%s53 + $0x14] sm:$0xf]
        %v3114 = vld [vmem:[%s53 + $0x18] sm:$0xf]
        %v3115 = vld [vmem:[%s53 + $0x1c] sm:$0xf]
        %v3116 = vld [vmem:[%s55] sm:$0x1]
        %v3125 = vunpack.c.l.b16 %v3108
        %v3126 = vunpack.c.l.b16 %v3109
        %v3127 = vunpack.c.l.b16 %v3110
        %v3128 = vunpack.c.l.b16 %v3111
        %v3129 = vunpack.c.l.b16 %v3112
        %v3130 = vunpack.c.l.b16 %v3113
        %v3131 = vunpack.c.l.b16 %v3114
        %v3132 = vunpack.c.l.b16 %v3115
        %v3133 = vpack.c.b16 %v3126, %v3125
        %v3134 = vpack.c.b16 %v3128, %v3127
        %v3135 = vpack.c.b16 %v3130, %v3129
        %v3136 = vpack.c.b16 %v3132, %v3131
        %v3142 = vsel %vm1560, %v3107, 0
        %3144 = vmatprep.subr.bf16.mxu0 0
        %3145 = vmatpush1.bf16.msra.mxu0 %v3133
        %3146 = vmatprep.subr.bf16.mxu0 0
        %3147 = vmatpush1.bf16.msra.mxu0 %v3134
        %3148 = vmatprep.subr.bf16.mxu0 0
        %3149 = vmatpush1.bf16.msra.mxu0 %v3135
        %3150 = vmatprep.subr.bf16.mxu0 0
        %3151 = vmatpush1.bf16.msra.mxu0 %v3136
        %3152 = vmatprep.subr.bf16.mxu0 0
        %3153 = vmatpush1.bf16.msra.mxu0 0
        %3154 = vmatprep.subr.bf16.mxu0 0
        %3155 = vmatpush1.bf16.msra.mxu0 0
        %3156 = vmatprep.subr.bf16.mxu0 0
        %3157 = vmatpush1.bf16.msra.mxu0 0
        %3158 = vmatprep.subr.bf16.mxu0 0
        %3159 = vmatpush1.bf16.msra.mxu0 0
        %3160 = vmatprep.subr.bf16.mxu0 0
        %3161 = vmatpush1.bf16.msra.mxu0 0
        %3162 = vmatprep.subr.bf16.mxu0 0
        %3163 = vmatpush1.bf16.msra.mxu0 0
        %3164 = vmatprep.subr.bf16.mxu0 0
        %3165 = vmatpush1.bf16.msra.mxu0 0
        %3166 = vmatprep.subr.bf16.mxu0 0
        %3167 = vmatpush1.bf16.msra.mxu0 0
        %3168 = vmatprep.subr.bf16.mxu0 0
        %3169 = vmatpush1.bf16.msra.mxu0 0
        %3170 = vmatprep.subr.bf16.mxu0 0
        %3171 = vmatpush1.bf16.msra.mxu0 0
        %3172 = vmatprep.subr.bf16.mxu0 0
        %3173 = vmatpush1.bf16.msra.mxu0 0
        %3174 = vmatprep.subr.bf16.mxu0 0
        %3175 = vmatpush1.bf16.msra.mxu0 0
        %3176 = vmatprep.mubr.bf16.mxu0 0
        %3177 = vmatmul.mubr.bf16.gmra.mrb[0].mxu0 %v3142
        %v3178 = vpop.f32.mrb[0].mxu0
        %v3179 = vadd.f32 %v3116, %v3178
        %v3180 = vpop.f32.mrb[0].mxu0
        %v3181 = vpop.f32.mrb[0].mxu0
        %v3182 = vpop.f32.mrb[0].mxu0
        %3183 = vdwg.mxu0
        %v3184 = vmax.f32 %v3179, 0.0
        %v3185 = vpack.c.bf16 %v3184, %v3184
        %v3186 = vld [vmem:[%s57] sm:$0xf]
        %v3187 = vld [vmem:[%s57 + $0x4] sm:$0xf]
        %v3188 = vld [vmem:[%s57 + $0x8] sm:$0xf]
        %v3189 = vld [vmem:[%s57 + $0xc] sm:$0xf]
        %v3190 = vld [vmem:[%s59] sm:$0x1]
        %v3195 = vunpack.c.l.b16 %v3186
        %v3196 = vunpack.c.l.b16 %v3187
        %v3197 = vunpack.c.l.b16 %v3188
        %v3198 = vunpack.c.l.b16 %v3189
        %v3199 = vpack.c.b16 %v3196, %v3195
        %v3200 = vpack.c.b16 %v3198, %v3197
        %v3204 = vsel %vm1229, %v3185, 0
        %3206 = vmatprep.subr.bf16.mxu0 0
        %3207 = vmatpush1.bf16.msra.mxu0 %v3199
        %3208 = vmatprep.subr.bf16.mxu0 0
        %3209 = vmatpush1.bf16.msra.mxu0 %v3200
        %3210 = vmatprep.subr.bf16.mxu0 0
        %3211 = vmatpush1.bf16.msra.mxu0 0
        %3212 = vmatprep.subr.bf16.mxu0 0
        %3213 = vmatpush1.bf16.msra.mxu0 0
        %3214 = vmatprep.subr.bf16.mxu0 0
        %3215 = vmatpush1.bf16.msra.mxu0 0
        %3216 = vmatprep.subr.bf16.mxu0 0
        %3217 = vmatpush1.bf16.msra.mxu0 0
        %3218 = vmatprep.subr.bf16.mxu0 0
        %3219 = vmatpush1.bf16.msra.mxu0 0
        %3220 = vmatprep.subr.bf16.mxu0 0
        %3221 = vmatpush1.bf16.msra.mxu0 0
        %3222 = vmatprep.subr.bf16.mxu0 0
        %3223 = vmatpush1.bf16.msra.mxu0 0
        %3224 = vmatprep.subr.bf16.mxu0 0
        %3225 = vmatpush1.bf16.msra.mxu0 0
        %3226 = vmatprep.subr.bf16.mxu0 0
        %3227 = vmatpush1.bf16.msra.mxu0 0
        %3228 = vmatprep.subr.bf16.mxu0 0
        %3229 = vmatpush1.bf16.msra.mxu0 0
        %3230 = vmatprep.subr.bf16.mxu0 0
        %3231 = vmatpush1.bf16.msra.mxu0 0
        %3232 = vmatprep.subr.bf16.mxu0 0
        %3233 = vmatpush1.bf16.msra.mxu0 0
        %3234 = vmatprep.subr.bf16.mxu0 0
        %3235 = vmatpush1.bf16.msra.mxu0 0
        %3236 = vmatprep.subr.bf16.mxu0 0
        %3237 = vmatpush1.bf16.msra.mxu0 0
        %3238 = vmatprep.mubr.bf16.mxu0 0
        %3239 = vmatmul.mubr.bf16.gmra.mrb[0].mxu0 %v3204
        %v3240 = vpop.f32.mrb[0].mxu0
        %v3241 = vadd.f32 %v3190, %v3240
        %v3242 = vpop.f32.mrb[0].mxu0
        %v3243 = vpop.f32.mrb[0].mxu0
        %v3244 = vpop.f32.mrb[0].mxu0
        %3245 = vdwg.mxu0
        %vm3246 = vcmask 155648
        %3247 = vst.msk [vmem:[%s965] sm:$0x1] %vm3246, %v3241
        %s3248 = sand.u32 %s733, 1
        %s3249 = scalar_lea.sflag [#allocation3], %s3248
        %s3250 = sand.u32 %s733, 1
        %s3251 = scalar_lea.vmem [#allocation2], %s3250
        // Predicated region
        $region141: #{tpu_custom_call.1} parent=139 // pred_check
          %p3252 = pneg %p743
        $region142: #{tpu_custom_call.1} parent=139 // pred_check_branch
          %3254 = sbr.rel (%p3252) target = $region144
        $region143: #{tpu_custom_call.1} parent=139 // pred_region
          %s3256 = ssub.s32 16, 16
          %3257 = vsyncadd %s3249, %s3256
          %s3258 = smul.addr %s75, 16
          %s3259 = scalar_lea.hbm %s61, %s3258
          %s3261 = sshll.u32 %s3251, 4
          %s3262 = int_to_ptr.vmem [resolvable:$true] %s3261
          %3264 = dma.vmem_to_hbm [thread:$0]  %s3262, 16, %s3259, %s3249
        $region144: #{tpu_custom_call.1} parent=139 // pred_fallthru
          _
      $region140: #{tpu_custom_call.1} parent=5 // pred_fallthru
        _
      %p3265 = scmp.le.s32.totalorder 2, %s70
      // Predicated region
      $region145: #{tpu_custom_call.1} parent=5 // pred_check
        %p3266 = pneg %p3265
      $region146: #{tpu_custom_call.1} parent=5 // pred_check_branch
        %3268 = sbr.rel (%p3266) target = $region148
      $region147: #{tpu_custom_call.1} parent=5 // pred_region
        %s3269 = ssub.s32 %s70, 2
        // Predicated region
        $region149: #{tpu_custom_call.1} parent=147 // pred_check
          %p3270 = pneg %p749
        $region150: #{tpu_custom_call.1} parent=147 // pred_check_branch
          %3272 = sbr.rel (%p3270) target = $region152
        $region151: #{tpu_custom_call.1} parent=147 // pred_region
          %s3273 = sand.u32 %s734, 1
          %s3274 = scalar_lea.sflag [#allocation3], %s3273
          %s3275 = sand.u32 %s734, 1
          %s3276 = scalar_lea.vmem [#allocation2], %s3275
          %3277 = dma.done %s3274, 16
        $region152: #{tpu_custom_call.1} parent=147 // pred_fallthru
          _
      $region148: #{tpu_custom_call.1} parent=5 // pred_fallthru
        _
    $region6: #{tpu_custom_call.1} parent=1 // loop_footer
      %s74 = sadd.s32 1, %s70
    $region7: #{tpu_custom_call.1} parent=1 // loop_footer_branch
      %69 = sbr.rel target = $region3
    $region8: #{tpu_custom_call.1} parent=1 // loop_exit
      _
    %3278 = vsyncpa [#allocation3], 1
    %s3279 = scalar_lea.sflag [#allocation3], 1
    %3280 = vsyncpa %s3279, 1

</llo_original>
